<compile_context>
chip_gen: v5e
topology: v5e:2x2
jax: 0.10.0
libtpu: 0.0.40
codegen_flags: <defaults>
</compile_context>

<pallas_src>
import jax
import jax.numpy as jnp
from jax.experimental import pallas as pl
from jax.experimental.pallas import tpu as pltpu


def conv_bn_relu_kernel(w_ref, bias_ref, x_ref, o_ref):
    # w_ref:    [C_out, C_in]   bf16, BN-scale-folded, VMEM-resident
    # bias_ref: [C_out, 1]      f32, folded BN bias (beta - mean * scale)
    # x_ref:    [C_in, THW]     activation tile (f32 in; cast to bf16 in VMEM)
    # o_ref:    [C_out, THW]    output tile
    x = x_ref[...].astype(w_ref.dtype)           # free VPU filler under mem-bound
    y = jnp.dot(w_ref[...], x, preferred_element_type=jnp.float32)
    y = y + bias_ref[...]
    o_ref[...] = jnp.maximum(y, 0.0).astype(o_ref.dtype)


def prepare_conv_bn_params(w_oihw, gamma, beta, running_mean, running_var,
                           eps=1e-5, compute_dtype=jnp.bfloat16):
    """One-time weight/BN prep: fold BN scale into the conv weight."""
    C_out, C_in = w_oihw.shape[0], w_oihw.shape[1]
    w2d_f32 = w_oihw.reshape(C_out, C_in).astype(jnp.float32)
    inv_std = gamma / jnp.sqrt(running_var + eps)
    w2d = (inv_std[:, None] * w2d_f32).astype(compute_dtype)   # scale folded in
    bias = (beta - running_mean * inv_std).reshape(C_out, 1).astype(jnp.float32)
    return w2d, bias


def _round_up(x, m):
    return ((x + m - 1) // m) * m


def _default_hw_tile():
    # v5e has a 16 MiB default scoped VMEM; 1024 keeps the f32-X footprint modest.
    # v6e/v7x: 2048 amortizes the ~0.35 us per-grid-step overhead.
    try:
        kind = jax.devices()[0].device_kind.lower()
    except Exception:
        kind = ""
    if ("v5 lite" in kind) or ("v5e" in kind) or ("v5litepod" in kind):
        return 1024
    return 2048


def conv2d_bn_relu(x_nchw, w2d, bias, *, hw_tile=None, out_dtype=jnp.bfloat16):
    """1x1 conv (no bias) + BatchNorm2d (eval, folded) + ReLU.  NCHW in / NCHW out."""
    N, C_in, H, W = x_nchw.shape
    C_out = w2d.shape[0]
    HW = H * W

    # NCHW-native: pure reshape, no data movement, NO wrapper-side dtype cast.
    x3d = x_nchw.reshape(N, C_in, HW)

    # Lane-dense tile over H*W: multiple of 128, capped at round_up(HW, 128).
    if hw_tile is None:
        hw_tile = _default_hw_tile()
    hw_tile = max(128, min(_round_up(hw_tile, 128), _round_up(HW, 128)))

    # v7x: both grid axes are "parallel" and shard across its two TensorCores;
    # with N == 1 make the HW-tile count even so neither core idles.
    if N == 1 and HW > 128:
        n_tiles = pl.cdiv(HW, hw_tile)
        if n_tiles % 2 == 1:
            hw_tile = max(128, _round_up(pl.cdiv(HW, n_tiles + 1), 128))

    grid = (N, pl.cdiv(HW, hw_tile))

    # Scoped-VMEM budget from the actual tile footprint (double-buffered X/out,
    # resident weight+bias), with headroom; stays under v7x's 64 MiB physical.
    x_bytes = jnp.dtype(x_nchw.dtype).itemsize
    o_bytes = jnp.dtype(out_dtype).itemsize
    w_bytes = jnp.dtype(w2d.dtype).itemsize
    vmem_need = (2 * C_in * hw_tile * x_bytes
                 + 2 * C_out * hw_tile * o_bytes
                 + 2 * C_out * C_in * w_bytes
                 + 2 * C_out * 4)
    vmem_limit = int(min(max(vmem_need + (8 << 20), 32 << 20), 56 << 20))

    out3d = pl.pallas_call(
        conv_bn_relu_kernel,
        out_shape=jax.ShapeDtypeStruct((N, C_out, HW), out_dtype),
        grid=grid,
        in_specs=[
            pl.BlockSpec((C_out, C_in), lambda n, j: (0, 0)),             # weight (resident)
            pl.BlockSpec((C_out, 1), lambda n, j: (0, 0)),                # BN bias (resident)
            pl.BlockSpec((None, C_in, hw_tile), lambda n, j: (n, 0, j)),  # X tile (f32)
        ],
        out_specs=pl.BlockSpec((None, C_out, hw_tile), lambda n, j: (n, 0, j)),
        compiler_params=pltpu.CompilerParams(
            dimension_semantics=("parallel", "parallel"),
            vmem_limit_bytes=vmem_limit),
    )(w2d, bias, x3d)

    return out3d.reshape(N, C_out, H, W)


if __name__ == "__main__":
    key = jax.random.PRNGKey(0)
    k_x, k_w, k_g, k_b, k_m, k_v, k_x2, k_x3 = jax.random.split(key, 8)

    C_in, C_out = 2048, 256
    eps = 1e-5

    w = jax.random.normal(k_w, (C_out, C_in, 1, 1), dtype=jnp.float32) * 0.02
    gamma = jax.random.uniform(k_g, (C_out,), minval=0.5, maxval=1.5,
                               dtype=jnp.float32)
    beta = jax.random.normal(k_b, (C_out,), dtype=jnp.float32) * 0.1
    running_mean = jax.random.normal(k_m, (C_out,), dtype=jnp.float32) * 0.1
    running_var = jax.random.uniform(k_v, (C_out,), minval=0.5, maxval=1.5,
                                     dtype=jnp.float32)

    w2d, bias = prepare_conv_bn_params(w, gamma, beta, running_mean,
                                       running_var, eps)

    def reference(x_nchw):
        n, _, h, w_ = x_nchw.shape
        x2d = jnp.transpose(x_nchw, (0, 2, 3, 1)).reshape(n * h * w_, C_in)
        y = x2d @ w.reshape(C_out, C_in).T
        y = (y - running_mean) / jnp.sqrt(running_var + eps) * gamma + beta
        y = jnp.maximum(y, 0.0)
        return jnp.transpose(y.reshape(n, h, w_, C_out), (0, 3, 1, 2))

    # 1) Exact module shape [1, 2048, 1, 1]  (single padded 128-wide tile).
    x1 = jax.random.normal(k_x, (1, C_in, 1, 1), dtype=jnp.float32)
    out1 = jax.block_until_ready(conv2d_bn_relu(x1, w2d, bias))
    assert out1.shape == (1, C_out, 1, 1)
    assert jnp.allclose(out1.astype(jnp.float32), reference(x1),
                        atol=5e-2, rtol=5e-2)

    # 2) Batched spatial case exercising the (N, HW-tile) grid, f32 output.
    x2 = jax.random.normal(k_x2, (2, C_in, 16, 16), dtype=jnp.float32)
    out2 = jax.block_until_ready(
        conv2d_bn_relu(x2, w2d, bias, hw_tile=128, out_dtype=jnp.float32))
    assert out2.shape == (2, C_out, 16, 16)
    assert jnp.allclose(out2, reference(x2), atol=5e-2, rtol=5e-2)

    # 3) N=1 with HW not a multiple of 128 (33x33): exercises the even-tile
    #    split for v7x core balance and the masked tail tile.
    x3 = jax.random.normal(k_x3, (1, C_in, 33, 33), dtype=jnp.float32)
    out3 = jax.block_until_ready(conv2d_bn_relu(x3, w2d, bias))
    assert out3.shape == (1, C_out, 33, 33)
    assert jnp.allclose(out3.astype(jnp.float32), reference(x3),
                        atol=5e-2, rtol=5e-2)

    print("KERNEL_OK")
</pallas_src>

<mosaic_0001>
module attributes {stable_mosaic.version = 11 : i64} {
  func.func @conv_bn_relu_kernel(%arg0: i32, %arg1: i32, %arg2: memref<256x2048xbf16, #tpu.memory_space<vmem>>, %arg3: memref<256x1xf32, #tpu.memory_space<vmem>>, %arg4: memref<1x2048x128xf32, #tpu.memory_space<vmem>>, %arg5: memref<1x256x128xbf16, #tpu.memory_space<vmem>>) attributes {dimension_semantics = [#tpu.dimension_semantics<parallel>, #tpu.dimension_semantics<parallel>], iteration_bounds = array<i64: 1, 1>, scalar_prefetch = 0 : i64, scratch_operands = 0 : i64, tpu.core_type = #tpu.core_type<tc>, window_params = [{pipeline_mode = #tpu.pipeline_mode<synchronous>, transform_indices = @transform_0, window_bounds = array<i64: 256, 2048>}, {pipeline_mode = #tpu.pipeline_mode<synchronous>, transform_indices = @transform_1, window_bounds = array<i64: 256, 1>}, {transform_indices = @transform_2, window_bounds = array<i64: 1, 2048, 128>}, {transform_indices = @transform_3, window_bounds = array<i64: 1, 256, 128>}]} {
    %c0 = arith.constant 0 : index
    %c0_0 = arith.constant 0 : index
    %c0_1 = arith.constant 0 : index
    %0 = vector.load %arg4[%c0, %c0_0, %c0_1] : memref<1x2048x128xf32, #tpu.memory_space<vmem>>, vector<1x2048x128xf32>
    %1 = vector.shape_cast %0 : vector<1x2048x128xf32> to vector<2048x128xf32>
    %2 = arith.truncf %1 : vector<2048x128xf32> to vector<2048x128xbf16>
    %c0_2 = arith.constant 0 : index
    %c0_3 = arith.constant 0 : index
    %3 = vector.load %arg2[%c0_2, %c0_3] : memref<256x2048xbf16, #tpu.memory_space<vmem>>, vector<256x2048xbf16>
    %cst = arith.constant dense<0.000000e+00> : vector<256x128xf32>
    %4 = tpu.matmul %3, %2, %cst {dimension_numbers = #tpu.dot_dimension_numbers<[1], [0], [0], [1], [0, 0, 1, 1], [], []>} : vector<256x2048xbf16>, vector<2048x128xbf16>, vector<256x128xf32> -> vector<256x128xf32>
    %c0_4 = arith.constant 0 : index
    %c0_5 = arith.constant 0 : index
    %5 = vector.load %arg3[%c0_4, %c0_5] : memref<256x1xf32, #tpu.memory_space<vmem>>, vector<256x1xf32>
    %6 = vector.broadcast %5 : vector<256x1xf32> to vector<256x128xf32>
    %7 = arith.addf %4, %6 : vector<256x128xf32>
    %cst_6 = arith.constant 0.000000e+00 : f32
    %8 = vector.broadcast %cst_6 : f32 to vector<256x128xf32>
    %9 = arith.maximumf %7, %8 : vector<256x128xf32>
    %10 = arith.truncf %9 : vector<256x128xf32> to vector<256x128xbf16>
    %c0_7 = arith.constant 0 : index
    %c0_8 = arith.constant 0 : index
    %c0_9 = arith.constant 0 : index
    %11 = vector.load %arg5[%c0_7, %c0_8, %c0_9] : memref<1x256x128xbf16, #tpu.memory_space<vmem>>, vector<1x256x128xbf16>
    %12 = vector.shape_cast %11 : vector<1x256x128xbf16> to vector<256x128xbf16>
    %13 = vector.shape_cast %10 : vector<256x128xbf16> to vector<1x256x128xbf16>
    tpu.vector_store %arg5[%c0_7, %c0_8, %c0_9], %13 {strides = array<i32>} : memref<1x256x128xbf16, #tpu.memory_space<vmem>>, vector<1x256x128xbf16>,
    return
  }
  func.func @transform_0(%arg0: i32, %arg1: i32) -> (i32, i32) {
    %c0_i32 = arith.constant 0 : i32
    %c0_i32_0 = arith.constant 0 : i32
    %c0_i32_1 = arith.constant 0 : i32
    return %c0_i32, %c0_i32_0 : i32, i32
  }
  func.func @transform_1(%arg0: i32, %arg1: i32) -> (i32, i32) {
    %c0_i32 = arith.constant 0 : i32
    %c0_i32_0 = arith.constant 0 : i32
    %c0_i32_1 = arith.constant 0 : i32
    return %c0_i32, %c0_i32_0 : i32, i32
  }
  func.func @transform_2(%arg0: i32, %arg1: i32) -> (i32, i32, i32) {
    %c0_i32 = arith.constant 0 : i32
    %c0_i32_0 = arith.constant 0 : i32
    return %arg0, %c0_i32, %arg1 : i32, i32, i32
  }
  func.func @transform_3(%arg0: i32, %arg1: i32) -> (i32, i32, i32) {
    %c0_i32 = arith.constant 0 : i32
    %c0_i32_0 = arith.constant 0 : i32
    return %arg0, %c0_i32, %arg1 : i32, i32, i32
  }
}

</mosaic_0001>

<llo_original>
// kernel: tpu_custom_call.1
$region0: #{tpu_custom_call.1}
  #allocation0 [shape = 'u32[]', space=smem, size = 0x4, offset = 0x4, fixed_abs, tag = 'smem constant byte address 0x4 - core index']
  #allocation1 [shape = 'u32[72,128]{1,0:T(1,128)}', space=vmem, size = 0x9000, scoped, tag = 'internal scratch']
  %s0 = inlined_call_operand.vmem [shape: bf16[256,2048], index: 0, kind: input, shape index: {}]
  %s1 = inlined_call_operand.vmem [shape: f32[256,1], index: 1, kind: input, shape index: {}]
  %s2 = inlined_call_operand.vmem [shape: f32[1,2048,1], index: 2, kind: input, shape index: {}]
  %s3 = inlined_call_operand.vmem [shape: bf16[1,256,1], index: 3, kind: output, shape index: {}]
  %s4 = sld [smem:[#allocation0]]
  $region22: #{tpu_custom_call.1} parent=0
    _
  %s6 = ssub.s32 1, %s4
  %s7 = scalar_select 0, %s6, %s4
  // Predicated region
  $region2: #{tpu_custom_call.1} parent=0 // pred_check
    _
  $region3: #{tpu_custom_call.1} parent=0 // pred_check_branch
    %9 = sbr.rel (0) target = $region5
  $region4: #{tpu_custom_call.1} parent=0 // pred_region
    _
  $region5: #{tpu_custom_call.1} parent=0 // pred_fallthru
    _
  // Predicated region
  $region6: #{tpu_custom_call.1} parent=0 // pred_check
    _
  $region7: #{tpu_custom_call.1} parent=0 // pred_check_branch
    %11 = sbr.rel (0) target = $region9
  $region8: #{tpu_custom_call.1} parent=0 // pred_region
    _
  $region9: #{tpu_custom_call.1} parent=0 // pred_fallthru
    _
  // Predicated region
  $region10: #{tpu_custom_call.1} parent=0 // pred_check
    _
  $region11: #{tpu_custom_call.1} parent=0 // pred_check_branch
    %13 = sbr.rel (0) target = $region13
  $region12: #{tpu_custom_call.1} parent=0 // pred_region
    _
  $region13: #{tpu_custom_call.1} parent=0 // pred_fallthru
    _
  %v14 = vld [vmem:[%s2] sm:$0xff]
  %v15 = vld [vmem:[%s2 + $0x8] sm:$0xff]
  %v16 = vld [vmem:[%s2 + $0x10] sm:$0xff]
  %v17 = vld [vmem:[%s2 + $0x18] sm:$0xff]
  %v18 = vld [vmem:[%s2 + $0x20] sm:$0xff]
  %v19 = vld [vmem:[%s2 + $0x28] sm:$0xff]
  %v20 = vld [vmem:[%s2 + $0x30] sm:$0xff]
  %v21 = vld [vmem:[%s2 + $0x38] sm:$0xff]
  %v22 = vld [vmem:[%s2 + $0x40] sm:$0xff]
  %v23 = vld [vmem:[%s2 + $0x48] sm:$0xff]
  %v24 = vld [vmem:[%s2 + $0x50] sm:$0xff]
  %v25 = vld [vmem:[%s2 + $0x58] sm:$0xff]
  %v26 = vld [vmem:[%s2 + $0x60] sm:$0xff]
  %v27 = vld [vmem:[%s2 + $0x68] sm:$0xff]
  %v28 = vld [vmem:[%s2 + $0x70] sm:$0xff]
  %v29 = vld [vmem:[%s2 + $0x78] sm:$0xff]
  %v30 = vld [vmem:[%s2 + $0x80] sm:$0xff]
  %v31 = vld [vmem:[%s2 + $0x88] sm:$0xff]
  %v32 = vld [vmem:[%s2 + $0x90] sm:$0xff]
  %v33 = vld [vmem:[%s2 + $0x98] sm:$0xff]
  %v34 = vld [vmem:[%s2 + $0xa0] sm:$0xff]
  %v35 = vld [vmem:[%s2 + $0xa8] sm:$0xff]
  %v36 = vld [vmem:[%s2 + $0xb0] sm:$0xff]
  %v37 = vld [vmem:[%s2 + $0xb8] sm:$0xff]
  %v38 = vld [vmem:[%s2 + $0xc0] sm:$0xff]
  %v39 = vld [vmem:[%s2 + $0xc8] sm:$0xff]
  %v40 = vld [vmem:[%s2 + $0xd0] sm:$0xff]
  %v41 = vld [vmem:[%s2 + $0xd8] sm:$0xff]
  %v42 = vld [vmem:[%s2 + $0xe0] sm:$0xff]
  %v43 = vld [vmem:[%s2 + $0xe8] sm:$0xff]
  %v44 = vld [vmem:[%s2 + $0xf0] sm:$0xff]
  %v45 = vld [vmem:[%s2 + $0xf8] sm:$0xff]
  %v46 = vld [vmem:[%s2 + $0x100] sm:$0xff]
  %v47 = vld [vmem:[%s2 + $0x108] sm:$0xff]
  %v48 = vld [vmem:[%s2 + $0x110] sm:$0xff]
  %v49 = vld [vmem:[%s2 + $0x118] sm:$0xff]
  %v50 = vld [vmem:[%s2 + $0x120] sm:$0xff]
  %v51 = vld [vmem:[%s2 + $0x128] sm:$0xff]
  %v52 = vld [vmem:[%s2 + $0x130] sm:$0xff]
  %v53 = vld [vmem:[%s2 + $0x138] sm:$0xff]
  %v54 = vld [vmem:[%s2 + $0x140] sm:$0xff]
  %v55 = vld [vmem:[%s2 + $0x148] sm:$0xff]
  %v56 = vld [vmem:[%s2 + $0x150] sm:$0xff]
  %v57 = vld [vmem:[%s2 + $0x158] sm:$0xff]
  %v58 = vld [vmem:[%s2 + $0x160] sm:$0xff]
  %v59 = vld [vmem:[%s2 + $0x168] sm:$0xff]
  %v60 = vld [vmem:[%s2 + $0x170] sm:$0xff]
  %v61 = vld [vmem:[%s2 + $0x178] sm:$0xff]
  %v62 = vld [vmem:[%s2 + $0x180] sm:$0xff]
  %v63 = vld [vmem:[%s2 + $0x188] sm:$0xff]
  %v64 = vld [vmem:[%s2 + $0x190] sm:$0xff]
  %v65 = vld [vmem:[%s2 + $0x198] sm:$0xff]
  %v66 = vld [vmem:[%s2 + $0x1a0] sm:$0xff]
  %v67 = vld [vmem:[%s2 + $0x1a8] sm:$0xff]
  %v68 = vld [vmem:[%s2 + $0x1b0] sm:$0xff]
  %v69 = vld [vmem:[%s2 + $0x1b8] sm:$0xff]
  %v70 = vld [vmem:[%s2 + $0x1c0] sm:$0xff]
  %v71 = vld [vmem:[%s2 + $0x1c8] sm:$0xff]
  %v72 = vld [vmem:[%s2 + $0x1d0] sm:$0xff]
  %v73 = vld [vmem:[%s2 + $0x1d8] sm:$0xff]
  %v74 = vld [vmem:[%s2 + $0x1e0] sm:$0xff]
  %v75 = vld [vmem:[%s2 + $0x1e8] sm:$0xff]
  %v76 = vld [vmem:[%s2 + $0x1f0] sm:$0xff]
  %v77 = vld [vmem:[%s2 + $0x1f8] sm:$0xff]
  %v78 = vld [vmem:[%s2 + $0x200] sm:$0xff]
  %v79 = vld [vmem:[%s2 + $0x208] sm:$0xff]
  %v80 = vld [vmem:[%s2 + $0x210] sm:$0xff]
  %v81 = vld [vmem:[%s2 + $0x218] sm:$0xff]
  %v82 = vld [vmem:[%s2 + $0x220] sm:$0xff]
  %v83 = vld [vmem:[%s2 + $0x228] sm:$0xff]
  %v84 = vld [vmem:[%s2 + $0x230] sm:$0xff]
  %v85 = vld [vmem:[%s2 + $0x238] sm:$0xff]
  %v86 = vld [vmem:[%s2 + $0x240] sm:$0xff]
  %v87 = vld [vmem:[%s2 + $0x248] sm:$0xff]
  %v88 = vld [vmem:[%s2 + $0x250] sm:$0xff]
  %v89 = vld [vmem:[%s2 + $0x258] sm:$0xff]
  %v90 = vld [vmem:[%s2 + $0x260] sm:$0xff]
  %v91 = vld [vmem:[%s2 + $0x268] sm:$0xff]
  %v92 = vld [vmem:[%s2 + $0x270] sm:$0xff]
  %v93 = vld [vmem:[%s2 + $0x278] sm:$0xff]
  %v94 = vld [vmem:[%s2 + $0x280] sm:$0xff]
  %v95 = vld [vmem:[%s2 + $0x288] sm:$0xff]
  %v96 = vld [vmem:[%s2 + $0x290] sm:$0xff]
  %v97 = vld [vmem:[%s2 + $0x298] sm:$0xff]
  %v98 = vld [vmem:[%s2 + $0x2a0] sm:$0xff]
  %v99 = vld [vmem:[%s2 + $0x2a8] sm:$0xff]
  %v100 = vld [vmem:[%s2 + $0x2b0] sm:$0xff]
  %v101 = vld [vmem:[%s2 + $0x2b8] sm:$0xff]
  %v102 = vld [vmem:[%s2 + $0x2c0] sm:$0xff]
  %v103 = vld [vmem:[%s2 + $0x2c8] sm:$0xff]
  %v104 = vld [vmem:[%s2 + $0x2d0] sm:$0xff]
  %v105 = vld [vmem:[%s2 + $0x2d8] sm:$0xff]
  %v106 = vld [vmem:[%s2 + $0x2e0] sm:$0xff]
  %v107 = vld [vmem:[%s2 + $0x2e8] sm:$0xff]
  %v108 = vld [vmem:[%s2 + $0x2f0] sm:$0xff]
  %v109 = vld [vmem:[%s2 + $0x2f8] sm:$0xff]
  %v110 = vld [vmem:[%s2 + $0x300] sm:$0xff]
  %v111 = vld [vmem:[%s2 + $0x308] sm:$0xff]
  %v112 = vld [vmem:[%s2 + $0x310] sm:$0xff]
  %v113 = vld [vmem:[%s2 + $0x318] sm:$0xff]
  %v114 = vld [vmem:[%s2 + $0x320] sm:$0xff]
  %v115 = vld [vmem:[%s2 + $0x328] sm:$0xff]
  %v116 = vld [vmem:[%s2 + $0x330] sm:$0xff]
  %v117 = vld [vmem:[%s2 + $0x338] sm:$0xff]
  %v118 = vld [vmem:[%s2 + $0x340] sm:$0xff]
  %v119 = vld [vmem:[%s2 + $0x348] sm:$0xff]
  %v120 = vld [vmem:[%s2 + $0x350] sm:$0xff]
  %v121 = vld [vmem:[%s2 + $0x358] sm:$0xff]
  %v122 = vld [vmem:[%s2 + $0x360] sm:$0xff]
  %v123 = vld [vmem:[%s2 + $0x368] sm:$0xff]
  %v124 = vld [vmem:[%s2 + $0x370] sm:$0xff]
  %v125 = vld [vmem:[%s2 + $0x378] sm:$0xff]
  %v126 = vld [vmem:[%s2 + $0x380] sm:$0xff]
  %v127 = vld [vmem:[%s2 + $0x388] sm:$0xff]
  %v128 = vld [vmem:[%s2 + $0x390] sm:$0xff]
  %v129 = vld [vmem:[%s2 + $0x398] sm:$0xff]
  %v130 = vld [vmem:[%s2 + $0x3a0] sm:$0xff]
  %v131 = vld [vmem:[%s2 + $0x3a8] sm:$0xff]
  %v132 = vld [vmem:[%s2 + $0x3b0] sm:$0xff]
  %v133 = vld [vmem:[%s2 + $0x3b8] sm:$0xff]
  %v134 = vld [vmem:[%s2 + $0x3c0] sm:$0xff]
  %v135 = vld [vmem:[%s2 + $0x3c8] sm:$0xff]
  %v136 = vld [vmem:[%s2 + $0x3d0] sm:$0xff]
  %v137 = vld [vmem:[%s2 + $0x3d8] sm:$0xff]
  %v138 = vld [vmem:[%s2 + $0x3e0] sm:$0xff]
  %v139 = vld [vmem:[%s2 + $0x3e8] sm:$0xff]
  %v140 = vld [vmem:[%s2 + $0x3f0] sm:$0xff]
  %v141 = vld [vmem:[%s2 + $0x3f8] sm:$0xff]
  %v142 = vld [vmem:[%s2 + $0x400] sm:$0xff]
  %v143 = vld [vmem:[%s2 + $0x408] sm:$0xff]
  %v144 = vld [vmem:[%s2 + $0x410] sm:$0xff]
  %v145 = vld [vmem:[%s2 + $0x418] sm:$0xff]
  %v146 = vld [vmem:[%s2 + $0x420] sm:$0xff]
  %v147 = vld [vmem:[%s2 + $0x428] sm:$0xff]
  %v148 = vld [vmem:[%s2 + $0x430] sm:$0xff]
  %v149 = vld [vmem:[%s2 + $0x438] sm:$0xff]
  %v150 = vld [vmem:[%s2 + $0x440] sm:$0xff]
  %v151 = vld [vmem:[%s2 + $0x448] sm:$0xff]
  %v152 = vld [vmem:[%s2 + $0x450] sm:$0xff]
  %v153 = vld [vmem:[%s2 + $0x458] sm:$0xff]
  %v154 = vld [vmem:[%s2 + $0x460] sm:$0xff]
  %v155 = vld [vmem:[%s2 + $0x468] sm:$0xff]
  %v156 = vld [vmem:[%s2 + $0x470] sm:$0xff]
  %v157 = vld [vmem:[%s2 + $0x478] sm:$0xff]
  %v158 = vld [vmem:[%s2 + $0x480] sm:$0xff]
  %v159 = vld [vmem:[%s2 + $0x488] sm:$0xff]
  %v160 = vld [vmem:[%s2 + $0x490] sm:$0xff]
  %v161 = vld [vmem:[%s2 + $0x498] sm:$0xff]
  %v162 = vld [vmem:[%s2 + $0x4a0] sm:$0xff]
  %v163 = vld [vmem:[%s2 + $0x4a8] sm:$0xff]
  %v164 = vld [vmem:[%s2 + $0x4b0] sm:$0xff]
  %v165 = vld [vmem:[%s2 + $0x4b8] sm:$0xff]
  %v166 = vld [vmem:[%s2 + $0x4c0] sm:$0xff]
  %v167 = vld [vmem:[%s2 + $0x4c8] sm:$0xff]
  %v168 = vld [vmem:[%s2 + $0x4d0] sm:$0xff]
  %v169 = vld [vmem:[%s2 + $0x4d8] sm:$0xff]
  %v170 = vld [vmem:[%s2 + $0x4e0] sm:$0xff]
  %v171 = vld [vmem:[%s2 + $0x4e8] sm:$0xff]
  %v172 = vld [vmem:[%s2 + $0x4f0] sm:$0xff]
  %v173 = vld [vmem:[%s2 + $0x4f8] sm:$0xff]
  %v174 = vld [vmem:[%s2 + $0x500] sm:$0xff]
  %v175 = vld [vmem:[%s2 + $0x508] sm:$0xff]
  %v176 = vld [vmem:[%s2 + $0x510] sm:$0xff]
  %v177 = vld [vmem:[%s2 + $0x518] sm:$0xff]
  %v178 = vld [vmem:[%s2 + $0x520] sm:$0xff]
  %v179 = vld [vmem:[%s2 + $0x528] sm:$0xff]
  %v180 = vld [vmem:[%s2 + $0x530] sm:$0xff]
  %v181 = vld [vmem:[%s2 + $0x538] sm:$0xff]
  %v182 = vld [vmem:[%s2 + $0x540] sm:$0xff]
  %v183 = vld [vmem:[%s2 + $0x548] sm:$0xff]
  %v184 = vld [vmem:[%s2 + $0x550] sm:$0xff]
  %v185 = vld [vmem:[%s2 + $0x558] sm:$0xff]
  %v186 = vld [vmem:[%s2 + $0x560] sm:$0xff]
  %v187 = vld [vmem:[%s2 + $0x568] sm:$0xff]
  %v188 = vld [vmem:[%s2 + $0x570] sm:$0xff]
  %v189 = vld [vmem:[%s2 + $0x578] sm:$0xff]
  %v190 = vld [vmem:[%s2 + $0x580] sm:$0xff]
  %v191 = vld [vmem:[%s2 + $0x588] sm:$0xff]
  %v192 = vld [vmem:[%s2 + $0x590] sm:$0xff]
  %v193 = vld [vmem:[%s2 + $0x598] sm:$0xff]
  %v194 = vld [vmem:[%s2 + $0x5a0] sm:$0xff]
  %v195 = vld [vmem:[%s2 + $0x5a8] sm:$0xff]
  %v196 = vld [vmem:[%s2 + $0x5b0] sm:$0xff]
  %v197 = vld [vmem:[%s2 + $0x5b8] sm:$0xff]
  %v198 = vld [vmem:[%s2 + $0x5c0] sm:$0xff]
  %v199 = vld [vmem:[%s2 + $0x5c8] sm:$0xff]
  %v200 = vld [vmem:[%s2 + $0x5d0] sm:$0xff]
  %v201 = vld [vmem:[%s2 + $0x5d8] sm:$0xff]
  %v202 = vld [vmem:[%s2 + $0x5e0] sm:$0xff]
  %v203 = vld [vmem:[%s2 + $0x5e8] sm:$0xff]
  %v204 = vld [vmem:[%s2 + $0x5f0] sm:$0xff]
  %v205 = vld [vmem:[%s2 + $0x5f8] sm:$0xff]
  %v206 = vld [vmem:[%s2 + $0x600] sm:$0xff]
  %v207 = vld [vmem:[%s2 + $0x608] sm:$0xff]
  %v208 = vld [vmem:[%s2 + $0x610] sm:$0xff]
  %v209 = vld [vmem:[%s2 + $0x618] sm:$0xff]
  %v210 = vld [vmem:[%s2 + $0x620] sm:$0xff]
  %v211 = vld [vmem:[%s2 + $0x628] sm:$0xff]
  %v212 = vld [vmem:[%s2 + $0x630] sm:$0xff]
  %v213 = vld [vmem:[%s2 + $0x638] sm:$0xff]
  %v214 = vld [vmem:[%s2 + $0x640] sm:$0xff]
  %v215 = vld [vmem:[%s2 + $0x648] sm:$0xff]
  %v216 = vld [vmem:[%s2 + $0x650] sm:$0xff]
  %v217 = vld [vmem:[%s2 + $0x658] sm:$0xff]
  %v218 = vld [vmem:[%s2 + $0x660] sm:$0xff]
  %v219 = vld [vmem:[%s2 + $0x668] sm:$0xff]
  %v220 = vld [vmem:[%s2 + $0x670] sm:$0xff]
  %v221 = vld [vmem:[%s2 + $0x678] sm:$0xff]
  %v222 = vld [vmem:[%s2 + $0x680] sm:$0xff]
  %v223 = vld [vmem:[%s2 + $0x688] sm:$0xff]
  %v224 = vld [vmem:[%s2 + $0x690] sm:$0xff]
  %v225 = vld [vmem:[%s2 + $0x698] sm:$0xff]
  %v226 = vld [vmem:[%s2 + $0x6a0] sm:$0xff]
  %v227 = vld [vmem:[%s2 + $0x6a8] sm:$0xff]
  %v228 = vld [vmem:[%s2 + $0x6b0] sm:$0xff]
  %v229 = vld [vmem:[%s2 + $0x6b8] sm:$0xff]
  %v230 = vld [vmem:[%s2 + $0x6c0] sm:$0xff]
  %v231 = vld [vmem:[%s2 + $0x6c8] sm:$0xff]
  %v232 = vld [vmem:[%s2 + $0x6d0] sm:$0xff]
  %v233 = vld [vmem:[%s2 + $0x6d8] sm:$0xff]
  %v234 = vld [vmem:[%s2 + $0x6e0] sm:$0xff]
  %v235 = vld [vmem:[%s2 + $0x6e8] sm:$0xff]
  %v236 = vld [vmem:[%s2 + $0x6f0] sm:$0xff]
  %v237 = vld [vmem:[%s2 + $0x6f8] sm:$0xff]
  %v238 = vld [vmem:[%s2 + $0x700] sm:$0xff]
  %v239 = vld [vmem:[%s2 + $0x708] sm:$0xff]
  %v240 = vld [vmem:[%s2 + $0x710] sm:$0xff]
  %v241 = vld [vmem:[%s2 + $0x718] sm:$0xff]
  %v242 = vld [vmem:[%s2 + $0x720] sm:$0xff]
  %v243 = vld [vmem:[%s2 + $0x728] sm:$0xff]
  %v244 = vld [vmem:[%s2 + $0x730] sm:$0xff]
  %v245 = vld [vmem:[%s2 + $0x738] sm:$0xff]
  %v246 = vld [vmem:[%s2 + $0x740] sm:$0xff]
  %v247 = vld [vmem:[%s2 + $0x748] sm:$0xff]
  %v248 = vld [vmem:[%s2 + $0x750] sm:$0xff]
  %v249 = vld [vmem:[%s2 + $0x758] sm:$0xff]
  %v250 = vld [vmem:[%s2 + $0x760] sm:$0xff]
  %v251 = vld [vmem:[%s2 + $0x768] sm:$0xff]
  %v252 = vld [vmem:[%s2 + $0x770] sm:$0xff]
  %v253 = vld [vmem:[%s2 + $0x778] sm:$0xff]
  %v254 = vld [vmem:[%s2 + $0x780] sm:$0xff]
  %v255 = vld [vmem:[%s2 + $0x788] sm:$0xff]
  %v256 = vld [vmem:[%s2 + $0x790] sm:$0xff]
  %v257 = vld [vmem:[%s2 + $0x798] sm:$0xff]
  %v258 = vld [vmem:[%s2 + $0x7a0] sm:$0xff]
  %v259 = vld [vmem:[%s2 + $0x7a8] sm:$0xff]
  %v260 = vld [vmem:[%s2 + $0x7b0] sm:$0xff]
  %v261 = vld [vmem:[%s2 + $0x7b8] sm:$0xff]
  %v262 = vld [vmem:[%s2 + $0x7c0] sm:$0xff]
  %v263 = vld [vmem:[%s2 + $0x7c8] sm:$0xff]
  %v264 = vld [vmem:[%s2 + $0x7d0] sm:$0xff]
  %v265 = vld [vmem:[%s2 + $0x7d8] sm:$0xff]
  %v266 = vld [vmem:[%s2 + $0x7e0] sm:$0xff]
  %v267 = vld [vmem:[%s2 + $0x7e8] sm:$0xff]
  %v268 = vld [vmem:[%s2 + $0x7f0] sm:$0xff]
  %v269 = vld [vmem:[%s2 + $0x7f8] sm:$0xff]
  %v270 = vpack.c.bf16 %v15, %v14
  %v271 = vpack.c.bf16 %v17, %v16
  %v272 = vpack.c.bf16 %v19, %v18
  %v273 = vpack.c.bf16 %v21, %v20
  %v274 = vpack.c.bf16 %v23, %v22
  %v275 = vpack.c.bf16 %v25, %v24
  %v276 = vpack.c.bf16 %v27, %v26
  %v277 = vpack.c.bf16 %v29, %v28
  %v278 = vpack.c.bf16 %v31, %v30
  %v279 = vpack.c.bf16 %v33, %v32
  %v280 = vpack.c.bf16 %v35, %v34
  %v281 = vpack.c.bf16 %v37, %v36
  %v282 = vpack.c.bf16 %v39, %v38
  %v283 = vpack.c.bf16 %v41, %v40
  %v284 = vpack.c.bf16 %v43, %v42
  %v285 = vpack.c.bf16 %v45, %v44
  %v286 = vpack.c.bf16 %v47, %v46
  %v287 = vpack.c.bf16 %v49, %v48
  %v288 = vpack.c.bf16 %v51, %v50
  %v289 = vpack.c.bf16 %v53, %v52
  %v290 = vpack.c.bf16 %v55, %v54
  %v291 = vpack.c.bf16 %v57, %v56
  %v292 = vpack.c.bf16 %v59, %v58
  %v293 = vpack.c.bf16 %v61, %v60
  %v294 = vpack.c.bf16 %v63, %v62
  %v295 = vpack.c.bf16 %v65, %v64
  %v296 = vpack.c.bf16 %v67, %v66
  %v297 = vpack.c.bf16 %v69, %v68
  %v298 = vpack.c.bf16 %v71, %v70
  %v299 = vpack.c.bf16 %v73, %v72
  %v300 = vpack.c.bf16 %v75, %v74
  %v301 = vpack.c.bf16 %v77, %v76
  %v302 = vpack.c.bf16 %v79, %v78
  %v303 = vpack.c.bf16 %v81, %v80
  %v304 = vpack.c.bf16 %v83, %v82
  %v305 = vpack.c.bf16 %v85, %v84
  %v306 = vpack.c.bf16 %v87, %v86
  %v307 = vpack.c.bf16 %v89, %v88
  %v308 = vpack.c.bf16 %v91, %v90
  %v309 = vpack.c.bf16 %v93, %v92
  %v310 = vpack.c.bf16 %v95, %v94
  %v311 = vpack.c.bf16 %v97, %v96
  %v312 = vpack.c.bf16 %v99, %v98
  %v313 = vpack.c.bf16 %v101, %v100
  %v314 = vpack.c.bf16 %v103, %v102
  %v315 = vpack.c.bf16 %v105, %v104
  %v316 = vpack.c.bf16 %v107, %v106
  %v317 = vpack.c.bf16 %v109, %v108
  %v318 = vpack.c.bf16 %v111, %v110
  %v319 = vpack.c.bf16 %v113, %v112
  %v320 = vpack.c.bf16 %v115, %v114
  %v321 = vpack.c.bf16 %v117, %v116
  %v322 = vpack.c.bf16 %v119, %v118
  %v323 = vpack.c.bf16 %v121, %v120
  %v324 = vpack.c.bf16 %v123, %v122
  %v325 = vpack.c.bf16 %v125, %v124
  %v326 = vpack.c.bf16 %v127, %v126
  %v327 = vpack.c.bf16 %v129, %v128
  %v328 = vpack.c.bf16 %v131, %v130
  %v329 = vpack.c.bf16 %v133, %v132
  %v330 = vpack.c.bf16 %v135, %v134
  %v331 = vpack.c.bf16 %v137, %v136
  %v332 = vpack.c.bf16 %v139, %v138
  %v333 = vpack.c.bf16 %v141, %v140
  %v334 = vpack.c.bf16 %v143, %v142
  %v335 = vpack.c.bf16 %v145, %v144
  %v336 = vpack.c.bf16 %v147, %v146
  %v337 = vpack.c.bf16 %v149, %v148
  %v338 = vpack.c.bf16 %v151, %v150
  %v339 = vpack.c.bf16 %v153, %v152
  %v340 = vpack.c.bf16 %v155, %v154
  %v341 = vpack.c.bf16 %v157, %v156
  %v342 = vpack.c.bf16 %v159, %v158
  %v343 = vpack.c.bf16 %v161, %v160
  %v344 = vpack.c.bf16 %v163, %v162
  %v345 = vpack.c.bf16 %v165, %v164
  %v346 = vpack.c.bf16 %v167, %v166
  %v347 = vpack.c.bf16 %v169, %v168
  %v348 = vpack.c.bf16 %v171, %v170
  %v349 = vpack.c.bf16 %v173, %v172
  %v350 = vpack.c.bf16 %v175, %v174
  %v351 = vpack.c.bf16 %v177, %v176
  %v352 = vpack.c.bf16 %v179, %v178
  %v353 = vpack.c.bf16 %v181, %v180
  %v354 = vpack.c.bf16 %v183, %v182
  %v355 = vpack.c.bf16 %v185, %v184
  %v356 = vpack.c.bf16 %v187, %v186
  %v357 = vpack.c.bf16 %v189, %v188
  %v358 = vpack.c.bf16 %v191, %v190
  %v359 = vpack.c.bf16 %v193, %v192
  %v360 = vpack.c.bf16 %v195, %v194
  %v361 = vpack.c.bf16 %v197, %v196
  %v362 = vpack.c.bf16 %v199, %v198
  %v363 = vpack.c.bf16 %v201, %v200
  %v364 = vpack.c.bf16 %v203, %v202
  %v365 = vpack.c.bf16 %v205, %v204
  %v366 = vpack.c.bf16 %v207, %v206
  %v367 = vpack.c.bf16 %v209, %v208
  %v368 = vpack.c.bf16 %v211, %v210
  %v369 = vpack.c.bf16 %v213, %v212
  %v370 = vpack.c.bf16 %v215, %v214
  %v371 = vpack.c.bf16 %v217, %v216
  %v372 = vpack.c.bf16 %v219, %v218
  %v373 = vpack.c.bf16 %v221, %v220
  %v374 = vpack.c.bf16 %v223, %v222
  %v375 = vpack.c.bf16 %v225, %v224
  %v376 = vpack.c.bf16 %v227, %v226
  %v377 = vpack.c.bf16 %v229, %v228
  %v378 = vpack.c.bf16 %v231, %v230
  %v379 = vpack.c.bf16 %v233, %v232
  %v380 = vpack.c.bf16 %v235, %v234
  %v381 = vpack.c.bf16 %v237, %v236
  %v382 = vpack.c.bf16 %v239, %v238
  %v383 = vpack.c.bf16 %v241, %v240
  %v384 = vpack.c.bf16 %v243, %v242
  %v385 = vpack.c.bf16 %v245, %v244
  %v386 = vpack.c.bf16 %v247, %v246
  %v387 = vpack.c.bf16 %v249, %v248
  %v388 = vpack.c.bf16 %v251, %v250
  %v389 = vpack.c.bf16 %v253, %v252
  %v390 = vpack.c.bf16 %v255, %v254
  %v391 = vpack.c.bf16 %v257, %v256
  %v392 = vpack.c.bf16 %v259, %v258
  %v393 = vpack.c.bf16 %v261, %v260
  %v394 = vpack.c.bf16 %v263, %v262
  %v395 = vpack.c.bf16 %v265, %v264
  %v396 = vpack.c.bf16 %v267, %v266
  %v397 = vpack.c.bf16 %v269, %v268
  %v398 = vld [vmem:[%s0] sm:$0xff]
  %v399 = vld [vmem:[%s0 + $0x8] sm:$0xff]
  %v400 = vld [vmem:[%s0 + $0x10] sm:$0xff]
  %v401 = vld [vmem:[%s0 + $0x18] sm:$0xff]
  %v402 = vld [vmem:[%s0 + $0x20] sm:$0xff]
  %v403 = vld [vmem:[%s0 + $0x28] sm:$0xff]
  %v404 = vld [vmem:[%s0 + $0x30] sm:$0xff]
  %v405 = vld [vmem:[%s0 + $0x38] sm:$0xff]
  %v406 = vld [vmem:[%s0 + $0x40] sm:$0xff]
  %v407 = vld [vmem:[%s0 + $0x48] sm:$0xff]
  %v408 = vld [vmem:[%s0 + $0x50] sm:$0xff]
  %v409 = vld [vmem:[%s0 + $0x58] sm:$0xff]
  %v410 = vld [vmem:[%s0 + $0x60] sm:$0xff]
  %v411 = vld [vmem:[%s0 + $0x68] sm:$0xff]
  %v412 = vld [vmem:[%s0 + $0x70] sm:$0xff]
  %v413 = vld [vmem:[%s0 + $0x78] sm:$0xff]
  %v414 = vld [vmem:[%s0 + $0x80] sm:$0xff]
  %v415 = vld [vmem:[%s0 + $0x88] sm:$0xff]
  %v416 = vld [vmem:[%s0 + $0x90] sm:$0xff]
  %v417 = vld [vmem:[%s0 + $0x98] sm:$0xff]
  %v418 = vld [vmem:[%s0 + $0xa0] sm:$0xff]
  %v419 = vld [vmem:[%s0 + $0xa8] sm:$0xff]
  %v420 = vld [vmem:[%s0 + $0xb0] sm:$0xff]
  %v421 = vld [vmem:[%s0 + $0xb8] sm:$0xff]
  %v422 = vld [vmem:[%s0 + $0xc0] sm:$0xff]
  %v423 = vld [vmem:[%s0 + $0xc8] sm:$0xff]
  %v424 = vld [vmem:[%s0 + $0xd0] sm:$0xff]
  %v425 = vld [vmem:[%s0 + $0xd8] sm:$0xff]
  %v426 = vld [vmem:[%s0 + $0xe0] sm:$0xff]
  %v427 = vld [vmem:[%s0 + $0xe8] sm:$0xff]
  %v428 = vld [vmem:[%s0 + $0xf0] sm:$0xff]
  %v429 = vld [vmem:[%s0 + $0xf8] sm:$0xff]
  %v430 = vld [vmem:[%s0 + $0x100] sm:$0xff]
  %v431 = vld [vmem:[%s0 + $0x108] sm:$0xff]
  %v432 = vld [vmem:[%s0 + $0x110] sm:$0xff]
  %v433 = vld [vmem:[%s0 + $0x118] sm:$0xff]
  %v434 = vld [vmem:[%s0 + $0x120] sm:$0xff]
  %v435 = vld [vmem:[%s0 + $0x128] sm:$0xff]
  %v436 = vld [vmem:[%s0 + $0x130] sm:$0xff]
  %v437 = vld [vmem:[%s0 + $0x138] sm:$0xff]
  %v438 = vld [vmem:[%s0 + $0x140] sm:$0xff]
  %v439 = vld [vmem:[%s0 + $0x148] sm:$0xff]
  %v440 = vld [vmem:[%s0 + $0x150] sm:$0xff]
  %v441 = vld [vmem:[%s0 + $0x158] sm:$0xff]
  %v442 = vld [vmem:[%s0 + $0x160] sm:$0xff]
  %v443 = vld [vmem:[%s0 + $0x168] sm:$0xff]
  %v444 = vld [vmem:[%s0 + $0x170] sm:$0xff]
  %v445 = vld [vmem:[%s0 + $0x178] sm:$0xff]
  %v446 = vld [vmem:[%s0 + $0x180] sm:$0xff]
  %v447 = vld [vmem:[%s0 + $0x188] sm:$0xff]
  %v448 = vld [vmem:[%s0 + $0x190] sm:$0xff]
  %v449 = vld [vmem:[%s0 + $0x198] sm:$0xff]
  %v450 = vld [vmem:[%s0 + $0x1a0] sm:$0xff]
  %v451 = vld [vmem:[%s0 + $0x1a8] sm:$0xff]
  %v452 = vld [vmem:[%s0 + $0x1b0] sm:$0xff]
  %v453 = vld [vmem:[%s0 + $0x1b8] sm:$0xff]
  %v454 = vld [vmem:[%s0 + $0x1c0] sm:$0xff]
  %v455 = vld [vmem:[%s0 + $0x1c8] sm:$0xff]
  %v456 = vld [vmem:[%s0 + $0x1d0] sm:$0xff]
  %v457 = vld [vmem:[%s0 + $0x1d8] sm:$0xff]
  %v458 = vld [vmem:[%s0 + $0x1e0] sm:$0xff]
  %v459 = vld [vmem:[%s0 + $0x1e8] sm:$0xff]
  %v460 = vld [vmem:[%s0 + $0x1f0] sm:$0xff]
  %v461 = vld [vmem:[%s0 + $0x1f8] sm:$0xff]
  %v462 = vld [vmem:[%s0 + $0x200] sm:$0xff]
  %v463 = vld [vmem:[%s0 + $0x208] sm:$0xff]
  %v464 = vld [vmem:[%s0 + $0x210] sm:$0xff]
  %v465 = vld [vmem:[%s0 + $0x218] sm:$0xff]
  %v466 = vld [vmem:[%s0 + $0x220] sm:$0xff]
  %v467 = vld [vmem:[%s0 + $0x228] sm:$0xff]
  %v468 = vld [vmem:[%s0 + $0x230] sm:$0xff]
  %v469 = vld [vmem:[%s0 + $0x238] sm:$0xff]
  %v470 = vld [vmem:[%s0 + $0x240] sm:$0xff]
  %v471 = vld [vmem:[%s0 + $0x248] sm:$0xff]
  %v472 = vld [vmem:[%s0 + $0x250] sm:$0xff]
  %v473 = vld [vmem:[%s0 + $0x258] sm:$0xff]
  %v474 = vld [vmem:[%s0 + $0x260] sm:$0xff]
  %v475 = vld [vmem:[%s0 + $0x268] sm:$0xff]
  %v476 = vld [vmem:[%s0 + $0x270] sm:$0xff]
  %v477 = vld [vmem:[%s0 + $0x278] sm:$0xff]
  %v478 = vld [vmem:[%s0 + $0x280] sm:$0xff]
  %v479 = vld [vmem:[%s0 + $0x288] sm:$0xff]
  %v480 = vld [vmem:[%s0 + $0x290] sm:$0xff]
  %v481 = vld [vmem:[%s0 + $0x298] sm:$0xff]
  %v482 = vld [vmem:[%s0 + $0x2a0] sm:$0xff]
  %v483 = vld [vmem:[%s0 + $0x2a8] sm:$0xff]
  %v484 = vld [vmem:[%s0 + $0x2b0] sm:$0xff]
  %v485 = vld [vmem:[%s0 + $0x2b8] sm:$0xff]
  %v486 = vld [vmem:[%s0 + $0x2c0] sm:$0xff]
  %v487 = vld [vmem:[%s0 + $0x2c8] sm:$0xff]
  %v488 = vld [vmem:[%s0 + $0x2d0] sm:$0xff]
  %v489 = vld [vmem:[%s0 + $0x2d8] sm:$0xff]
  %v490 = vld [vmem:[%s0 + $0x2e0] sm:$0xff]
  %v491 = vld [vmem:[%s0 + $0x2e8] sm:$0xff]
  %v492 = vld [vmem:[%s0 + $0x2f0] sm:$0xff]
  %v493 = vld [vmem:[%s0 + $0x2f8] sm:$0xff]
  %v494 = vld [vmem:[%s0 + $0x300] sm:$0xff]
  %v495 = vld [vmem:[%s0 + $0x308] sm:$0xff]
  %v496 = vld [vmem:[%s0 + $0x310] sm:$0xff]
  %v497 = vld [vmem:[%s0 + $0x318] sm:$0xff]
  %v498 = vld [vmem:[%s0 + $0x320] sm:$0xff]
  %v499 = vld [vmem:[%s0 + $0x328] sm:$0xff]
  %v500 = vld [vmem:[%s0 + $0x330] sm:$0xff]
  %v501 = vld [vmem:[%s0 + $0x338] sm:$0xff]
  %v502 = vld [vmem:[%s0 + $0x340] sm:$0xff]
  %v503 = vld [vmem:[%s0 + $0x348] sm:$0xff]
  %v504 = vld [vmem:[%s0 + $0x350] sm:$0xff]
  %v505 = vld [vmem:[%s0 + $0x358] sm:$0xff]
  %v506 = vld [vmem:[%s0 + $0x360] sm:$0xff]
  %v507 = vld [vmem:[%s0 + $0x368] sm:$0xff]
  %v508 = vld [vmem:[%s0 + $0x370] sm:$0xff]
  %v509 = vld [vmem:[%s0 + $0x378] sm:$0xff]
  %v510 = vld [vmem:[%s0 + $0x380] sm:$0xff]
  %v511 = vld [vmem:[%s0 + $0x388] sm:$0xff]
  %v512 = vld [vmem:[%s0 + $0x390] sm:$0xff]
  %v513 = vld [vmem:[%s0 + $0x398] sm:$0xff]
  %v514 = vld [vmem:[%s0 + $0x3a0] sm:$0xff]
  %v515 = vld [vmem:[%s0 + $0x3a8] sm:$0xff]
  %v516 = vld [vmem:[%s0 + $0x3b0] sm:$0xff]
  %v517 = vld [vmem:[%s0 + $0x3b8] sm:$0xff]
  %v518 = vld [vmem:[%s0 + $0x3c0] sm:$0xff]
  %v519 = vld [vmem:[%s0 + $0x3c8] sm:$0xff]
  %v520 = vld [vmem:[%s0 + $0x3d0] sm:$0xff]
  %v521 = vld [vmem:[%s0 + $0x3d8] sm:$0xff]
  %v522 = vld [vmem:[%s0 + $0x3e0] sm:$0xff]
  %v523 = vld [vmem:[%s0 + $0x3e8] sm:$0xff]
  %v524 = vld [vmem:[%s0 + $0x3f0] sm:$0xff]
  %v525 = vld [vmem:[%s0 + $0x3f8] sm:$0xff]
  %v526 = vld [vmem:[%s0 + $0x400] sm:$0xff]
  %v527 = vld [vmem:[%s0 + $0x408] sm:$0xff]
  %v528 = vld [vmem:[%s0 + $0x410] sm:$0xff]
  %v529 = vld [vmem:[%s0 + $0x418] sm:$0xff]
  %v530 = vld [vmem:[%s0 + $0x420] sm:$0xff]
  %v531 = vld [vmem:[%s0 + $0x428] sm:$0xff]
  %v532 = vld [vmem:[%s0 + $0x430] sm:$0xff]
  %v533 = vld [vmem:[%s0 + $0x438] sm:$0xff]
  %v534 = vld [vmem:[%s0 + $0x440] sm:$0xff]
  %v535 = vld [vmem:[%s0 + $0x448] sm:$0xff]
  %v536 = vld [vmem:[%s0 + $0x450] sm:$0xff]
  %v537 = vld [vmem:[%s0 + $0x458] sm:$0xff]
  %v538 = vld [vmem:[%s0 + $0x460] sm:$0xff]
  %v539 = vld [vmem:[%s0 + $0x468] sm:$0xff]
  %v540 = vld [vmem:[%s0 + $0x470] sm:$0xff]
  %v541 = vld [vmem:[%s0 + $0x478] sm:$0xff]
  %v542 = vld [vmem:[%s0 + $0x480] sm:$0xff]
  %v543 = vld [vmem:[%s0 + $0x488] sm:$0xff]
  %v544 = vld [vmem:[%s0 + $0x490] sm:$0xff]
  %v545 = vld [vmem:[%s0 + $0x498] sm:$0xff]
  %v546 = vld [vmem:[%s0 + $0x4a0] sm:$0xff]
  %v547 = vld [vmem:[%s0 + $0x4a8] sm:$0xff]
  %v548 = vld [vmem:[%s0 + $0x4b0] sm:$0xff]
  %v549 = vld [vmem:[%s0 + $0x4b8] sm:$0xff]
  %v550 = vld [vmem:[%s0 + $0x4c0] sm:$0xff]
  %v551 = vld [vmem:[%s0 + $0x4c8] sm:$0xff]
  %v552 = vld [vmem:[%s0 + $0x4d0] sm:$0xff]
  %v553 = vld [vmem:[%s0 + $0x4d8] sm:$0xff]
  %v554 = vld [vmem:[%s0 + $0x4e0] sm:$0xff]
  %v555 = vld [vmem:[%s0 + $0x4e8] sm:$0xff]
  %v556 = vld [vmem:[%s0 + $0x4f0] sm:$0xff]
  %v557 = vld [vmem:[%s0 + $0x4f8] sm:$0xff]
  %v558 = vld [vmem:[%s0 + $0x500] sm:$0xff]
  %v559 = vld [vmem:[%s0 + $0x508] sm:$0xff]
  %v560 = vld [vmem:[%s0 + $0x510] sm:$0xff]
  %v561 = vld [vmem:[%s0 + $0x518] sm:$0xff]
  %v562 = vld [vmem:[%s0 + $0x520] sm:$0xff]
  %v563 = vld [vmem:[%s0 + $0x528] sm:$0xff]
  %v564 = vld [vmem:[%s0 + $0x530] sm:$0xff]
  %v565 = vld [vmem:[%s0 + $0x538] sm:$0xff]
  %v566 = vld [vmem:[%s0 + $0x540] sm:$0xff]
  %v567 = vld [vmem:[%s0 + $0x548] sm:$0xff]
  %v568 = vld [vmem:[%s0 + $0x550] sm:$0xff]
  %v569 = vld [vmem:[%s0 + $0x558] sm:$0xff]
  %v570 = vld [vmem:[%s0 + $0x560] sm:$0xff]
  %v571 = vld [vmem:[%s0 + $0x568] sm:$0xff]
  %v572 = vld [vmem:[%s0 + $0x570] sm:$0xff]
  %v573 = vld [vmem:[%s0 + $0x578] sm:$0xff]
  %v574 = vld [vmem:[%s0 + $0x580] sm:$0xff]
  %v575 = vld [vmem:[%s0 + $0x588] sm:$0xff]
  %v576 = vld [vmem:[%s0 + $0x590] sm:$0xff]
  %v577 = vld [vmem:[%s0 + $0x598] sm:$0xff]
  %v578 = vld [vmem:[%s0 + $0x5a0] sm:$0xff]
  %v579 = vld [vmem:[%s0 + $0x5a8] sm:$0xff]
  %v580 = vld [vmem:[%s0 + $0x5b0] sm:$0xff]
  %v581 = vld [vmem:[%s0 + $0x5b8] sm:$0xff]
  %v582 = vld [vmem:[%s0 + $0x5c0] sm:$0xff]
  %v583 = vld [vmem:[%s0 + $0x5c8] sm:$0xff]
  %v584 = vld [vmem:[%s0 + $0x5d0] sm:$0xff]
  %v585 = vld [vmem:[%s0 + $0x5d8] sm:$0xff]
  %v586 = vld [vmem:[%s0 + $0x5e0] sm:$0xff]
  %v587 = vld [vmem:[%s0 + $0x5e8] sm:$0xff]
  %v588 = vld [vmem:[%s0 + $0x5f0] sm:$0xff]
  %v589 = vld [vmem:[%s0 + $0x5f8] sm:$0xff]
  %v590 = vld [vmem:[%s0 + $0x600] sm:$0xff]
  %v591 = vld [vmem:[%s0 + $0x608] sm:$0xff]
  %v592 = vld [vmem:[%s0 + $0x610] sm:$0xff]
  %v593 = vld [vmem:[%s0 + $0x618] sm:$0xff]
  %v594 = vld [vmem:[%s0 + $0x620] sm:$0xff]
  %v595 = vld [vmem:[%s0 + $0x628] sm:$0xff]
  %v596 = vld [vmem:[%s0 + $0x630] sm:$0xff]
  %v597 = vld [vmem:[%s0 + $0x638] sm:$0xff]
  %v598 = vld [vmem:[%s0 + $0x640] sm:$0xff]
  %v599 = vld [vmem:[%s0 + $0x648] sm:$0xff]
  %v600 = vld [vmem:[%s0 + $0x650] sm:$0xff]
  %v601 = vld [vmem:[%s0 + $0x658] sm:$0xff]
  %v602 = vld [vmem:[%s0 + $0x660] sm:$0xff]
  %v603 = vld [vmem:[%s0 + $0x668] sm:$0xff]
  %v604 = vld [vmem:[%s0 + $0x670] sm:$0xff]
  %v605 = vld [vmem:[%s0 + $0x678] sm:$0xff]
  %v606 = vld [vmem:[%s0 + $0x680] sm:$0xff]
  %v607 = vld [vmem:[%s0 + $0x688] sm:$0xff]
  %v608 = vld [vmem:[%s0 + $0x690] sm:$0xff]
  %v609 = vld [vmem:[%s0 + $0x698] sm:$0xff]
  %v610 = vld [vmem:[%s0 + $0x6a0] sm:$0xff]
  %v611 = vld [vmem:[%s0 + $0x6a8] sm:$0xff]
  %v612 = vld [vmem:[%s0 + $0x6b0] sm:$0xff]
  %v613 = vld [vmem:[%s0 + $0x6b8] sm:$0xff]
  %v614 = vld [vmem:[%s0 + $0x6c0] sm:$0xff]
  %v615 = vld [vmem:[%s0 + $0x6c8] sm:$0xff]
  %v616 = vld [vmem:[%s0 + $0x6d0] sm:$0xff]
  %v617 = vld [vmem:[%s0 + $0x6d8] sm:$0xff]
  %v618 = vld [vmem:[%s0 + $0x6e0] sm:$0xff]
  %v619 = vld [vmem:[%s0 + $0x6e8] sm:$0xff]
  %v620 = vld [vmem:[%s0 + $0x6f0] sm:$0xff]
  %v621 = vld [vmem:[%s0 + $0x6f8] sm:$0xff]
  %v622 = vld [vmem:[%s0 + $0x700] sm:$0xff]
  %v623 = vld [vmem:[%s0 + $0x708] sm:$0xff]
  %v624 = vld [vmem:[%s0 + $0x710] sm:$0xff]
  %v625 = vld [vmem:[%s0 + $0x718] sm:$0xff]
  %v626 = vld [vmem:[%s0 + $0x720] sm:$0xff]
  %v627 = vld [vmem:[%s0 + $0x728] sm:$0xff]
  %v628 = vld [vmem:[%s0 + $0x730] sm:$0xff]
  %v629 = vld [vmem:[%s0 + $0x738] sm:$0xff]
  %v630 = vld [vmem:[%s0 + $0x740] sm:$0xff]
  %v631 = vld [vmem:[%s0 + $0x748] sm:$0xff]
  %v632 = vld [vmem:[%s0 + $0x750] sm:$0xff]
  %v633 = vld [vmem:[%s0 + $0x758] sm:$0xff]
  %v634 = vld [vmem:[%s0 + $0x760] sm:$0xff]
  %v635 = vld [vmem:[%s0 + $0x768] sm:$0xff]
  %v636 = vld [vmem:[%s0 + $0x770] sm:$0xff]
  %v637 = vld [vmem:[%s0 + $0x778] sm:$0xff]
  %v638 = vld [vmem:[%s0 + $0x780] sm:$0xff]
  %v639 = vld [vmem:[%s0 + $0x788] sm:$0xff]
  %v640 = vld [vmem:[%s0 + $0x790] sm:$0xff]
  %v641 = vld [vmem:[%s0 + $0x798] sm:$0xff]
  %v642 = vld [vmem:[%s0 + $0x7a0] sm:$0xff]
  %v643 = vld [vmem:[%s0 + $0x7a8] sm:$0xff]
  %v644 = vld [vmem:[%s0 + $0x7b0] sm:$0xff]
  %v645 = vld [vmem:[%s0 + $0x7b8] sm:$0xff]
  %v646 = vld [vmem:[%s0 + $0x7c0] sm:$0xff]
  %v647 = vld [vmem:[%s0 + $0x7c8] sm:$0xff]
  %v648 = vld [vmem:[%s0 + $0x7d0] sm:$0xff]
  %v649 = vld [vmem:[%s0 + $0x7d8] sm:$0xff]
  %v650 = vld [vmem:[%s0 + $0x7e0] sm:$0xff]
  %v651 = vld [vmem:[%s0 + $0x7e8] sm:$0xff]
  %v652 = vld [vmem:[%s0 + $0x7f0] sm:$0xff]
  %v653 = vld [vmem:[%s0 + $0x7f8] sm:$0xff]
  %v654 = vld [vmem:[%s1] sm:$0xff]
  %v655 = vld [vmem:[%s1 + $0x8] sm:$0xff]
  %v656 = vld [vmem:[%s1 + $0x10] sm:$0xff]
  %v657 = vld [vmem:[%s1 + $0x18] sm:$0xff]
  %v658 = vld [vmem:[%s1 + $0x20] sm:$0xff]
  %v659 = vld [vmem:[%s1 + $0x28] sm:$0xff]
  %v660 = vld [vmem:[%s1 + $0x30] sm:$0xff]
  %v661 = vld [vmem:[%s1 + $0x38] sm:$0xff]
  %v662 = vld [vmem:[%s1 + $0x40] sm:$0xff]
  %v663 = vld [vmem:[%s1 + $0x48] sm:$0xff]
  %v664 = vld [vmem:[%s1 + $0x50] sm:$0xff]
  %v665 = vld [vmem:[%s1 + $0x58] sm:$0xff]
  %v666 = vld [vmem:[%s1 + $0x60] sm:$0xff]
  %v667 = vld [vmem:[%s1 + $0x68] sm:$0xff]
  %v668 = vld [vmem:[%s1 + $0x70] sm:$0xff]
  %v669 = vld [vmem:[%s1 + $0x78] sm:$0xff]
  %v670 = vld [vmem:[%s1 + $0x80] sm:$0xff]
  %v671 = vld [vmem:[%s1 + $0x88] sm:$0xff]
  %v672 = vld [vmem:[%s1 + $0x90] sm:$0xff]
  %v673 = vld [vmem:[%s1 + $0x98] sm:$0xff]
  %v674 = vld [vmem:[%s1 + $0xa0] sm:$0xff]
  %v675 = vld [vmem:[%s1 + $0xa8] sm:$0xff]
  %v676 = vld [vmem:[%s1 + $0xb0] sm:$0xff]
  %v677 = vld [vmem:[%s1 + $0xb8] sm:$0xff]
  %v678 = vld [vmem:[%s1 + $0xc0] sm:$0xff]
  %v679 = vld [vmem:[%s1 + $0xc8] sm:$0xff]
  %v680 = vld [vmem:[%s1 + $0xd0] sm:$0xff]
  %v681 = vld [vmem:[%s1 + $0xd8] sm:$0xff]
  %v682 = vld [vmem:[%s1 + $0xe0] sm:$0xff]
  %v683 = vld [vmem:[%s1 + $0xe8] sm:$0xff]
  %v684 = vld [vmem:[%s1 + $0xf0] sm:$0xff]
  %v685 = vld [vmem:[%s1 + $0xf8] sm:$0xff]
  %687 = vset.pattern.permute.xlu0 0
  %688 = vperm.xlu0 %687, %v654
  %v689 = vpop.permute.xlu0 %688
  %692 = vset.pattern.permute.xlu0 0
  %693 = vperm.xlu0 %692, %v655
  %v694 = vpop.permute.xlu0 %693
  %697 = vset.pattern.permute.xlu0 0
  %698 = vperm.xlu0 %697, %v656
  %v699 = vpop.permute.xlu0 %698
  %702 = vset.pattern.permute.xlu0 0
  %703 = vperm.xlu0 %702, %v657
  %v704 = vpop.permute.xlu0 %703
  %707 = vset.pattern.permute.xlu0 0
  %708 = vperm.xlu0 %707, %v658
  %v709 = vpop.permute.xlu0 %708
  %712 = vset.pattern.permute.xlu0 0
  %713 = vperm.xlu0 %712, %v659
  %v714 = vpop.permute.xlu0 %713
  %717 = vset.pattern.permute.xlu0 0
  %718 = vperm.xlu0 %717, %v660
  %v719 = vpop.permute.xlu0 %718
  %722 = vset.pattern.permute.xlu0 0
  %723 = vperm.xlu0 %722, %v661
  %v724 = vpop.permute.xlu0 %723
  %727 = vset.pattern.permute.xlu0 0
  %728 = vperm.xlu0 %727, %v662
  %v729 = vpop.permute.xlu0 %728
  %732 = vset.pattern.permute.xlu0 0
  %733 = vperm.xlu0 %732, %v663
  %v734 = vpop.permute.xlu0 %733
  %737 = vset.pattern.permute.xlu0 0
  %738 = vperm.xlu0 %737, %v664
  %v739 = vpop.permute.xlu0 %738
  %742 = vset.pattern.permute.xlu0 0
  %743 = vperm.xlu0 %742, %v665
  %v744 = vpop.permute.xlu0 %743
  %747 = vset.pattern.permute.xlu0 0
  %748 = vperm.xlu0 %747, %v666
  %v749 = vpop.permute.xlu0 %748
  %752 = vset.pattern.permute.xlu0 0
  %753 = vperm.xlu0 %752, %v667
  %v754 = vpop.permute.xlu0 %753
  %757 = vset.pattern.permute.xlu0 0
  %758 = vperm.xlu0 %757, %v668
  %v759 = vpop.permute.xlu0 %758
  %762 = vset.pattern.permute.xlu0 0
  %763 = vperm.xlu0 %762, %v669
  %v764 = vpop.permute.xlu0 %763
  %767 = vset.pattern.permute.xlu0 0
  %768 = vperm.xlu0 %767, %v670
  %v769 = vpop.permute.xlu0 %768
  %772 = vset.pattern.permute.xlu0 0
  %773 = vperm.xlu0 %772, %v671
  %v774 = vpop.permute.xlu0 %773
  %777 = vset.pattern.permute.xlu0 0
  %778 = vperm.xlu0 %777, %v672
  %v779 = vpop.permute.xlu0 %778
  %782 = vset.pattern.permute.xlu0 0
  %783 = vperm.xlu0 %782, %v673
  %v784 = vpop.permute.xlu0 %783
  %787 = vset.pattern.permute.xlu0 0
  %788 = vperm.xlu0 %787, %v674
  %v789 = vpop.permute.xlu0 %788
  %792 = vset.pattern.permute.xlu0 0
  %793 = vperm.xlu0 %792, %v675
  %v794 = vpop.permute.xlu0 %793
  %797 = vset.pattern.permute.xlu0 0
  %798 = vperm.xlu0 %797, %v676
  %v799 = vpop.permute.xlu0 %798
  %802 = vset.pattern.permute.xlu0 0
  %803 = vperm.xlu0 %802, %v677
  %v804 = vpop.permute.xlu0 %803
  %807 = vset.pattern.permute.xlu0 0
  %808 = vperm.xlu0 %807, %v678
  %v809 = vpop.permute.xlu0 %808
  %812 = vset.pattern.permute.xlu0 0
  %813 = vperm.xlu0 %812, %v679
  %v814 = vpop.permute.xlu0 %813
  %817 = vset.pattern.permute.xlu0 0
  %818 = vperm.xlu0 %817, %v680
  %v819 = vpop.permute.xlu0 %818
  %822 = vset.pattern.permute.xlu0 0
  %823 = vperm.xlu0 %822, %v681
  %v824 = vpop.permute.xlu0 %823
  %827 = vset.pattern.permute.xlu0 0
  %828 = vperm.xlu0 %827, %v682
  %v829 = vpop.permute.xlu0 %828
  %832 = vset.pattern.permute.xlu0 0
  %833 = vperm.xlu0 %832, %v683
  %v834 = vpop.permute.xlu0 %833
  %837 = vset.pattern.permute.xlu0 0
  %838 = vperm.xlu0 %837, %v684
  %v839 = vpop.permute.xlu0 %838
  %842 = vset.pattern.permute.xlu0 0
  %843 = vperm.xlu0 %842, %v685
  %v844 = vpop.permute.xlu0 %843
  %v1102 = vunpack.c.l.b16 %v398
  %v1103 = vunpack.c.h.b16 %v398
  %v1104 = vunpack.c.l.b16 %v399
  %v1105 = vunpack.c.h.b16 %v399
  %v1106 = vunpack.c.l.b16 %v400
  %v1107 = vunpack.c.h.b16 %v400
  %v1108 = vunpack.c.l.b16 %v401
  %v1109 = vunpack.c.h.b16 %v401
  %v1110 = vunpack.c.l.b16 %v402
  %v1111 = vunpack.c.h.b16 %v402
  %v1112 = vunpack.c.l.b16 %v403
  %v1113 = vunpack.c.h.b16 %v403
  %v1114 = vunpack.c.l.b16 %v404
  %v1115 = vunpack.c.h.b16 %v404
  %v1116 = vunpack.c.l.b16 %v405
  %v1117 = vunpack.c.h.b16 %v405
  %v1118 = vunpack.c.l.b16 %v406
  %v1119 = vunpack.c.h.b16 %v406
  %v1120 = vunpack.c.l.b16 %v407
  %v1121 = vunpack.c.h.b16 %v407
  %v1122 = vunpack.c.l.b16 %v408
  %v1123 = vunpack.c.h.b16 %v408
  %v1124 = vunpack.c.l.b16 %v409
  %v1125 = vunpack.c.h.b16 %v409
  %v1126 = vunpack.c.l.b16 %v410
  %v1127 = vunpack.c.h.b16 %v410
  %v1128 = vunpack.c.l.b16 %v411
  %v1129 = vunpack.c.h.b16 %v411
  %v1130 = vunpack.c.l.b16 %v412
  %v1131 = vunpack.c.h.b16 %v412
  %v1132 = vunpack.c.l.b16 %v413
  %v1133 = vunpack.c.h.b16 %v413
  %v1134 = vunpack.c.l.b16 %v414
  %v1135 = vunpack.c.h.b16 %v414
  %v1136 = vunpack.c.l.b16 %v415
  %v1137 = vunpack.c.h.b16 %v415
  %v1138 = vunpack.c.l.b16 %v416
  %v1139 = vunpack.c.h.b16 %v416
  %v1140 = vunpack.c.l.b16 %v417
  %v1141 = vunpack.c.h.b16 %v417
  %v1142 = vunpack.c.l.b16 %v418
  %v1143 = vunpack.c.h.b16 %v418
  %v1144 = vunpack.c.l.b16 %v419
  %v1145 = vunpack.c.h.b16 %v419
  %v1146 = vunpack.c.l.b16 %v420
  %v1147 = vunpack.c.h.b16 %v420
  %v1148 = vunpack.c.l.b16 %v421
  %v1149 = vunpack.c.h.b16 %v421
  %v1150 = vunpack.c.l.b16 %v422
  %v1151 = vunpack.c.h.b16 %v422
  %v1152 = vunpack.c.l.b16 %v423
  %v1153 = vunpack.c.h.b16 %v423
  %v1154 = vunpack.c.l.b16 %v424
  %v1155 = vunpack.c.h.b16 %v424
  %v1156 = vunpack.c.l.b16 %v425
  %v1157 = vunpack.c.h.b16 %v425
  %v1158 = vunpack.c.l.b16 %v426
  %v1159 = vunpack.c.h.b16 %v426
  %v1160 = vunpack.c.l.b16 %v427
  %v1161 = vunpack.c.h.b16 %v427
  %v1162 = vunpack.c.l.b16 %v428
  %v1163 = vunpack.c.h.b16 %v428
  %v1164 = vunpack.c.l.b16 %v429
  %v1165 = vunpack.c.h.b16 %v429
  %v1166 = vunpack.c.l.b16 %v430
  %v1167 = vunpack.c.h.b16 %v430
  %v1168 = vunpack.c.l.b16 %v431
  %v1169 = vunpack.c.h.b16 %v431
  %v1170 = vunpack.c.l.b16 %v432
  %v1171 = vunpack.c.h.b16 %v432
  %v1172 = vunpack.c.l.b16 %v433
  %v1173 = vunpack.c.h.b16 %v433
  %v1174 = vunpack.c.l.b16 %v434
  %v1175 = vunpack.c.h.b16 %v434
  %v1176 = vunpack.c.l.b16 %v435
  %v1177 = vunpack.c.h.b16 %v435
  %v1178 = vunpack.c.l.b16 %v436
  %v1179 = vunpack.c.h.b16 %v436
  %v1180 = vunpack.c.l.b16 %v437
  %v1181 = vunpack.c.h.b16 %v437
  %v1182 = vunpack.c.l.b16 %v438
  %v1183 = vunpack.c.h.b16 %v438
  %v1184 = vunpack.c.l.b16 %v439
  %v1185 = vunpack.c.h.b16 %v439
  %v1186 = vunpack.c.l.b16 %v440
  %v1187 = vunpack.c.h.b16 %v440
  %v1188 = vunpack.c.l.b16 %v441
  %v1189 = vunpack.c.h.b16 %v441
  %v1190 = vunpack.c.l.b16 %v442
  %v1191 = vunpack.c.h.b16 %v442
  %v1192 = vunpack.c.l.b16 %v443
  %v1193 = vunpack.c.h.b16 %v443
  %v1194 = vunpack.c.l.b16 %v444
  %v1195 = vunpack.c.h.b16 %v444
  %v1196 = vunpack.c.l.b16 %v445
  %v1197 = vunpack.c.h.b16 %v445
  %v1198 = vunpack.c.l.b16 %v446
  %v1199 = vunpack.c.h.b16 %v446
  %v1200 = vunpack.c.l.b16 %v447
  %v1201 = vunpack.c.h.b16 %v447
  %v1202 = vunpack.c.l.b16 %v448
  %v1203 = vunpack.c.h.b16 %v448
  %v1204 = vunpack.c.l.b16 %v449
  %v1205 = vunpack.c.h.b16 %v449
  %v1206 = vunpack.c.l.b16 %v450
  %v1207 = vunpack.c.h.b16 %v450
  %v1208 = vunpack.c.l.b16 %v451
  %v1209 = vunpack.c.h.b16 %v451
  %v1210 = vunpack.c.l.b16 %v452
  %v1211 = vunpack.c.h.b16 %v452
  %v1212 = vunpack.c.l.b16 %v453
  %v1213 = vunpack.c.h.b16 %v453
  %v1214 = vunpack.c.l.b16 %v454
  %v1215 = vunpack.c.h.b16 %v454
  %v1216 = vunpack.c.l.b16 %v455
  %v1217 = vunpack.c.h.b16 %v455
  %v1218 = vunpack.c.l.b16 %v456
  %v1219 = vunpack.c.h.b16 %v456
  %v1220 = vunpack.c.l.b16 %v457
  %v1221 = vunpack.c.h.b16 %v457
  %v1222 = vunpack.c.l.b16 %v458
  %v1223 = vunpack.c.h.b16 %v458
  %v1224 = vunpack.c.l.b16 %v459
  %v1225 = vunpack.c.h.b16 %v459
  %v1226 = vunpack.c.l.b16 %v460
  %v1227 = vunpack.c.h.b16 %v460
  %v1228 = vunpack.c.l.b16 %v461
  %v1229 = vunpack.c.h.b16 %v461
  %v1230 = vunpack.c.l.b16 %v462
  %v1231 = vunpack.c.h.b16 %v462
  %v1232 = vunpack.c.l.b16 %v463
  %v1233 = vunpack.c.h.b16 %v463
  %v1234 = vunpack.c.l.b16 %v464
  %v1235 = vunpack.c.h.b16 %v464
  %v1236 = vunpack.c.l.b16 %v465
  %v1237 = vunpack.c.h.b16 %v465
  %v1238 = vunpack.c.l.b16 %v466
  %v1239 = vunpack.c.h.b16 %v466
  %v1240 = vunpack.c.l.b16 %v467
  %v1241 = vunpack.c.h.b16 %v467
  %v1242 = vunpack.c.l.b16 %v468
  %v1243 = vunpack.c.h.b16 %v468
  %v1244 = vunpack.c.l.b16 %v469
  %v1245 = vunpack.c.h.b16 %v469
  %v1246 = vunpack.c.l.b16 %v470
  %v1247 = vunpack.c.h.b16 %v470
  %v1248 = vunpack.c.l.b16 %v471
  %v1249 = vunpack.c.h.b16 %v471
  %v1250 = vunpack.c.l.b16 %v472
  %v1251 = vunpack.c.h.b16 %v472
  %v1252 = vunpack.c.l.b16 %v473
  %v1253 = vunpack.c.h.b16 %v473
  %v1254 = vunpack.c.l.b16 %v474
  %v1255 = vunpack.c.h.b16 %v474
  %v1256 = vunpack.c.l.b16 %v475
  %v1257 = vunpack.c.h.b16 %v475
  %v1258 = vunpack.c.l.b16 %v476
  %v1259 = vunpack.c.h.b16 %v476
  %v1260 = vunpack.c.l.b16 %v477
  %v1261 = vunpack.c.h.b16 %v477
  %v1262 = vunpack.c.l.b16 %v478
  %v1263 = vunpack.c.h.b16 %v478
  %v1264 = vunpack.c.l.b16 %v479
  %v1265 = vunpack.c.h.b16 %v479
  %v1266 = vunpack.c.l.b16 %v480
  %v1267 = vunpack.c.h.b16 %v480
  %v1268 = vunpack.c.l.b16 %v481
  %v1269 = vunpack.c.h.b16 %v481
  %v1270 = vunpack.c.l.b16 %v482
  %v1271 = vunpack.c.h.b16 %v482
  %v1272 = vunpack.c.l.b16 %v483
  %v1273 = vunpack.c.h.b16 %v483
  %v1274 = vunpack.c.l.b16 %v484
  %v1275 = vunpack.c.h.b16 %v484
  %v1276 = vunpack.c.l.b16 %v485
  %v1277 = vunpack.c.h.b16 %v485
  %v1278 = vunpack.c.l.b16 %v486
  %v1279 = vunpack.c.h.b16 %v486
  %v1280 = vunpack.c.l.b16 %v487
  %v1281 = vunpack.c.h.b16 %v487
  %v1282 = vunpack.c.l.b16 %v488
  %v1283 = vunpack.c.h.b16 %v488
  %v1284 = vunpack.c.l.b16 %v489
  %v1285 = vunpack.c.h.b16 %v489
  %v1286 = vunpack.c.l.b16 %v490
  %v1287 = vunpack.c.h.b16 %v490
  %v1288 = vunpack.c.l.b16 %v491
  %v1289 = vunpack.c.h.b16 %v491
  %v1290 = vunpack.c.l.b16 %v492
  %v1291 = vunpack.c.h.b16 %v492
  %v1292 = vunpack.c.l.b16 %v493
  %v1293 = vunpack.c.h.b16 %v493
  %v1294 = vunpack.c.l.b16 %v494
  %v1295 = vunpack.c.h.b16 %v494
  %v1296 = vunpack.c.l.b16 %v495
  %v1297 = vunpack.c.h.b16 %v495
  %v1298 = vunpack.c.l.b16 %v496
  %v1299 = vunpack.c.h.b16 %v496
  %v1300 = vunpack.c.l.b16 %v497
  %v1301 = vunpack.c.h.b16 %v497
  %v1302 = vunpack.c.l.b16 %v498
  %v1303 = vunpack.c.h.b16 %v498
  %v1304 = vunpack.c.l.b16 %v499
  %v1305 = vunpack.c.h.b16 %v499
  %v1306 = vunpack.c.l.b16 %v500
  %v1307 = vunpack.c.h.b16 %v500
  %v1308 = vunpack.c.l.b16 %v501
  %v1309 = vunpack.c.h.b16 %v501
  %v1310 = vunpack.c.l.b16 %v502
  %v1311 = vunpack.c.h.b16 %v502
  %v1312 = vunpack.c.l.b16 %v503
  %v1313 = vunpack.c.h.b16 %v503
  %v1314 = vunpack.c.l.b16 %v504
  %v1315 = vunpack.c.h.b16 %v504
  %v1316 = vunpack.c.l.b16 %v505
  %v1317 = vunpack.c.h.b16 %v505
  %v1318 = vunpack.c.l.b16 %v506
  %v1319 = vunpack.c.h.b16 %v506
  %v1320 = vunpack.c.l.b16 %v507
  %v1321 = vunpack.c.h.b16 %v507
  %v1322 = vunpack.c.l.b16 %v508
  %v1323 = vunpack.c.h.b16 %v508
  %v1324 = vunpack.c.l.b16 %v509
  %v1325 = vunpack.c.h.b16 %v509
  %v1326 = vunpack.c.l.b16 %v510
  %v1327 = vunpack.c.h.b16 %v510
  %v1328 = vunpack.c.l.b16 %v511
  %v1329 = vunpack.c.h.b16 %v511
  %v1330 = vunpack.c.l.b16 %v512
  %v1331 = vunpack.c.h.b16 %v512
  %v1332 = vunpack.c.l.b16 %v513
  %v1333 = vunpack.c.h.b16 %v513
  %v1334 = vunpack.c.l.b16 %v514
  %v1335 = vunpack.c.h.b16 %v514
  %v1336 = vunpack.c.l.b16 %v515
  %v1337 = vunpack.c.h.b16 %v515
  %v1338 = vunpack.c.l.b16 %v516
  %v1339 = vunpack.c.h.b16 %v516
  %v1340 = vunpack.c.l.b16 %v517
  %v1341 = vunpack.c.h.b16 %v517
  %v1342 = vunpack.c.l.b16 %v518
  %v1343 = vunpack.c.h.b16 %v518
  %v1344 = vunpack.c.l.b16 %v519
  %v1345 = vunpack.c.h.b16 %v519
  %v1346 = vunpack.c.l.b16 %v520
  %v1347 = vunpack.c.h.b16 %v520
  %v1348 = vunpack.c.l.b16 %v521
  %v1349 = vunpack.c.h.b16 %v521
  %v1350 = vunpack.c.l.b16 %v522
  %v1351 = vunpack.c.h.b16 %v522
  %v1352 = vunpack.c.l.b16 %v523
  %v1353 = vunpack.c.h.b16 %v523
  %v1354 = vunpack.c.l.b16 %v524
  %v1355 = vunpack.c.h.b16 %v524
  %v1356 = vunpack.c.l.b16 %v525
  %v1357 = vunpack.c.h.b16 %v525
  %v1358 = vunpack.c.l.b16 %v526
  %v1359 = vunpack.c.h.b16 %v526
  %v1360 = vunpack.c.l.b16 %v527
  %v1361 = vunpack.c.h.b16 %v527
  %v1362 = vunpack.c.l.b16 %v528
  %v1363 = vunpack.c.h.b16 %v528
  %v1364 = vunpack.c.l.b16 %v529
  %v1365 = vunpack.c.h.b16 %v529
  %v1366 = vunpack.c.l.b16 %v530
  %v1367 = vunpack.c.h.b16 %v530
  %v1368 = vunpack.c.l.b16 %v531
  %v1369 = vunpack.c.h.b16 %v531
  %v1370 = vunpack.c.l.b16 %v532
  %v1371 = vunpack.c.h.b16 %v532
  %v1372 = vunpack.c.l.b16 %v533
  %v1373 = vunpack.c.h.b16 %v533
  %v1374 = vunpack.c.l.b16 %v534
  %v1375 = vunpack.c.h.b16 %v534
  %v1376 = vunpack.c.l.b16 %v535
  %v1377 = vunpack.c.h.b16 %v535
  %v1378 = vunpack.c.l.b16 %v536
  %v1379 = vunpack.c.h.b16 %v536
  %v1380 = vunpack.c.l.b16 %v537
  %v1381 = vunpack.c.h.b16 %v537
  %v1382 = vunpack.c.l.b16 %v538
  %v1383 = vunpack.c.h.b16 %v538
  %v1384 = vunpack.c.l.b16 %v539
  %v1385 = vunpack.c.h.b16 %v539
  %v1386 = vunpack.c.l.b16 %v540
  %v1387 = vunpack.c.h.b16 %v540
  %v1388 = vunpack.c.l.b16 %v541
  %v1389 = vunpack.c.h.b16 %v541
  %v1390 = vunpack.c.l.b16 %v542
  %v1391 = vunpack.c.h.b16 %v542
  %v1392 = vunpack.c.l.b16 %v543
  %v1393 = vunpack.c.h.b16 %v543
  %v1394 = vunpack.c.l.b16 %v544
  %v1395 = vunpack.c.h.b16 %v544
  %v1396 = vunpack.c.l.b16 %v545
  %v1397 = vunpack.c.h.b16 %v545
  %v1398 = vunpack.c.l.b16 %v546
  %v1399 = vunpack.c.h.b16 %v546
  %v1400 = vunpack.c.l.b16 %v547
  %v1401 = vunpack.c.h.b16 %v547
  %v1402 = vunpack.c.l.b16 %v548
  %v1403 = vunpack.c.h.b16 %v548
  %v1404 = vunpack.c.l.b16 %v549
  %v1405 = vunpack.c.h.b16 %v549
  %v1406 = vunpack.c.l.b16 %v550
  %v1407 = vunpack.c.h.b16 %v550
  %v1408 = vunpack.c.l.b16 %v551
  %v1409 = vunpack.c.h.b16 %v551
  %v1410 = vunpack.c.l.b16 %v552
  %v1411 = vunpack.c.h.b16 %v552
  %v1412 = vunpack.c.l.b16 %v553
  %v1413 = vunpack.c.h.b16 %v553
  %v1414 = vunpack.c.l.b16 %v554
  %v1415 = vunpack.c.h.b16 %v554
  %v1416 = vunpack.c.l.b16 %v555
  %v1417 = vunpack.c.h.b16 %v555
  %v1418 = vunpack.c.l.b16 %v556
  %v1419 = vunpack.c.h.b16 %v556
  %v1420 = vunpack.c.l.b16 %v557
  %v1421 = vunpack.c.h.b16 %v557
  %v1422 = vunpack.c.l.b16 %v558
  %v1423 = vunpack.c.h.b16 %v558
  %v1424 = vunpack.c.l.b16 %v559
  %v1425 = vunpack.c.h.b16 %v559
  %v1426 = vunpack.c.l.b16 %v560
  %v1427 = vunpack.c.h.b16 %v560
  %v1428 = vunpack.c.l.b16 %v561
  %v1429 = vunpack.c.h.b16 %v561
  %v1430 = vunpack.c.l.b16 %v562
  %v1431 = vunpack.c.h.b16 %v562
  %v1432 = vunpack.c.l.b16 %v563
  %v1433 = vunpack.c.h.b16 %v563
  %v1434 = vunpack.c.l.b16 %v564
  %v1435 = vunpack.c.h.b16 %v564
  %v1436 = vunpack.c.l.b16 %v565
  %v1437 = vunpack.c.h.b16 %v565
  %v1438 = vunpack.c.l.b16 %v566
  %v1439 = vunpack.c.h.b16 %v566
  %v1440 = vunpack.c.l.b16 %v567
  %v1441 = vunpack.c.h.b16 %v567
  %v1442 = vunpack.c.l.b16 %v568
  %v1443 = vunpack.c.h.b16 %v568
  %v1444 = vunpack.c.l.b16 %v569
  %v1445 = vunpack.c.h.b16 %v569
  %v1446 = vunpack.c.l.b16 %v570
  %v1447 = vunpack.c.h.b16 %v570
  %v1448 = vunpack.c.l.b16 %v571
  %v1449 = vunpack.c.h.b16 %v571
  %v1450 = vunpack.c.l.b16 %v572
  %v1451 = vunpack.c.h.b16 %v572
  %v1452 = vunpack.c.l.b16 %v573
  %v1453 = vunpack.c.h.b16 %v573
  %v1454 = vunpack.c.l.b16 %v574
  %v1455 = vunpack.c.h.b16 %v574
  %v1456 = vunpack.c.l.b16 %v575
  %v1457 = vunpack.c.h.b16 %v575
  %v1458 = vunpack.c.l.b16 %v576
  %v1459 = vunpack.c.h.b16 %v576
  %v1460 = vunpack.c.l.b16 %v577
  %v1461 = vunpack.c.h.b16 %v577
  %v1462 = vunpack.c.l.b16 %v578
  %v1463 = vunpack.c.h.b16 %v578
  %v1464 = vunpack.c.l.b16 %v579
  %v1465 = vunpack.c.h.b16 %v579
  %v1466 = vunpack.c.l.b16 %v580
  %v1467 = vunpack.c.h.b16 %v580
  %v1468 = vunpack.c.l.b16 %v581
  %v1469 = vunpack.c.h.b16 %v581
  %v1470 = vunpack.c.l.b16 %v582
  %v1471 = vunpack.c.h.b16 %v582
  %v1472 = vunpack.c.l.b16 %v583
  %v1473 = vunpack.c.h.b16 %v583
  %v1474 = vunpack.c.l.b16 %v584
  %v1475 = vunpack.c.h.b16 %v584
  %v1476 = vunpack.c.l.b16 %v585
  %v1477 = vunpack.c.h.b16 %v585
  %v1478 = vunpack.c.l.b16 %v586
  %v1479 = vunpack.c.h.b16 %v586
  %v1480 = vunpack.c.l.b16 %v587
  %v1481 = vunpack.c.h.b16 %v587
  %v1482 = vunpack.c.l.b16 %v588
  %v1483 = vunpack.c.h.b16 %v588
  %v1484 = vunpack.c.l.b16 %v589
  %v1485 = vunpack.c.h.b16 %v589
  %v1486 = vunpack.c.l.b16 %v590
  %v1487 = vunpack.c.h.b16 %v590
  %v1488 = vunpack.c.l.b16 %v591
  %v1489 = vunpack.c.h.b16 %v591
  %v1490 = vunpack.c.l.b16 %v592
  %v1491 = vunpack.c.h.b16 %v592
  %v1492 = vunpack.c.l.b16 %v593
  %v1493 = vunpack.c.h.b16 %v593
  %v1494 = vunpack.c.l.b16 %v594
  %v1495 = vunpack.c.h.b16 %v594
  %v1496 = vunpack.c.l.b16 %v595
  %v1497 = vunpack.c.h.b16 %v595
  %v1498 = vunpack.c.l.b16 %v596
  %v1499 = vunpack.c.h.b16 %v596
  %v1500 = vunpack.c.l.b16 %v597
  %v1501 = vunpack.c.h.b16 %v597
  %v1502 = vunpack.c.l.b16 %v598
  %v1503 = vunpack.c.h.b16 %v598
  %v1504 = vunpack.c.l.b16 %v599
  %v1505 = vunpack.c.h.b16 %v599
  %v1506 = vunpack.c.l.b16 %v600
  %v1507 = vunpack.c.h.b16 %v600
  %v1508 = vunpack.c.l.b16 %v601
  %v1509 = vunpack.c.h.b16 %v601
  %v1510 = vunpack.c.l.b16 %v602
  %v1511 = vunpack.c.h.b16 %v602
  %v1512 = vunpack.c.l.b16 %v603
  %v1513 = vunpack.c.h.b16 %v603
  %v1514 = vunpack.c.l.b16 %v604
  %v1515 = vunpack.c.h.b16 %v604
  %v1516 = vunpack.c.l.b16 %v605
  %v1517 = vunpack.c.h.b16 %v605
  %v1518 = vunpack.c.l.b16 %v606
  %v1519 = vunpack.c.h.b16 %v606
  %v1520 = vunpack.c.l.b16 %v607
  %v1521 = vunpack.c.h.b16 %v607
  %v1522 = vunpack.c.l.b16 %v608
  %v1523 = vunpack.c.h.b16 %v608
  %v1524 = vunpack.c.l.b16 %v609
  %v1525 = vunpack.c.h.b16 %v609
  %v1526 = vunpack.c.l.b16 %v610
  %v1527 = vunpack.c.h.b16 %v610
  %v1528 = vunpack.c.l.b16 %v611
  %v1529 = vunpack.c.h.b16 %v611
  %v1530 = vunpack.c.l.b16 %v612
  %v1531 = vunpack.c.h.b16 %v612
  %v1532 = vunpack.c.l.b16 %v613
  %v1533 = vunpack.c.h.b16 %v613
  %v1534 = vunpack.c.l.b16 %v614
  %v1535 = vunpack.c.h.b16 %v614
  %v1536 = vunpack.c.l.b16 %v615
  %v1537 = vunpack.c.h.b16 %v615
  %v1538 = vunpack.c.l.b16 %v616
  %v1539 = vunpack.c.h.b16 %v616
  %v1540 = vunpack.c.l.b16 %v617
  %v1541 = vunpack.c.h.b16 %v617
  %v1542 = vunpack.c.l.b16 %v618
  %v1543 = vunpack.c.h.b16 %v618
  %v1544 = vunpack.c.l.b16 %v619
  %v1545 = vunpack.c.h.b16 %v619
  %v1546 = vunpack.c.l.b16 %v620
  %v1547 = vunpack.c.h.b16 %v620
  %v1548 = vunpack.c.l.b16 %v621
  %v1549 = vunpack.c.h.b16 %v621
  %v1550 = vunpack.c.l.b16 %v622
  %v1551 = vunpack.c.h.b16 %v622
  %v1552 = vunpack.c.l.b16 %v623
  %v1553 = vunpack.c.h.b16 %v623
  %v1554 = vunpack.c.l.b16 %v624
  %v1555 = vunpack.c.h.b16 %v624
  %v1556 = vunpack.c.l.b16 %v625
  %v1557 = vunpack.c.h.b16 %v625
  %v1558 = vunpack.c.l.b16 %v626
  %v1559 = vunpack.c.h.b16 %v626
  %v1560 = vunpack.c.l.b16 %v627
  %v1561 = vunpack.c.h.b16 %v627
  %v1562 = vunpack.c.l.b16 %v628
  %v1563 = vunpack.c.h.b16 %v628
  %v1564 = vunpack.c.l.b16 %v629
  %v1565 = vunpack.c.h.b16 %v629
  %v1566 = vunpack.c.l.b16 %v630
  %v1567 = vunpack.c.h.b16 %v630
  %v1568 = vunpack.c.l.b16 %v631
  %v1569 = vunpack.c.h.b16 %v631
  %v1570 = vunpack.c.l.b16 %v632
  %v1571 = vunpack.c.h.b16 %v632
  %v1572 = vunpack.c.l.b16 %v633
  %v1573 = vunpack.c.h.b16 %v633
  %v1574 = vunpack.c.l.b16 %v634
  %v1575 = vunpack.c.h.b16 %v634
  %v1576 = vunpack.c.l.b16 %v635
  %v1577 = vunpack.c.h.b16 %v635
  %v1578 = vunpack.c.l.b16 %v636
  %v1579 = vunpack.c.h.b16 %v636
  %v1580 = vunpack.c.l.b16 %v637
  %v1581 = vunpack.c.h.b16 %v637
  %v1582 = vunpack.c.l.b16 %v638
  %v1583 = vunpack.c.h.b16 %v638
  %v1584 = vunpack.c.l.b16 %v639
  %v1585 = vunpack.c.h.b16 %v639
  %v1586 = vunpack.c.l.b16 %v640
  %v1587 = vunpack.c.h.b16 %v640
  %v1588 = vunpack.c.l.b16 %v641
  %v1589 = vunpack.c.h.b16 %v641
  %v1590 = vunpack.c.l.b16 %v642
  %v1591 = vunpack.c.h.b16 %v642
  %v1592 = vunpack.c.l.b16 %v643
  %v1593 = vunpack.c.h.b16 %v643
  %v1594 = vunpack.c.l.b16 %v644
  %v1595 = vunpack.c.h.b16 %v644
  %v1596 = vunpack.c.l.b16 %v645
  %v1597 = vunpack.c.h.b16 %v645
  %v1598 = vunpack.c.l.b16 %v646
  %v1599 = vunpack.c.h.b16 %v646
  %v1600 = vunpack.c.l.b16 %v647
  %v1601 = vunpack.c.h.b16 %v647
  %v1602 = vunpack.c.l.b16 %v648
  %v1603 = vunpack.c.h.b16 %v648
  %v1604 = vunpack.c.l.b16 %v649
  %v1605 = vunpack.c.h.b16 %v649
  %v1606 = vunpack.c.l.b16 %v650
  %v1607 = vunpack.c.h.b16 %v650
  %v1608 = vunpack.c.l.b16 %v651
  %v1609 = vunpack.c.h.b16 %v651
  %v1610 = vunpack.c.l.b16 %v652
  %v1611 = vunpack.c.h.b16 %v652
  %v1612 = vunpack.c.l.b16 %v653
  %v1613 = vunpack.c.h.b16 %v653
  %v1614 = vpack.c.b16 %v1118, %v1102
  %v1615 = vpack.c.b16 %v1119, %v1103
  %v1616 = vpack.c.b16 %v1120, %v1104
  %v1617 = vpack.c.b16 %v1121, %v1105
  %v1618 = vpack.c.b16 %v1122, %v1106
  %v1619 = vpack.c.b16 %v1123, %v1107
  %v1620 = vpack.c.b16 %v1124, %v1108
  %v1621 = vpack.c.b16 %v1125, %v1109
  %v1622 = vpack.c.b16 %v1126, %v1110
  %v1623 = vpack.c.b16 %v1127, %v1111
  %v1624 = vpack.c.b16 %v1128, %v1112
  %v1625 = vpack.c.b16 %v1129, %v1113
  %v1626 = vpack.c.b16 %v1130, %v1114
  %v1627 = vpack.c.b16 %v1131, %v1115
  %v1628 = vpack.c.b16 %v1132, %v1116
  %v1629 = vpack.c.b16 %v1133, %v1117
  %v1630 = vpack.c.b16 %v1150, %v1134
  %v1631 = vpack.c.b16 %v1151, %v1135
  %v1632 = vpack.c.b16 %v1152, %v1136
  %v1633 = vpack.c.b16 %v1153, %v1137
  %v1634 = vpack.c.b16 %v1154, %v1138
  %v1635 = vpack.c.b16 %v1155, %v1139
  %v1636 = vpack.c.b16 %v1156, %v1140
  %v1637 = vpack.c.b16 %v1157, %v1141
  %v1638 = vpack.c.b16 %v1158, %v1142
  %v1639 = vpack.c.b16 %v1159, %v1143
  %v1640 = vpack.c.b16 %v1160, %v1144
  %v1641 = vpack.c.b16 %v1161, %v1145
  %v1642 = vpack.c.b16 %v1162, %v1146
  %v1643 = vpack.c.b16 %v1163, %v1147
  %v1644 = vpack.c.b16 %v1164, %v1148
  %v1645 = vpack.c.b16 %v1165, %v1149
  %v1646 = vpack.c.b16 %v1182, %v1166
  %v1647 = vpack.c.b16 %v1183, %v1167
  %v1648 = vpack.c.b16 %v1184, %v1168
  %v1649 = vpack.c.b16 %v1185, %v1169
  %v1650 = vpack.c.b16 %v1186, %v1170
  %v1651 = vpack.c.b16 %v1187, %v1171
  %v1652 = vpack.c.b16 %v1188, %v1172
  %v1653 = vpack.c.b16 %v1189, %v1173
  %v1654 = vpack.c.b16 %v1190, %v1174
  %v1655 = vpack.c.b16 %v1191, %v1175
  %v1656 = vpack.c.b16 %v1192, %v1176
  %v1657 = vpack.c.b16 %v1193, %v1177
  %v1658 = vpack.c.b16 %v1194, %v1178
  %v1659 = vpack.c.b16 %v1195, %v1179
  %v1660 = vpack.c.b16 %v1196, %v1180
  %v1661 = vpack.c.b16 %v1197, %v1181
  %v1662 = vpack.c.b16 %v1214, %v1198
  %v1663 = vpack.c.b16 %v1215, %v1199
  %v1664 = vpack.c.b16 %v1216, %v1200
  %v1665 = vpack.c.b16 %v1217, %v1201
  %v1666 = vpack.c.b16 %v1218, %v1202
  %v1667 = vpack.c.b16 %v1219, %v1203
  %v1668 = vpack.c.b16 %v1220, %v1204
  %v1669 = vpack.c.b16 %v1221, %v1205
  %v1670 = vpack.c.b16 %v1222, %v1206
  %v1671 = vpack.c.b16 %v1223, %v1207
  %v1672 = vpack.c.b16 %v1224, %v1208
  %v1673 = vpack.c.b16 %v1225, %v1209
  %v1674 = vpack.c.b16 %v1226, %v1210
  %v1675 = vpack.c.b16 %v1227, %v1211
  %v1676 = vpack.c.b16 %v1228, %v1212
  %v1677 = vpack.c.b16 %v1229, %v1213
  %v1678 = vpack.c.b16 %v1246, %v1230
  %v1679 = vpack.c.b16 %v1247, %v1231
  %v1680 = vpack.c.b16 %v1248, %v1232
  %v1681 = vpack.c.b16 %v1249, %v1233
  %v1682 = vpack.c.b16 %v1250, %v1234
  %v1683 = vpack.c.b16 %v1251, %v1235
  %v1684 = vpack.c.b16 %v1252, %v1236
  %v1685 = vpack.c.b16 %v1253, %v1237
  %v1686 = vpack.c.b16 %v1254, %v1238
  %v1687 = vpack.c.b16 %v1255, %v1239
  %v1688 = vpack.c.b16 %v1256, %v1240
  %v1689 = vpack.c.b16 %v1257, %v1241
  %v1690 = vpack.c.b16 %v1258, %v1242
  %v1691 = vpack.c.b16 %v1259, %v1243
  %v1692 = vpack.c.b16 %v1260, %v1244
  %v1693 = vpack.c.b16 %v1261, %v1245
  %v1694 = vpack.c.b16 %v1278, %v1262
  %v1695 = vpack.c.b16 %v1279, %v1263
  %v1696 = vpack.c.b16 %v1280, %v1264
  %v1697 = vpack.c.b16 %v1281, %v1265
  %v1698 = vpack.c.b16 %v1282, %v1266
  %v1699 = vpack.c.b16 %v1283, %v1267
  %v1700 = vpack.c.b16 %v1284, %v1268
  %v1701 = vpack.c.b16 %v1285, %v1269
  %v1702 = vpack.c.b16 %v1286, %v1270
  %v1703 = vpack.c.b16 %v1287, %v1271
  %v1704 = vpack.c.b16 %v1288, %v1272
  %v1705 = vpack.c.b16 %v1289, %v1273
  %v1706 = vpack.c.b16 %v1290, %v1274
  %v1707 = vpack.c.b16 %v1291, %v1275
  %v1708 = vpack.c.b16 %v1292, %v1276
  %v1709 = vpack.c.b16 %v1293, %v1277
  %v1710 = vpack.c.b16 %v1310, %v1294
  %v1711 = vpack.c.b16 %v1311, %v1295
  %v1712 = vpack.c.b16 %v1312, %v1296
  %v1713 = vpack.c.b16 %v1313, %v1297
  %v1714 = vpack.c.b16 %v1314, %v1298
  %v1715 = vpack.c.b16 %v1315, %v1299
  %v1716 = vpack.c.b16 %v1316, %v1300
  %v1717 = vpack.c.b16 %v1317, %v1301
  %v1718 = vpack.c.b16 %v1318, %v1302
  %v1719 = vpack.c.b16 %v1319, %v1303
  %v1720 = vpack.c.b16 %v1320, %v1304
  %v1721 = vpack.c.b16 %v1321, %v1305
  %v1722 = vpack.c.b16 %v1322, %v1306
  %v1723 = vpack.c.b16 %v1323, %v1307
  %v1724 = vpack.c.b16 %v1324, %v1308
  %v1725 = vpack.c.b16 %v1325, %v1309
  %v1726 = vpack.c.b16 %v1342, %v1326
  %v1727 = vpack.c.b16 %v1343, %v1327
  %v1728 = vpack.c.b16 %v1344, %v1328
  %v1729 = vpack.c.b16 %v1345, %v1329
  %v1730 = vpack.c.b16 %v1346, %v1330
  %v1731 = vpack.c.b16 %v1347, %v1331
  %v1732 = vpack.c.b16 %v1348, %v1332
  %v1733 = vpack.c.b16 %v1349, %v1333
  %v1734 = vpack.c.b16 %v1350, %v1334
  %v1735 = vpack.c.b16 %v1351, %v1335
  %v1736 = vpack.c.b16 %v1352, %v1336
  %v1737 = vpack.c.b16 %v1353, %v1337
  %v1738 = vpack.c.b16 %v1354, %v1338
  %v1739 = vpack.c.b16 %v1355, %v1339
  %v1740 = vpack.c.b16 %v1356, %v1340
  %v1741 = vpack.c.b16 %v1357, %v1341
  %v1742 = vpack.c.b16 %v1374, %v1358
  %v1743 = vpack.c.b16 %v1375, %v1359
  %v1744 = vpack.c.b16 %v1376, %v1360
  %v1745 = vpack.c.b16 %v1377, %v1361
  %v1746 = vpack.c.b16 %v1378, %v1362
  %v1747 = vpack.c.b16 %v1379, %v1363
  %v1748 = vpack.c.b16 %v1380, %v1364
  %v1749 = vpack.c.b16 %v1381, %v1365
  %v1750 = vpack.c.b16 %v1382, %v1366
  %v1751 = vpack.c.b16 %v1383, %v1367
  %v1752 = vpack.c.b16 %v1384, %v1368
  %v1753 = vpack.c.b16 %v1385, %v1369
  %v1754 = vpack.c.b16 %v1386, %v1370
  %v1755 = vpack.c.b16 %v1387, %v1371
  %v1756 = vpack.c.b16 %v1388, %v1372
  %v1757 = vpack.c.b16 %v1389, %v1373
  %v1758 = vpack.c.b16 %v1406, %v1390
  %v1759 = vpack.c.b16 %v1407, %v1391
  %v1760 = vpack.c.b16 %v1408, %v1392
  %v1761 = vpack.c.b16 %v1409, %v1393
  %v1762 = vpack.c.b16 %v1410, %v1394
  %v1763 = vpack.c.b16 %v1411, %v1395
  %v1764 = vpack.c.b16 %v1412, %v1396
  %v1765 = vpack.c.b16 %v1413, %v1397
  %v1766 = vpack.c.b16 %v1414, %v1398
  %v1767 = vpack.c.b16 %v1415, %v1399
  %v1768 = vpack.c.b16 %v1416, %v1400
  %v1769 = vpack.c.b16 %v1417, %v1401
  %v1770 = vpack.c.b16 %v1418, %v1402
  %v1771 = vpack.c.b16 %v1419, %v1403
  %v1772 = vpack.c.b16 %v1420, %v1404
  %v1773 = vpack.c.b16 %v1421, %v1405
  %v1774 = vpack.c.b16 %v1438, %v1422
  %v1775 = vpack.c.b16 %v1439, %v1423
  %v1776 = vpack.c.b16 %v1440, %v1424
  %v1777 = vpack.c.b16 %v1441, %v1425
  %v1778 = vpack.c.b16 %v1442, %v1426
  %v1779 = vpack.c.b16 %v1443, %v1427
  %v1780 = vpack.c.b16 %v1444, %v1428
  %v1781 = vpack.c.b16 %v1445, %v1429
  %v1782 = vpack.c.b16 %v1446, %v1430
  %v1783 = vpack.c.b16 %v1447, %v1431
  %v1784 = vpack.c.b16 %v1448, %v1432
  %v1785 = vpack.c.b16 %v1449, %v1433
  %v1786 = vpack.c.b16 %v1450, %v1434
  %v1787 = vpack.c.b16 %v1451, %v1435
  %v1788 = vpack.c.b16 %v1452, %v1436
  %v1789 = vpack.c.b16 %v1453, %v1437
  %v1790 = vpack.c.b16 %v1470, %v1454
  %v1791 = vpack.c.b16 %v1471, %v1455
  %v1792 = vpack.c.b16 %v1472, %v1456
  %v1793 = vpack.c.b16 %v1473, %v1457
  %v1794 = vpack.c.b16 %v1474, %v1458
  %v1795 = vpack.c.b16 %v1475, %v1459
  %v1796 = vpack.c.b16 %v1476, %v1460
  %v1797 = vpack.c.b16 %v1477, %v1461
  %v1798 = vpack.c.b16 %v1478, %v1462
  %v1799 = vpack.c.b16 %v1479, %v1463
  %v1800 = vpack.c.b16 %v1480, %v1464
  %v1801 = vpack.c.b16 %v1481, %v1465
  %v1802 = vpack.c.b16 %v1482, %v1466
  %v1803 = vpack.c.b16 %v1483, %v1467
  %v1804 = vpack.c.b16 %v1484, %v1468
  %v1805 = vpack.c.b16 %v1485, %v1469
  %v1806 = vpack.c.b16 %v1502, %v1486
  %v1807 = vpack.c.b16 %v1503, %v1487
  %v1808 = vpack.c.b16 %v1504, %v1488
  %v1809 = vpack.c.b16 %v1505, %v1489
  %v1810 = vpack.c.b16 %v1506, %v1490
  %v1811 = vpack.c.b16 %v1507, %v1491
  %v1812 = vpack.c.b16 %v1508, %v1492
  %v1813 = vpack.c.b16 %v1509, %v1493
  %v1814 = vpack.c.b16 %v1510, %v1494
  %v1815 = vpack.c.b16 %v1511, %v1495
  %v1816 = vpack.c.b16 %v1512, %v1496
  %v1817 = vpack.c.b16 %v1513, %v1497
  %v1818 = vpack.c.b16 %v1514, %v1498
  %v1819 = vpack.c.b16 %v1515, %v1499
  %v1820 = vpack.c.b16 %v1516, %v1500
  %v1821 = vpack.c.b16 %v1517, %v1501
  %v1822 = vpack.c.b16 %v1534, %v1518
  %v1823 = vpack.c.b16 %v1535, %v1519
  %v1824 = vpack.c.b16 %v1536, %v1520
  %v1825 = vpack.c.b16 %v1537, %v1521
  %v1826 = vpack.c.b16 %v1538, %v1522
  %v1827 = vpack.c.b16 %v1539, %v1523
  %v1828 = vpack.c.b16 %v1540, %v1524
  %v1829 = vpack.c.b16 %v1541, %v1525
  %v1830 = vpack.c.b16 %v1542, %v1526
  %v1831 = vpack.c.b16 %v1543, %v1527
  %v1832 = vpack.c.b16 %v1544, %v1528
  %v1833 = vpack.c.b16 %v1545, %v1529
  %v1834 = vpack.c.b16 %v1546, %v1530
  %v1835 = vpack.c.b16 %v1547, %v1531
  %v1836 = vpack.c.b16 %v1548, %v1532
  %v1837 = vpack.c.b16 %v1549, %v1533
  %v1838 = vpack.c.b16 %v1566, %v1550
  %v1839 = vpack.c.b16 %v1567, %v1551
  %v1840 = vpack.c.b16 %v1568, %v1552
  %v1841 = vpack.c.b16 %v1569, %v1553
  %v1842 = vpack.c.b16 %v1570, %v1554
  %v1843 = vpack.c.b16 %v1571, %v1555
  %v1844 = vpack.c.b16 %v1572, %v1556
  %v1845 = vpack.c.b16 %v1573, %v1557
  %v1846 = vpack.c.b16 %v1574, %v1558
  %v1847 = vpack.c.b16 %v1575, %v1559
  %v1848 = vpack.c.b16 %v1576, %v1560
  %v1849 = vpack.c.b16 %v1577, %v1561
  %v1850 = vpack.c.b16 %v1578, %v1562
  %v1851 = vpack.c.b16 %v1579, %v1563
  %v1852 = vpack.c.b16 %v1580, %v1564
  %v1853 = vpack.c.b16 %v1581, %v1565
  %v1854 = vpack.c.b16 %v1598, %v1582
  %v1855 = vpack.c.b16 %v1599, %v1583
  %v1856 = vpack.c.b16 %v1600, %v1584
  %v1857 = vpack.c.b16 %v1601, %v1585
  %v1858 = vpack.c.b16 %v1602, %v1586
  %v1859 = vpack.c.b16 %v1603, %v1587
  %v1860 = vpack.c.b16 %v1604, %v1588
  %v1861 = vpack.c.b16 %v1605, %v1589
  %v1862 = vpack.c.b16 %v1606, %v1590
  %v1863 = vpack.c.b16 %v1607, %v1591
  %v1864 = vpack.c.b16 %v1608, %v1592
  %v1865 = vpack.c.b16 %v1609, %v1593
  %v1866 = vpack.c.b16 %v1610, %v1594
  %v1867 = vpack.c.b16 %v1611, %v1595
  %v1868 = vpack.c.b16 %v1612, %v1596
  %v1869 = vpack.c.b16 %v1613, %v1597
  %2126 = vmatpush.bf16.msra.mxu0 %v277
  %2127 = vmatpush.bf16.msra.mxu0 %v276
  %2128 = vmatpush.bf16.msra.mxu0 %v275
  %2129 = vmatpush.bf16.msra.mxu0 %v274
  %2130 = vmatpush.bf16.msra.mxu0 %v273
  %2131 = vmatpush.bf16.msra.mxu0 %v272
  %2132 = vmatpush.bf16.msra.mxu0 %v271
  %2133 = vmatpush.bf16.msra.mxu0 %v270
  %2134 = vmatmul.bf16.gmra.mxu0 %v1614
  %v2135 = vpop.f32.mrf.mxu0
  %v2136 = vadd.f32 %v689, %v2135
  %v2137 = vpop.f32.mrf.mxu0
  %v2138 = vadd.f32 %v694, %v2137
  %2139 = vmatmul.bf16.gmra.mxu0 %v1630
  %v2140 = vpop.f32.mrf.mxu0
  %v2141 = vadd.f32 %v699, %v2140
  %v2142 = vpop.f32.mrf.mxu0
  %v2143 = vadd.f32 %v704, %v2142
  %2144 = vmatmul.bf16.gmra.mxu0 %v1646
  %v2145 = vpop.f32.mrf.mxu0
  %v2146 = vadd.f32 %v709, %v2145
  %v2147 = vpop.f32.mrf.mxu0
  %v2148 = vadd.f32 %v714, %v2147
  %2149 = vmatmul.bf16.gmra.mxu0 %v1662
  %v2150 = vpop.f32.mrf.mxu0
  %v2151 = vadd.f32 %v719, %v2150
  %v2152 = vpop.f32.mrf.mxu0
  %v2153 = vadd.f32 %v724, %v2152
  %2154 = vmatmul.bf16.gmra.mxu0 %v1678
  %v2155 = vpop.f32.mrf.mxu0
  %v2156 = vadd.f32 %v729, %v2155
  %v2157 = vpop.f32.mrf.mxu0
  %v2158 = vadd.f32 %v734, %v2157
  %2159 = vmatmul.bf16.gmra.mxu0 %v1694
  %v2160 = vpop.f32.mrf.mxu0
  %v2161 = vadd.f32 %v739, %v2160
  %v2162 = vpop.f32.mrf.mxu0
  %v2163 = vadd.f32 %v744, %v2162
  %2164 = vmatmul.bf16.gmra.mxu0 %v1710
  %v2165 = vpop.f32.mrf.mxu0
  %v2166 = vadd.f32 %v749, %v2165
  %v2167 = vpop.f32.mrf.mxu0
  %v2168 = vadd.f32 %v754, %v2167
  %2169 = vmatmul.bf16.gmra.mxu0 %v1726
  %v2170 = vpop.f32.mrf.mxu0
  %v2171 = vadd.f32 %v759, %v2170
  %v2172 = vpop.f32.mrf.mxu0
  %v2173 = vadd.f32 %v764, %v2172
  %2174 = vmatmul.bf16.gmra.mxu0 %v1742
  %v2175 = vpop.f32.mrf.mxu0
  %v2176 = vadd.f32 %v769, %v2175
  %v2177 = vpop.f32.mrf.mxu0
  %v2178 = vadd.f32 %v774, %v2177
  %2179 = vmatmul.bf16.gmra.mxu0 %v1758
  %v2180 = vpop.f32.mrf.mxu0
  %v2181 = vadd.f32 %v779, %v2180
  %v2182 = vpop.f32.mrf.mxu0
  %v2183 = vadd.f32 %v784, %v2182
  %2184 = vmatmul.bf16.gmra.mxu0 %v1774
  %v2185 = vpop.f32.mrf.mxu0
  %v2186 = vadd.f32 %v789, %v2185
  %v2187 = vpop.f32.mrf.mxu0
  %v2188 = vadd.f32 %v794, %v2187
  %2189 = vmatmul.bf16.gmra.mxu0 %v1790
  %v2190 = vpop.f32.mrf.mxu0
  %v2191 = vadd.f32 %v799, %v2190
  %v2192 = vpop.f32.mrf.mxu0
  %v2193 = vadd.f32 %v804, %v2192
  %2194 = vmatmul.bf16.gmra.mxu0 %v1806
  %v2195 = vpop.f32.mrf.mxu0
  %v2196 = vadd.f32 %v809, %v2195
  %v2197 = vpop.f32.mrf.mxu0
  %v2198 = vadd.f32 %v814, %v2197
  %2199 = vmatmul.bf16.gmra.mxu0 %v1822
  %v2200 = vpop.f32.mrf.mxu0
  %v2201 = vadd.f32 %v819, %v2200
  %v2202 = vpop.f32.mrf.mxu0
  %v2203 = vadd.f32 %v824, %v2202
  %2204 = vmatmul.bf16.gmra.mxu0 %v1838
  %v2205 = vpop.f32.mrf.mxu0
  %v2206 = vadd.f32 %v829, %v2205
  %v2207 = vpop.f32.mrf.mxu0
  %v2208 = vadd.f32 %v834, %v2207
  %2209 = vmatmul.bf16.gmra.mxu0 %v1854
  %v2210 = vpop.f32.mrf.mxu0
  %v2211 = vadd.f32 %v839, %v2210
  %v2212 = vpop.f32.mrf.mxu0
  %v2213 = vadd.f32 %v844, %v2212
  %2214 = vdwg.mxu0
  %2215 = vmatpush.bf16.msra.mxu0 %v285
  %2216 = vmatpush.bf16.msra.mxu0 %v284
  %2217 = vmatpush.bf16.msra.mxu0 %v283
  %2218 = vmatpush.bf16.msra.mxu0 %v282
  %2219 = vmatpush.bf16.msra.mxu0 %v281
  %2220 = vmatpush.bf16.msra.mxu0 %v280
  %2221 = vmatpush.bf16.msra.mxu0 %v279
  %2222 = vmatpush.bf16.msra.mxu0 %v278
  %2223 = vmatmul.bf16.gmra.mxu0 %v1615
  %v2224 = vpop.f32.mrf.mxu0
  %v2225 = vadd.f32 %v2136, %v2224
  %v2226 = vpop.f32.mrf.mxu0
  %v2227 = vadd.f32 %v2138, %v2226
  %2228 = vmatmul.bf16.gmra.mxu0 %v1631
  %v2229 = vpop.f32.mrf.mxu0
  %v2230 = vadd.f32 %v2141, %v2229
  %v2231 = vpop.f32.mrf.mxu0
  %v2232 = vadd.f32 %v2143, %v2231
  %2233 = vmatmul.bf16.gmra.mxu0 %v1647
  %v2234 = vpop.f32.mrf.mxu0
  %v2235 = vadd.f32 %v2146, %v2234
  %v2236 = vpop.f32.mrf.mxu0
  %v2237 = vadd.f32 %v2148, %v2236
  %2238 = vmatmul.bf16.gmra.mxu0 %v1663
  %v2239 = vpop.f32.mrf.mxu0
  %v2240 = vadd.f32 %v2151, %v2239
  %v2241 = vpop.f32.mrf.mxu0
  %v2242 = vadd.f32 %v2153, %v2241
  %2243 = vmatmul.bf16.gmra.mxu0 %v1679
  %v2244 = vpop.f32.mrf.mxu0
  %v2245 = vadd.f32 %v2156, %v2244
  %v2246 = vpop.f32.mrf.mxu0
  %v2247 = vadd.f32 %v2158, %v2246
  %2248 = vmatmul.bf16.gmra.mxu0 %v1695
  %v2249 = vpop.f32.mrf.mxu0
  %v2250 = vadd.f32 %v2161, %v2249
  %v2251 = vpop.f32.mrf.mxu0
  %v2252 = vadd.f32 %v2163, %v2251
  %2253 = vmatmul.bf16.gmra.mxu0 %v1711
  %v2254 = vpop.f32.mrf.mxu0
  %v2255 = vadd.f32 %v2166, %v2254
  %v2256 = vpop.f32.mrf.mxu0
  %v2257 = vadd.f32 %v2168, %v2256
  %2258 = vmatmul.bf16.gmra.mxu0 %v1727
  %v2259 = vpop.f32.mrf.mxu0
  %v2260 = vadd.f32 %v2171, %v2259
  %v2261 = vpop.f32.mrf.mxu0
  %v2262 = vadd.f32 %v2173, %v2261
  %2263 = vmatmul.bf16.gmra.mxu0 %v1743
  %v2264 = vpop.f32.mrf.mxu0
  %v2265 = vadd.f32 %v2176, %v2264
  %v2266 = vpop.f32.mrf.mxu0
  %v2267 = vadd.f32 %v2178, %v2266
  %2268 = vmatmul.bf16.gmra.mxu0 %v1759
  %v2269 = vpop.f32.mrf.mxu0
  %v2270 = vadd.f32 %v2181, %v2269
  %v2271 = vpop.f32.mrf.mxu0
  %v2272 = vadd.f32 %v2183, %v2271
  %2273 = vmatmul.bf16.gmra.mxu0 %v1775
  %v2274 = vpop.f32.mrf.mxu0
  %v2275 = vadd.f32 %v2186, %v2274
  %v2276 = vpop.f32.mrf.mxu0
  %v2277 = vadd.f32 %v2188, %v2276
  %2278 = vmatmul.bf16.gmra.mxu0 %v1791
  %v2279 = vpop.f32.mrf.mxu0
  %v2280 = vadd.f32 %v2191, %v2279
  %v2281 = vpop.f32.mrf.mxu0
  %v2282 = vadd.f32 %v2193, %v2281
  %2283 = vmatmul.bf16.gmra.mxu0 %v1807
  %v2284 = vpop.f32.mrf.mxu0
  %v2285 = vadd.f32 %v2196, %v2284
  %v2286 = vpop.f32.mrf.mxu0
  %v2287 = vadd.f32 %v2198, %v2286
  %2288 = vmatmul.bf16.gmra.mxu0 %v1823
  %v2289 = vpop.f32.mrf.mxu0
  %v2290 = vadd.f32 %v2201, %v2289
  %v2291 = vpop.f32.mrf.mxu0
  %v2292 = vadd.f32 %v2203, %v2291
  %2293 = vmatmul.bf16.gmra.mxu0 %v1839
  %v2294 = vpop.f32.mrf.mxu0
  %v2295 = vadd.f32 %v2206, %v2294
  %v2296 = vpop.f32.mrf.mxu0
  %v2297 = vadd.f32 %v2208, %v2296
  %2298 = vmatmul.bf16.gmra.mxu0 %v1855
  %v2299 = vpop.f32.mrf.mxu0
  %v2300 = vadd.f32 %v2211, %v2299
  %v2301 = vpop.f32.mrf.mxu0
  %v2302 = vadd.f32 %v2213, %v2301
  %2303 = vdwg.mxu0
  %2304 = vmatpush.bf16.msra.mxu0 %v293
  %2305 = vmatpush.bf16.msra.mxu0 %v292
  %2306 = vmatpush.bf16.msra.mxu0 %v291
  %2307 = vmatpush.bf16.msra.mxu0 %v290
  %2308 = vmatpush.bf16.msra.mxu0 %v289
  %2309 = vmatpush.bf16.msra.mxu0 %v288
  %2310 = vmatpush.bf16.msra.mxu0 %v287
  %2311 = vmatpush.bf16.msra.mxu0 %v286
  %2312 = vmatmul.bf16.gmra.mxu0 %v1616
  %v2313 = vpop.f32.mrf.mxu0
  %v2314 = vadd.f32 %v2225, %v2313
  %v2315 = vpop.f32.mrf.mxu0
  %v2316 = vadd.f32 %v2227, %v2315
  %2317 = vmatmul.bf16.gmra.mxu0 %v1632
  %v2318 = vpop.f32.mrf.mxu0
  %v2319 = vadd.f32 %v2230, %v2318
  %v2320 = vpop.f32.mrf.mxu0
  %v2321 = vadd.f32 %v2232, %v2320
  %2322 = vmatmul.bf16.gmra.mxu0 %v1648
  %v2323 = vpop.f32.mrf.mxu0
  %v2324 = vadd.f32 %v2235, %v2323
  %v2325 = vpop.f32.mrf.mxu0
  %v2326 = vadd.f32 %v2237, %v2325
  %2327 = vmatmul.bf16.gmra.mxu0 %v1664
  %v2328 = vpop.f32.mrf.mxu0
  %v2329 = vadd.f32 %v2240, %v2328
  %v2330 = vpop.f32.mrf.mxu0
  %v2331 = vadd.f32 %v2242, %v2330
  %2332 = vmatmul.bf16.gmra.mxu0 %v1680
  %v2333 = vpop.f32.mrf.mxu0
  %v2334 = vadd.f32 %v2245, %v2333
  %v2335 = vpop.f32.mrf.mxu0
  %v2336 = vadd.f32 %v2247, %v2335
  %2337 = vmatmul.bf16.gmra.mxu0 %v1696
  %v2338 = vpop.f32.mrf.mxu0
  %v2339 = vadd.f32 %v2250, %v2338
  %v2340 = vpop.f32.mrf.mxu0
  %v2341 = vadd.f32 %v2252, %v2340
  %2342 = vmatmul.bf16.gmra.mxu0 %v1712
  %v2343 = vpop.f32.mrf.mxu0
  %v2344 = vadd.f32 %v2255, %v2343
  %v2345 = vpop.f32.mrf.mxu0
  %v2346 = vadd.f32 %v2257, %v2345
  %2347 = vmatmul.bf16.gmra.mxu0 %v1728
  %v2348 = vpop.f32.mrf.mxu0
  %v2349 = vadd.f32 %v2260, %v2348
  %v2350 = vpop.f32.mrf.mxu0
  %v2351 = vadd.f32 %v2262, %v2350
  %2352 = vmatmul.bf16.gmra.mxu0 %v1744
  %v2353 = vpop.f32.mrf.mxu0
  %v2354 = vadd.f32 %v2265, %v2353
  %v2355 = vpop.f32.mrf.mxu0
  %v2356 = vadd.f32 %v2267, %v2355
  %2357 = vmatmul.bf16.gmra.mxu0 %v1760
  %v2358 = vpop.f32.mrf.mxu0
  %v2359 = vadd.f32 %v2270, %v2358
  %v2360 = vpop.f32.mrf.mxu0
  %v2361 = vadd.f32 %v2272, %v2360
  %2362 = vmatmul.bf16.gmra.mxu0 %v1776
  %v2363 = vpop.f32.mrf.mxu0
  %v2364 = vadd.f32 %v2275, %v2363
  %v2365 = vpop.f32.mrf.mxu0
  %v2366 = vadd.f32 %v2277, %v2365
  %2367 = vmatmul.bf16.gmra.mxu0 %v1792
  %v2368 = vpop.f32.mrf.mxu0
  %v2369 = vadd.f32 %v2280, %v2368
  %v2370 = vpop.f32.mrf.mxu0
  %v2371 = vadd.f32 %v2282, %v2370
  %2372 = vmatmul.bf16.gmra.mxu0 %v1808
  %v2373 = vpop.f32.mrf.mxu0
  %v2374 = vadd.f32 %v2285, %v2373
  %v2375 = vpop.f32.mrf.mxu0
  %v2376 = vadd.f32 %v2287, %v2375
  %2377 = vmatmul.bf16.gmra.mxu0 %v1824
  %v2378 = vpop.f32.mrf.mxu0
  %v2379 = vadd.f32 %v2290, %v2378
  %v2380 = vpop.f32.mrf.mxu0
  %v2381 = vadd.f32 %v2292, %v2380
  %2382 = vmatmul.bf16.gmra.mxu0 %v1840
  %v2383 = vpop.f32.mrf.mxu0
  %v2384 = vadd.f32 %v2295, %v2383
  %v2385 = vpop.f32.mrf.mxu0
  %v2386 = vadd.f32 %v2297, %v2385
  %2387 = vmatmul.bf16.gmra.mxu0 %v1856
  %v2388 = vpop.f32.mrf.mxu0
  %v2389 = vadd.f32 %v2300, %v2388
  %v2390 = vpop.f32.mrf.mxu0
  %v2391 = vadd.f32 %v2302, %v2390
  %2392 = vdwg.mxu0
  %2393 = vmatpush.bf16.msra.mxu0 %v301
  %2394 = vmatpush.bf16.msra.mxu0 %v300
  %2395 = vmatpush.bf16.msra.mxu0 %v299
  %2396 = vmatpush.bf16.msra.mxu0 %v298
  %2397 = vmatpush.bf16.msra.mxu0 %v297
  %2398 = vmatpush.bf16.msra.mxu0 %v296
  %2399 = vmatpush.bf16.msra.mxu0 %v295
  %2400 = vmatpush.bf16.msra.mxu0 %v294
  %2401 = vmatmul.bf16.gmra.mxu0 %v1617
  %v2402 = vpop.f32.mrf.mxu0
  %v2403 = vadd.f32 %v2314, %v2402
  %v2404 = vpop.f32.mrf.mxu0
  %v2405 = vadd.f32 %v2316, %v2404
  %2406 = vmatmul.bf16.gmra.mxu0 %v1633
  %v2407 = vpop.f32.mrf.mxu0
  %v2408 = vadd.f32 %v2319, %v2407
  %v2409 = vpop.f32.mrf.mxu0
  %v2410 = vadd.f32 %v2321, %v2409
  %2411 = vmatmul.bf16.gmra.mxu0 %v1649
  %v2412 = vpop.f32.mrf.mxu0
  %v2413 = vadd.f32 %v2324, %v2412
  %v2414 = vpop.f32.mrf.mxu0
  %v2415 = vadd.f32 %v2326, %v2414
  %2416 = vmatmul.bf16.gmra.mxu0 %v1665
  %v2417 = vpop.f32.mrf.mxu0
  %v2418 = vadd.f32 %v2329, %v2417
  %v2419 = vpop.f32.mrf.mxu0
  %v2420 = vadd.f32 %v2331, %v2419
  %2421 = vmatmul.bf16.gmra.mxu0 %v1681
  %v2422 = vpop.f32.mrf.mxu0
  %v2423 = vadd.f32 %v2334, %v2422
  %v2424 = vpop.f32.mrf.mxu0
  %v2425 = vadd.f32 %v2336, %v2424
  %2426 = vmatmul.bf16.gmra.mxu0 %v1697
  %v2427 = vpop.f32.mrf.mxu0
  %v2428 = vadd.f32 %v2339, %v2427
  %v2429 = vpop.f32.mrf.mxu0
  %v2430 = vadd.f32 %v2341, %v2429
  %2431 = vmatmul.bf16.gmra.mxu0 %v1713
  %v2432 = vpop.f32.mrf.mxu0
  %v2433 = vadd.f32 %v2344, %v2432
  %v2434 = vpop.f32.mrf.mxu0
  %v2435 = vadd.f32 %v2346, %v2434
  %2436 = vmatmul.bf16.gmra.mxu0 %v1729
  %v2437 = vpop.f32.mrf.mxu0
  %v2438 = vadd.f32 %v2349, %v2437
  %v2439 = vpop.f32.mrf.mxu0
  %v2440 = vadd.f32 %v2351, %v2439
  %2441 = vmatmul.bf16.gmra.mxu0 %v1745
  %v2442 = vpop.f32.mrf.mxu0
  %v2443 = vadd.f32 %v2354, %v2442
  %v2444 = vpop.f32.mrf.mxu0
  %v2445 = vadd.f32 %v2356, %v2444
  %2446 = vmatmul.bf16.gmra.mxu0 %v1761
  %v2447 = vpop.f32.mrf.mxu0
  %v2448 = vadd.f32 %v2359, %v2447
  %v2449 = vpop.f32.mrf.mxu0
  %v2450 = vadd.f32 %v2361, %v2449
  %2451 = vmatmul.bf16.gmra.mxu0 %v1777
  %v2452 = vpop.f32.mrf.mxu0
  %v2453 = vadd.f32 %v2364, %v2452
  %v2454 = vpop.f32.mrf.mxu0
  %v2455 = vadd.f32 %v2366, %v2454
  %2456 = vmatmul.bf16.gmra.mxu0 %v1793
  %v2457 = vpop.f32.mrf.mxu0
  %v2458 = vadd.f32 %v2369, %v2457
  %v2459 = vpop.f32.mrf.mxu0
  %v2460 = vadd.f32 %v2371, %v2459
  %2461 = vmatmul.bf16.gmra.mxu0 %v1809
  %v2462 = vpop.f32.mrf.mxu0
  %v2463 = vadd.f32 %v2374, %v2462
  %v2464 = vpop.f32.mrf.mxu0
  %v2465 = vadd.f32 %v2376, %v2464
  %2466 = vmatmul.bf16.gmra.mxu0 %v1825
  %v2467 = vpop.f32.mrf.mxu0
  %v2468 = vadd.f32 %v2379, %v2467
  %v2469 = vpop.f32.mrf.mxu0
  %v2470 = vadd.f32 %v2381, %v2469
  %2471 = vmatmul.bf16.gmra.mxu0 %v1841
  %v2472 = vpop.f32.mrf.mxu0
  %v2473 = vadd.f32 %v2384, %v2472
  %v2474 = vpop.f32.mrf.mxu0
  %v2475 = vadd.f32 %v2386, %v2474
  %2476 = vmatmul.bf16.gmra.mxu0 %v1857
  %v2477 = vpop.f32.mrf.mxu0
  %v2478 = vadd.f32 %v2389, %v2477
  %v2479 = vpop.f32.mrf.mxu0
  %v2480 = vadd.f32 %v2391, %v2479
  %2481 = vdwg.mxu0
  %2482 = vmatpush.bf16.msra.mxu0 %v309
  %2483 = vmatpush.bf16.msra.mxu0 %v308
  %2484 = vmatpush.bf16.msra.mxu0 %v307
  %2485 = vmatpush.bf16.msra.mxu0 %v306
  %2486 = vmatpush.bf16.msra.mxu0 %v305
  %2487 = vmatpush.bf16.msra.mxu0 %v304
  %2488 = vmatpush.bf16.msra.mxu0 %v303
  %2489 = vmatpush.bf16.msra.mxu0 %v302
  %2490 = vmatmul.bf16.gmra.mxu0 %v1618
  %v2491 = vpop.f32.mrf.mxu0
  %v2492 = vadd.f32 %v2403, %v2491
  %v2493 = vpop.f32.mrf.mxu0
  %v2494 = vadd.f32 %v2405, %v2493
  %2495 = vmatmul.bf16.gmra.mxu0 %v1634
  %v2496 = vpop.f32.mrf.mxu0
  %v2497 = vadd.f32 %v2408, %v2496
  %v2498 = vpop.f32.mrf.mxu0
  %v2499 = vadd.f32 %v2410, %v2498
  %2500 = vmatmul.bf16.gmra.mxu0 %v1650
  %v2501 = vpop.f32.mrf.mxu0
  %v2502 = vadd.f32 %v2413, %v2501
  %v2503 = vpop.f32.mrf.mxu0
  %v2504 = vadd.f32 %v2415, %v2503
  %2505 = vmatmul.bf16.gmra.mxu0 %v1666
  %v2506 = vpop.f32.mrf.mxu0
  %v2507 = vadd.f32 %v2418, %v2506
  %v2508 = vpop.f32.mrf.mxu0
  %v2509 = vadd.f32 %v2420, %v2508
  %2510 = vmatmul.bf16.gmra.mxu0 %v1682
  %v2511 = vpop.f32.mrf.mxu0
  %v2512 = vadd.f32 %v2423, %v2511
  %v2513 = vpop.f32.mrf.mxu0
  %v2514 = vadd.f32 %v2425, %v2513
  %2515 = vmatmul.bf16.gmra.mxu0 %v1698
  %v2516 = vpop.f32.mrf.mxu0
  %v2517 = vadd.f32 %v2428, %v2516
  %v2518 = vpop.f32.mrf.mxu0
  %v2519 = vadd.f32 %v2430, %v2518
  %2520 = vmatmul.bf16.gmra.mxu0 %v1714
  %v2521 = vpop.f32.mrf.mxu0
  %v2522 = vadd.f32 %v2433, %v2521
  %v2523 = vpop.f32.mrf.mxu0
  %v2524 = vadd.f32 %v2435, %v2523
  %2525 = vmatmul.bf16.gmra.mxu0 %v1730
  %v2526 = vpop.f32.mrf.mxu0
  %v2527 = vadd.f32 %v2438, %v2526
  %v2528 = vpop.f32.mrf.mxu0
  %v2529 = vadd.f32 %v2440, %v2528
  %2530 = vmatmul.bf16.gmra.mxu0 %v1746
  %v2531 = vpop.f32.mrf.mxu0
  %v2532 = vadd.f32 %v2443, %v2531
  %v2533 = vpop.f32.mrf.mxu0
  %v2534 = vadd.f32 %v2445, %v2533
  %2535 = vmatmul.bf16.gmra.mxu0 %v1762
  %v2536 = vpop.f32.mrf.mxu0
  %v2537 = vadd.f32 %v2448, %v2536
  %v2538 = vpop.f32.mrf.mxu0
  %v2539 = vadd.f32 %v2450, %v2538
  %2540 = vmatmul.bf16.gmra.mxu0 %v1778
  %v2541 = vpop.f32.mrf.mxu0
  %v2542 = vadd.f32 %v2453, %v2541
  %v2543 = vpop.f32.mrf.mxu0
  %v2544 = vadd.f32 %v2455, %v2543
  %2545 = vmatmul.bf16.gmra.mxu0 %v1794
  %v2546 = vpop.f32.mrf.mxu0
  %v2547 = vadd.f32 %v2458, %v2546
  %v2548 = vpop.f32.mrf.mxu0
  %v2549 = vadd.f32 %v2460, %v2548
  %2550 = vmatmul.bf16.gmra.mxu0 %v1810
  %v2551 = vpop.f32.mrf.mxu0
  %v2552 = vadd.f32 %v2463, %v2551
  %v2553 = vpop.f32.mrf.mxu0
  %v2554 = vadd.f32 %v2465, %v2553
  %2555 = vmatmul.bf16.gmra.mxu0 %v1826
  %v2556 = vpop.f32.mrf.mxu0
  %v2557 = vadd.f32 %v2468, %v2556
  %v2558 = vpop.f32.mrf.mxu0
  %v2559 = vadd.f32 %v2470, %v2558
  %2560 = vmatmul.bf16.gmra.mxu0 %v1842
  %v2561 = vpop.f32.mrf.mxu0
  %v2562 = vadd.f32 %v2473, %v2561
  %v2563 = vpop.f32.mrf.mxu0
  %v2564 = vadd.f32 %v2475, %v2563
  %2565 = vmatmul.bf16.gmra.mxu0 %v1858
  %v2566 = vpop.f32.mrf.mxu0
  %v2567 = vadd.f32 %v2478, %v2566
  %v2568 = vpop.f32.mrf.mxu0
  %v2569 = vadd.f32 %v2480, %v2568
  %2570 = vdwg.mxu0
  %2571 = vmatpush.bf16.msra.mxu0 %v317
  %2572 = vmatpush.bf16.msra.mxu0 %v316
  %2573 = vmatpush.bf16.msra.mxu0 %v315
  %2574 = vmatpush.bf16.msra.mxu0 %v314
  %2575 = vmatpush.bf16.msra.mxu0 %v313
  %2576 = vmatpush.bf16.msra.mxu0 %v312
  %2577 = vmatpush.bf16.msra.mxu0 %v311
  %2578 = vmatpush.bf16.msra.mxu0 %v310
  %2579 = vmatmul.bf16.gmra.mxu0 %v1619
  %v2580 = vpop.f32.mrf.mxu0
  %v2581 = vadd.f32 %v2492, %v2580
  %v2582 = vpop.f32.mrf.mxu0
  %v2583 = vadd.f32 %v2494, %v2582
  %2584 = vmatmul.bf16.gmra.mxu0 %v1635
  %v2585 = vpop.f32.mrf.mxu0
  %v2586 = vadd.f32 %v2497, %v2585
  %v2587 = vpop.f32.mrf.mxu0
  %v2588 = vadd.f32 %v2499, %v2587
  %2589 = vmatmul.bf16.gmra.mxu0 %v1651
  %v2590 = vpop.f32.mrf.mxu0
  %v2591 = vadd.f32 %v2502, %v2590
  %v2592 = vpop.f32.mrf.mxu0
  %v2593 = vadd.f32 %v2504, %v2592
  %2594 = vmatmul.bf16.gmra.mxu0 %v1667
  %v2595 = vpop.f32.mrf.mxu0
  %v2596 = vadd.f32 %v2507, %v2595
  %v2597 = vpop.f32.mrf.mxu0
  %v2598 = vadd.f32 %v2509, %v2597
  %2599 = vmatmul.bf16.gmra.mxu0 %v1683
  %v2600 = vpop.f32.mrf.mxu0
  %v2601 = vadd.f32 %v2512, %v2600
  %v2602 = vpop.f32.mrf.mxu0
  %v2603 = vadd.f32 %v2514, %v2602
  %2604 = vmatmul.bf16.gmra.mxu0 %v1699
  %v2605 = vpop.f32.mrf.mxu0
  %v2606 = vadd.f32 %v2517, %v2605
  %v2607 = vpop.f32.mrf.mxu0
  %v2608 = vadd.f32 %v2519, %v2607
  %2609 = vmatmul.bf16.gmra.mxu0 %v1715
  %v2610 = vpop.f32.mrf.mxu0
  %v2611 = vadd.f32 %v2522, %v2610
  %v2612 = vpop.f32.mrf.mxu0
  %v2613 = vadd.f32 %v2524, %v2612
  %2614 = vmatmul.bf16.gmra.mxu0 %v1731
  %v2615 = vpop.f32.mrf.mxu0
  %v2616 = vadd.f32 %v2527, %v2615
  %v2617 = vpop.f32.mrf.mxu0
  %v2618 = vadd.f32 %v2529, %v2617
  %2619 = vmatmul.bf16.gmra.mxu0 %v1747
  %v2620 = vpop.f32.mrf.mxu0
  %v2621 = vadd.f32 %v2532, %v2620
  %v2622 = vpop.f32.mrf.mxu0
  %v2623 = vadd.f32 %v2534, %v2622
  %2624 = vmatmul.bf16.gmra.mxu0 %v1763
  %v2625 = vpop.f32.mrf.mxu0
  %v2626 = vadd.f32 %v2537, %v2625
  %v2627 = vpop.f32.mrf.mxu0
  %v2628 = vadd.f32 %v2539, %v2627
  %2629 = vmatmul.bf16.gmra.mxu0 %v1779
  %v2630 = vpop.f32.mrf.mxu0
  %v2631 = vadd.f32 %v2542, %v2630
  %v2632 = vpop.f32.mrf.mxu0
  %v2633 = vadd.f32 %v2544, %v2632
  %2634 = vmatmul.bf16.gmra.mxu0 %v1795
  %v2635 = vpop.f32.mrf.mxu0
  %v2636 = vadd.f32 %v2547, %v2635
  %v2637 = vpop.f32.mrf.mxu0
  %v2638 = vadd.f32 %v2549, %v2637
  %2639 = vmatmul.bf16.gmra.mxu0 %v1811
  %v2640 = vpop.f32.mrf.mxu0
  %v2641 = vadd.f32 %v2552, %v2640
  %v2642 = vpop.f32.mrf.mxu0
  %v2643 = vadd.f32 %v2554, %v2642
  %2644 = vmatmul.bf16.gmra.mxu0 %v1827
  %v2645 = vpop.f32.mrf.mxu0
  %v2646 = vadd.f32 %v2557, %v2645
  %v2647 = vpop.f32.mrf.mxu0
  %v2648 = vadd.f32 %v2559, %v2647
  %2649 = vmatmul.bf16.gmra.mxu0 %v1843
  %v2650 = vpop.f32.mrf.mxu0
  %v2651 = vadd.f32 %v2562, %v2650
  %v2652 = vpop.f32.mrf.mxu0
  %v2653 = vadd.f32 %v2564, %v2652
  %2654 = vmatmul.bf16.gmra.mxu0 %v1859
  %v2655 = vpop.f32.mrf.mxu0
  %v2656 = vadd.f32 %v2567, %v2655
  %v2657 = vpop.f32.mrf.mxu0
  %v2658 = vadd.f32 %v2569, %v2657
  %2659 = vdwg.mxu0
  %2660 = vmatpush.bf16.msra.mxu0 %v325
  %2661 = vmatpush.bf16.msra.mxu0 %v324
  %2662 = vmatpush.bf16.msra.mxu0 %v323
  %2663 = vmatpush.bf16.msra.mxu0 %v322
  %2664 = vmatpush.bf16.msra.mxu0 %v321
  %2665 = vmatpush.bf16.msra.mxu0 %v320
  %2666 = vmatpush.bf16.msra.mxu0 %v319
  %2667 = vmatpush.bf16.msra.mxu0 %v318
  %2668 = vmatmul.bf16.gmra.mxu0 %v1620
  %v2669 = vpop.f32.mrf.mxu0
  %v2670 = vadd.f32 %v2581, %v2669
  %v2671 = vpop.f32.mrf.mxu0
  %v2672 = vadd.f32 %v2583, %v2671
  %2673 = vmatmul.bf16.gmra.mxu0 %v1636
  %v2674 = vpop.f32.mrf.mxu0
  %v2675 = vadd.f32 %v2586, %v2674
  %v2676 = vpop.f32.mrf.mxu0
  %v2677 = vadd.f32 %v2588, %v2676
  %2678 = vmatmul.bf16.gmra.mxu0 %v1652
  %v2679 = vpop.f32.mrf.mxu0
  %v2680 = vadd.f32 %v2591, %v2679
  %v2681 = vpop.f32.mrf.mxu0
  %v2682 = vadd.f32 %v2593, %v2681
  %2683 = vmatmul.bf16.gmra.mxu0 %v1668
  %v2684 = vpop.f32.mrf.mxu0
  %v2685 = vadd.f32 %v2596, %v2684
  %v2686 = vpop.f32.mrf.mxu0
  %v2687 = vadd.f32 %v2598, %v2686
  %2688 = vmatmul.bf16.gmra.mxu0 %v1684
  %v2689 = vpop.f32.mrf.mxu0
  %v2690 = vadd.f32 %v2601, %v2689
  %v2691 = vpop.f32.mrf.mxu0
  %v2692 = vadd.f32 %v2603, %v2691
  %2693 = vmatmul.bf16.gmra.mxu0 %v1700
  %v2694 = vpop.f32.mrf.mxu0
  %v2695 = vadd.f32 %v2606, %v2694
  %v2696 = vpop.f32.mrf.mxu0
  %v2697 = vadd.f32 %v2608, %v2696
  %2698 = vmatmul.bf16.gmra.mxu0 %v1716
  %v2699 = vpop.f32.mrf.mxu0
  %v2700 = vadd.f32 %v2611, %v2699
  %v2701 = vpop.f32.mrf.mxu0
  %v2702 = vadd.f32 %v2613, %v2701
  %2703 = vmatmul.bf16.gmra.mxu0 %v1732
  %v2704 = vpop.f32.mrf.mxu0
  %v2705 = vadd.f32 %v2616, %v2704
  %v2706 = vpop.f32.mrf.mxu0
  %v2707 = vadd.f32 %v2618, %v2706
  %2708 = vmatmul.bf16.gmra.mxu0 %v1748
  %v2709 = vpop.f32.mrf.mxu0
  %v2710 = vadd.f32 %v2621, %v2709
  %v2711 = vpop.f32.mrf.mxu0
  %v2712 = vadd.f32 %v2623, %v2711
  %2713 = vmatmul.bf16.gmra.mxu0 %v1764
  %v2714 = vpop.f32.mrf.mxu0
  %v2715 = vadd.f32 %v2626, %v2714
  %v2716 = vpop.f32.mrf.mxu0
  %v2717 = vadd.f32 %v2628, %v2716
  %2718 = vmatmul.bf16.gmra.mxu0 %v1780
  %v2719 = vpop.f32.mrf.mxu0
  %v2720 = vadd.f32 %v2631, %v2719
  %v2721 = vpop.f32.mrf.mxu0
  %v2722 = vadd.f32 %v2633, %v2721
  %2723 = vmatmul.bf16.gmra.mxu0 %v1796
  %v2724 = vpop.f32.mrf.mxu0
  %v2725 = vadd.f32 %v2636, %v2724
  %v2726 = vpop.f32.mrf.mxu0
  %v2727 = vadd.f32 %v2638, %v2726
  %2728 = vmatmul.bf16.gmra.mxu0 %v1812
  %v2729 = vpop.f32.mrf.mxu0
  %v2730 = vadd.f32 %v2641, %v2729
  %v2731 = vpop.f32.mrf.mxu0
  %v2732 = vadd.f32 %v2643, %v2731
  %2733 = vmatmul.bf16.gmra.mxu0 %v1828
  %v2734 = vpop.f32.mrf.mxu0
  %v2735 = vadd.f32 %v2646, %v2734
  %v2736 = vpop.f32.mrf.mxu0
  %v2737 = vadd.f32 %v2648, %v2736
  %2738 = vmatmul.bf16.gmra.mxu0 %v1844
  %v2739 = vpop.f32.mrf.mxu0
  %v2740 = vadd.f32 %v2651, %v2739
  %v2741 = vpop.f32.mrf.mxu0
  %v2742 = vadd.f32 %v2653, %v2741
  %2743 = vmatmul.bf16.gmra.mxu0 %v1860
  %v2744 = vpop.f32.mrf.mxu0
  %v2745 = vadd.f32 %v2656, %v2744
  %v2746 = vpop.f32.mrf.mxu0
  %v2747 = vadd.f32 %v2658, %v2746
  %2748 = vdwg.mxu0
  %2749 = vmatpush.bf16.msra.mxu0 %v333
  %2750 = vmatpush.bf16.msra.mxu0 %v332
  %2751 = vmatpush.bf16.msra.mxu0 %v331
  %2752 = vmatpush.bf16.msra.mxu0 %v330
  %2753 = vmatpush.bf16.msra.mxu0 %v329
  %2754 = vmatpush.bf16.msra.mxu0 %v328
  %2755 = vmatpush.bf16.msra.mxu0 %v327
  %2756 = vmatpush.bf16.msra.mxu0 %v326
  %2757 = vmatmul.bf16.gmra.mxu0 %v1621
  %v2758 = vpop.f32.mrf.mxu0
  %v2759 = vadd.f32 %v2670, %v2758
  %v2760 = vpop.f32.mrf.mxu0
  %v2761 = vadd.f32 %v2672, %v2760
  %2762 = vmatmul.bf16.gmra.mxu0 %v1637
  %v2763 = vpop.f32.mrf.mxu0
  %v2764 = vadd.f32 %v2675, %v2763
  %v2765 = vpop.f32.mrf.mxu0
  %v2766 = vadd.f32 %v2677, %v2765
  %2767 = vmatmul.bf16.gmra.mxu0 %v1653
  %v2768 = vpop.f32.mrf.mxu0
  %v2769 = vadd.f32 %v2680, %v2768
  %v2770 = vpop.f32.mrf.mxu0
  %v2771 = vadd.f32 %v2682, %v2770
  %2772 = vmatmul.bf16.gmra.mxu0 %v1669
  %v2773 = vpop.f32.mrf.mxu0
  %v2774 = vadd.f32 %v2685, %v2773
  %v2775 = vpop.f32.mrf.mxu0
  %v2776 = vadd.f32 %v2687, %v2775
  %2777 = vmatmul.bf16.gmra.mxu0 %v1685
  %v2778 = vpop.f32.mrf.mxu0
  %v2779 = vadd.f32 %v2690, %v2778
  %v2780 = vpop.f32.mrf.mxu0
  %v2781 = vadd.f32 %v2692, %v2780
  %2782 = vmatmul.bf16.gmra.mxu0 %v1701
  %v2783 = vpop.f32.mrf.mxu0
  %v2784 = vadd.f32 %v2695, %v2783
  %v2785 = vpop.f32.mrf.mxu0
  %v2786 = vadd.f32 %v2697, %v2785
  %2787 = vmatmul.bf16.gmra.mxu0 %v1717
  %v2788 = vpop.f32.mrf.mxu0
  %v2789 = vadd.f32 %v2700, %v2788
  %v2790 = vpop.f32.mrf.mxu0
  %v2791 = vadd.f32 %v2702, %v2790
  %2792 = vmatmul.bf16.gmra.mxu0 %v1733
  %v2793 = vpop.f32.mrf.mxu0
  %v2794 = vadd.f32 %v2705, %v2793
  %v2795 = vpop.f32.mrf.mxu0
  %v2796 = vadd.f32 %v2707, %v2795
  %2797 = vmatmul.bf16.gmra.mxu0 %v1749
  %v2798 = vpop.f32.mrf.mxu0
  %v2799 = vadd.f32 %v2710, %v2798
  %v2800 = vpop.f32.mrf.mxu0
  %v2801 = vadd.f32 %v2712, %v2800
  %2802 = vmatmul.bf16.gmra.mxu0 %v1765
  %v2803 = vpop.f32.mrf.mxu0
  %v2804 = vadd.f32 %v2715, %v2803
  %v2805 = vpop.f32.mrf.mxu0
  %v2806 = vadd.f32 %v2717, %v2805
  %2807 = vmatmul.bf16.gmra.mxu0 %v1781
  %v2808 = vpop.f32.mrf.mxu0
  %v2809 = vadd.f32 %v2720, %v2808
  %v2810 = vpop.f32.mrf.mxu0
  %v2811 = vadd.f32 %v2722, %v2810
  %2812 = vmatmul.bf16.gmra.mxu0 %v1797
  %v2813 = vpop.f32.mrf.mxu0
  %v2814 = vadd.f32 %v2725, %v2813
  %v2815 = vpop.f32.mrf.mxu0
  %v2816 = vadd.f32 %v2727, %v2815
  %2817 = vmatmul.bf16.gmra.mxu0 %v1813
  %v2818 = vpop.f32.mrf.mxu0
  %v2819 = vadd.f32 %v2730, %v2818
  %v2820 = vpop.f32.mrf.mxu0
  %v2821 = vadd.f32 %v2732, %v2820
  %2822 = vmatmul.bf16.gmra.mxu0 %v1829
  %v2823 = vpop.f32.mrf.mxu0
  %v2824 = vadd.f32 %v2735, %v2823
  %v2825 = vpop.f32.mrf.mxu0
  %v2826 = vadd.f32 %v2737, %v2825
  %2827 = vmatmul.bf16.gmra.mxu0 %v1845
  %v2828 = vpop.f32.mrf.mxu0
  %v2829 = vadd.f32 %v2740, %v2828
  %v2830 = vpop.f32.mrf.mxu0
  %v2831 = vadd.f32 %v2742, %v2830
  %2832 = vmatmul.bf16.gmra.mxu0 %v1861
  %v2833 = vpop.f32.mrf.mxu0
  %v2834 = vadd.f32 %v2745, %v2833
  %v2835 = vpop.f32.mrf.mxu0
  %v2836 = vadd.f32 %v2747, %v2835
  %2837 = vdwg.mxu0
  %2838 = vmatpush.bf16.msra.mxu0 %v341
  %2839 = vmatpush.bf16.msra.mxu0 %v340
  %2840 = vmatpush.bf16.msra.mxu0 %v339
  %2841 = vmatpush.bf16.msra.mxu0 %v338
  %2842 = vmatpush.bf16.msra.mxu0 %v337
  %2843 = vmatpush.bf16.msra.mxu0 %v336
  %2844 = vmatpush.bf16.msra.mxu0 %v335
  %2845 = vmatpush.bf16.msra.mxu0 %v334
  %2846 = vmatmul.bf16.gmra.mxu0 %v1622
  %v2847 = vpop.f32.mrf.mxu0
  %v2848 = vadd.f32 %v2759, %v2847
  %v2849 = vpop.f32.mrf.mxu0
  %v2850 = vadd.f32 %v2761, %v2849
  %2851 = vmatmul.bf16.gmra.mxu0 %v1638
  %v2852 = vpop.f32.mrf.mxu0
  %v2853 = vadd.f32 %v2764, %v2852
  %v2854 = vpop.f32.mrf.mxu0
  %v2855 = vadd.f32 %v2766, %v2854
  %2856 = vmatmul.bf16.gmra.mxu0 %v1654
  %v2857 = vpop.f32.mrf.mxu0
  %v2858 = vadd.f32 %v2769, %v2857
  %v2859 = vpop.f32.mrf.mxu0
  %v2860 = vadd.f32 %v2771, %v2859
  %2861 = vmatmul.bf16.gmra.mxu0 %v1670
  %v2862 = vpop.f32.mrf.mxu0
  %v2863 = vadd.f32 %v2774, %v2862
  %v2864 = vpop.f32.mrf.mxu0
  %v2865 = vadd.f32 %v2776, %v2864
  %2866 = vmatmul.bf16.gmra.mxu0 %v1686
  %v2867 = vpop.f32.mrf.mxu0
  %v2868 = vadd.f32 %v2779, %v2867
  %v2869 = vpop.f32.mrf.mxu0
  %v2870 = vadd.f32 %v2781, %v2869
  %2871 = vmatmul.bf16.gmra.mxu0 %v1702
  %v2872 = vpop.f32.mrf.mxu0
  %v2873 = vadd.f32 %v2784, %v2872
  %v2874 = vpop.f32.mrf.mxu0
  %v2875 = vadd.f32 %v2786, %v2874
  %2876 = vmatmul.bf16.gmra.mxu0 %v1718
  %v2877 = vpop.f32.mrf.mxu0
  %v2878 = vadd.f32 %v2789, %v2877
  %v2879 = vpop.f32.mrf.mxu0
  %v2880 = vadd.f32 %v2791, %v2879
  %2881 = vmatmul.bf16.gmra.mxu0 %v1734
  %v2882 = vpop.f32.mrf.mxu0
  %v2883 = vadd.f32 %v2794, %v2882
  %v2884 = vpop.f32.mrf.mxu0
  %v2885 = vadd.f32 %v2796, %v2884
  %2886 = vmatmul.bf16.gmra.mxu0 %v1750
  %v2887 = vpop.f32.mrf.mxu0
  %v2888 = vadd.f32 %v2799, %v2887
  %v2889 = vpop.f32.mrf.mxu0
  %v2890 = vadd.f32 %v2801, %v2889
  %2891 = vmatmul.bf16.gmra.mxu0 %v1766
  %v2892 = vpop.f32.mrf.mxu0
  %v2893 = vadd.f32 %v2804, %v2892
  %v2894 = vpop.f32.mrf.mxu0
  %v2895 = vadd.f32 %v2806, %v2894
  %2896 = vmatmul.bf16.gmra.mxu0 %v1782
  %v2897 = vpop.f32.mrf.mxu0
  %v2898 = vadd.f32 %v2809, %v2897
  %v2899 = vpop.f32.mrf.mxu0
  %v2900 = vadd.f32 %v2811, %v2899
  %2901 = vmatmul.bf16.gmra.mxu0 %v1798
  %v2902 = vpop.f32.mrf.mxu0
  %v2903 = vadd.f32 %v2814, %v2902
  %v2904 = vpop.f32.mrf.mxu0
  %v2905 = vadd.f32 %v2816, %v2904
  %2906 = vmatmul.bf16.gmra.mxu0 %v1814
  %v2907 = vpop.f32.mrf.mxu0
  %v2908 = vadd.f32 %v2819, %v2907
  %v2909 = vpop.f32.mrf.mxu0
  %v2910 = vadd.f32 %v2821, %v2909
  %2911 = vmatmul.bf16.gmra.mxu0 %v1830
  %v2912 = vpop.f32.mrf.mxu0
  %v2913 = vadd.f32 %v2824, %v2912
  %v2914 = vpop.f32.mrf.mxu0
  %v2915 = vadd.f32 %v2826, %v2914
  %2916 = vmatmul.bf16.gmra.mxu0 %v1846
  %v2917 = vpop.f32.mrf.mxu0
  %v2918 = vadd.f32 %v2829, %v2917
  %v2919 = vpop.f32.mrf.mxu0
  %v2920 = vadd.f32 %v2831, %v2919
  %2921 = vmatmul.bf16.gmra.mxu0 %v1862
  %v2922 = vpop.f32.mrf.mxu0
  %v2923 = vadd.f32 %v2834, %v2922
  %v2924 = vpop.f32.mrf.mxu0
  %v2925 = vadd.f32 %v2836, %v2924
  %2926 = vdwg.mxu0
  %2927 = vmatpush.bf16.msra.mxu0 %v349
  %2928 = vmatpush.bf16.msra.mxu0 %v348
  %2929 = vmatpush.bf16.msra.mxu0 %v347
  %2930 = vmatpush.bf16.msra.mxu0 %v346
  %2931 = vmatpush.bf16.msra.mxu0 %v345
  %2932 = vmatpush.bf16.msra.mxu0 %v344
  %2933 = vmatpush.bf16.msra.mxu0 %v343
  %2934 = vmatpush.bf16.msra.mxu0 %v342
  %2935 = vmatmul.bf16.gmra.mxu0 %v1623
  %v2936 = vpop.f32.mrf.mxu0
  %v2937 = vadd.f32 %v2848, %v2936
  %v2938 = vpop.f32.mrf.mxu0
  %v2939 = vadd.f32 %v2850, %v2938
  %2940 = vmatmul.bf16.gmra.mxu0 %v1639
  %v2941 = vpop.f32.mrf.mxu0
  %v2942 = vadd.f32 %v2853, %v2941
  %v2943 = vpop.f32.mrf.mxu0
  %v2944 = vadd.f32 %v2855, %v2943
  %2945 = vmatmul.bf16.gmra.mxu0 %v1655
  %v2946 = vpop.f32.mrf.mxu0
  %v2947 = vadd.f32 %v2858, %v2946
  %v2948 = vpop.f32.mrf.mxu0
  %v2949 = vadd.f32 %v2860, %v2948
  %2950 = vmatmul.bf16.gmra.mxu0 %v1671
  %v2951 = vpop.f32.mrf.mxu0
  %v2952 = vadd.f32 %v2863, %v2951
  %v2953 = vpop.f32.mrf.mxu0
  %v2954 = vadd.f32 %v2865, %v2953
  %2955 = vmatmul.bf16.gmra.mxu0 %v1687
  %v2956 = vpop.f32.mrf.mxu0
  %v2957 = vadd.f32 %v2868, %v2956
  %v2958 = vpop.f32.mrf.mxu0
  %v2959 = vadd.f32 %v2870, %v2958
  %2960 = vmatmul.bf16.gmra.mxu0 %v1703
  %v2961 = vpop.f32.mrf.mxu0
  %v2962 = vadd.f32 %v2873, %v2961
  %v2963 = vpop.f32.mrf.mxu0
  %v2964 = vadd.f32 %v2875, %v2963
  %2965 = vmatmul.bf16.gmra.mxu0 %v1719
  %v2966 = vpop.f32.mrf.mxu0
  %v2967 = vadd.f32 %v2878, %v2966
  %v2968 = vpop.f32.mrf.mxu0
  %v2969 = vadd.f32 %v2880, %v2968
  %2970 = vmatmul.bf16.gmra.mxu0 %v1735
  %v2971 = vpop.f32.mrf.mxu0
  %v2972 = vadd.f32 %v2883, %v2971
  %v2973 = vpop.f32.mrf.mxu0
  %v2974 = vadd.f32 %v2885, %v2973
  %2975 = vmatmul.bf16.gmra.mxu0 %v1751
  %v2976 = vpop.f32.mrf.mxu0
  %v2977 = vadd.f32 %v2888, %v2976
  %v2978 = vpop.f32.mrf.mxu0
  %v2979 = vadd.f32 %v2890, %v2978
  %2980 = vmatmul.bf16.gmra.mxu0 %v1767
  %v2981 = vpop.f32.mrf.mxu0
  %v2982 = vadd.f32 %v2893, %v2981
  %v2983 = vpop.f32.mrf.mxu0
  %v2984 = vadd.f32 %v2895, %v2983
  %2985 = vmatmul.bf16.gmra.mxu0 %v1783
  %v2986 = vpop.f32.mrf.mxu0
  %v2987 = vadd.f32 %v2898, %v2986
  %v2988 = vpop.f32.mrf.mxu0
  %v2989 = vadd.f32 %v2900, %v2988
  %2990 = vmatmul.bf16.gmra.mxu0 %v1799
  %v2991 = vpop.f32.mrf.mxu0
  %v2992 = vadd.f32 %v2903, %v2991
  %v2993 = vpop.f32.mrf.mxu0
  %v2994 = vadd.f32 %v2905, %v2993
  %2995 = vmatmul.bf16.gmra.mxu0 %v1815
  %v2996 = vpop.f32.mrf.mxu0
  %v2997 = vadd.f32 %v2908, %v2996
  %v2998 = vpop.f32.mrf.mxu0
  %v2999 = vadd.f32 %v2910, %v2998
  %3000 = vmatmul.bf16.gmra.mxu0 %v1831
  %v3001 = vpop.f32.mrf.mxu0
  %v3002 = vadd.f32 %v2913, %v3001
  %v3003 = vpop.f32.mrf.mxu0
  %v3004 = vadd.f32 %v2915, %v3003
  %3005 = vmatmul.bf16.gmra.mxu0 %v1847
  %v3006 = vpop.f32.mrf.mxu0
  %v3007 = vadd.f32 %v2918, %v3006
  %v3008 = vpop.f32.mrf.mxu0
  %v3009 = vadd.f32 %v2920, %v3008
  %3010 = vmatmul.bf16.gmra.mxu0 %v1863
  %v3011 = vpop.f32.mrf.mxu0
  %v3012 = vadd.f32 %v2923, %v3011
  %v3013 = vpop.f32.mrf.mxu0
  %v3014 = vadd.f32 %v2925, %v3013
  %3015 = vdwg.mxu0
  %3016 = vmatpush.bf16.msra.mxu0 %v357
  %3017 = vmatpush.bf16.msra.mxu0 %v356
  %3018 = vmatpush.bf16.msra.mxu0 %v355
  %3019 = vmatpush.bf16.msra.mxu0 %v354
  %3020 = vmatpush.bf16.msra.mxu0 %v353
  %3021 = vmatpush.bf16.msra.mxu0 %v352
  %3022 = vmatpush.bf16.msra.mxu0 %v351
  %3023 = vmatpush.bf16.msra.mxu0 %v350
  %3024 = vmatmul.bf16.gmra.mxu0 %v1624
  %v3025 = vpop.f32.mrf.mxu0
  %v3026 = vadd.f32 %v2937, %v3025
  %v3027 = vpop.f32.mrf.mxu0
  %v3028 = vadd.f32 %v2939, %v3027
  %3029 = vmatmul.bf16.gmra.mxu0 %v1640
  %v3030 = vpop.f32.mrf.mxu0
  %v3031 = vadd.f32 %v2942, %v3030
  %v3032 = vpop.f32.mrf.mxu0
  %v3033 = vadd.f32 %v2944, %v3032
  %3034 = vmatmul.bf16.gmra.mxu0 %v1656
  %v3035 = vpop.f32.mrf.mxu0
  %v3036 = vadd.f32 %v2947, %v3035
  %v3037 = vpop.f32.mrf.mxu0
  %v3038 = vadd.f32 %v2949, %v3037
  %3039 = vmatmul.bf16.gmra.mxu0 %v1672
  %v3040 = vpop.f32.mrf.mxu0
  %v3041 = vadd.f32 %v2952, %v3040
  %v3042 = vpop.f32.mrf.mxu0
  %v3043 = vadd.f32 %v2954, %v3042
  %3044 = vmatmul.bf16.gmra.mxu0 %v1688
  %v3045 = vpop.f32.mrf.mxu0
  %v3046 = vadd.f32 %v2957, %v3045
  %v3047 = vpop.f32.mrf.mxu0
  %v3048 = vadd.f32 %v2959, %v3047
  %3049 = vmatmul.bf16.gmra.mxu0 %v1704
  %v3050 = vpop.f32.mrf.mxu0
  %v3051 = vadd.f32 %v2962, %v3050
  %v3052 = vpop.f32.mrf.mxu0
  %v3053 = vadd.f32 %v2964, %v3052
  %3054 = vmatmul.bf16.gmra.mxu0 %v1720
  %v3055 = vpop.f32.mrf.mxu0
  %v3056 = vadd.f32 %v2967, %v3055
  %v3057 = vpop.f32.mrf.mxu0
  %v3058 = vadd.f32 %v2969, %v3057
  %3059 = vmatmul.bf16.gmra.mxu0 %v1736
  %v3060 = vpop.f32.mrf.mxu0
  %v3061 = vadd.f32 %v2972, %v3060
  %v3062 = vpop.f32.mrf.mxu0
  %v3063 = vadd.f32 %v2974, %v3062
  %3064 = vmatmul.bf16.gmra.mxu0 %v1752
  %v3065 = vpop.f32.mrf.mxu0
  %v3066 = vadd.f32 %v2977, %v3065
  %v3067 = vpop.f32.mrf.mxu0
  %v3068 = vadd.f32 %v2979, %v3067
  %3069 = vmatmul.bf16.gmra.mxu0 %v1768
  %v3070 = vpop.f32.mrf.mxu0
  %v3071 = vadd.f32 %v2982, %v3070
  %v3072 = vpop.f32.mrf.mxu0
  %v3073 = vadd.f32 %v2984, %v3072
  %3074 = vmatmul.bf16.gmra.mxu0 %v1784
  %v3075 = vpop.f32.mrf.mxu0
  %v3076 = vadd.f32 %v2987, %v3075
  %v3077 = vpop.f32.mrf.mxu0
  %v3078 = vadd.f32 %v2989, %v3077
  %3079 = vmatmul.bf16.gmra.mxu0 %v1800
  %v3080 = vpop.f32.mrf.mxu0
  %v3081 = vadd.f32 %v2992, %v3080
  %v3082 = vpop.f32.mrf.mxu0
  %v3083 = vadd.f32 %v2994, %v3082
  %3084 = vmatmul.bf16.gmra.mxu0 %v1816
  %v3085 = vpop.f32.mrf.mxu0
  %v3086 = vadd.f32 %v2997, %v3085
  %v3087 = vpop.f32.mrf.mxu0
  %v3088 = vadd.f32 %v2999, %v3087
  %3089 = vmatmul.bf16.gmra.mxu0 %v1832
  %v3090 = vpop.f32.mrf.mxu0
  %v3091 = vadd.f32 %v3002, %v3090
  %v3092 = vpop.f32.mrf.mxu0
  %v3093 = vadd.f32 %v3004, %v3092
  %3094 = vmatmul.bf16.gmra.mxu0 %v1848
  %v3095 = vpop.f32.mrf.mxu0
  %v3096 = vadd.f32 %v3007, %v3095
  %v3097 = vpop.f32.mrf.mxu0
  %v3098 = vadd.f32 %v3009, %v3097
  %3099 = vmatmul.bf16.gmra.mxu0 %v1864
  %v3100 = vpop.f32.mrf.mxu0
  %v3101 = vadd.f32 %v3012, %v3100
  %v3102 = vpop.f32.mrf.mxu0
  %v3103 = vadd.f32 %v3014, %v3102
  %3104 = vdwg.mxu0
  %3105 = vmatpush.bf16.msra.mxu0 %v365
  %3106 = vmatpush.bf16.msra.mxu0 %v364
  %3107 = vmatpush.bf16.msra.mxu0 %v363
  %3108 = vmatpush.bf16.msra.mxu0 %v362
  %3109 = vmatpush.bf16.msra.mxu0 %v361
  %3110 = vmatpush.bf16.msra.mxu0 %v360
  %3111 = vmatpush.bf16.msra.mxu0 %v359
  %3112 = vmatpush.bf16.msra.mxu0 %v358
  %3113 = vmatmul.bf16.gmra.mxu0 %v1625
  %v3114 = vpop.f32.mrf.mxu0
  %v3115 = vadd.f32 %v3026, %v3114
  %v3116 = vpop.f32.mrf.mxu0
  %v3117 = vadd.f32 %v3028, %v3116
  %3118 = vmatmul.bf16.gmra.mxu0 %v1641
  %v3119 = vpop.f32.mrf.mxu0
  %v3120 = vadd.f32 %v3031, %v3119
  %v3121 = vpop.f32.mrf.mxu0
  %v3122 = vadd.f32 %v3033, %v3121
  %3123 = vmatmul.bf16.gmra.mxu0 %v1657
  %v3124 = vpop.f32.mrf.mxu0
  %v3125 = vadd.f32 %v3036, %v3124
  %v3126 = vpop.f32.mrf.mxu0
  %v3127 = vadd.f32 %v3038, %v3126
  %3128 = vmatmul.bf16.gmra.mxu0 %v1673
  %v3129 = vpop.f32.mrf.mxu0
  %v3130 = vadd.f32 %v3041, %v3129
  %v3131 = vpop.f32.mrf.mxu0
  %v3132 = vadd.f32 %v3043, %v3131
  %3133 = vmatmul.bf16.gmra.mxu0 %v1689
  %v3134 = vpop.f32.mrf.mxu0
  %v3135 = vadd.f32 %v3046, %v3134
  %v3136 = vpop.f32.mrf.mxu0
  %v3137 = vadd.f32 %v3048, %v3136
  %3138 = vmatmul.bf16.gmra.mxu0 %v1705
  %v3139 = vpop.f32.mrf.mxu0
  %v3140 = vadd.f32 %v3051, %v3139
  %v3141 = vpop.f32.mrf.mxu0
  %v3142 = vadd.f32 %v3053, %v3141
  %3143 = vmatmul.bf16.gmra.mxu0 %v1721
  %v3144 = vpop.f32.mrf.mxu0
  %v3145 = vadd.f32 %v3056, %v3144
  %v3146 = vpop.f32.mrf.mxu0
  %v3147 = vadd.f32 %v3058, %v3146
  %3148 = vmatmul.bf16.gmra.mxu0 %v1737
  %v3149 = vpop.f32.mrf.mxu0
  %v3150 = vadd.f32 %v3061, %v3149
  %v3151 = vpop.f32.mrf.mxu0
  %v3152 = vadd.f32 %v3063, %v3151
  %3153 = vmatmul.bf16.gmra.mxu0 %v1753
  %v3154 = vpop.f32.mrf.mxu0
  %v3155 = vadd.f32 %v3066, %v3154
  %v3156 = vpop.f32.mrf.mxu0
  %v3157 = vadd.f32 %v3068, %v3156
  %3158 = vmatmul.bf16.gmra.mxu0 %v1769
  %v3159 = vpop.f32.mrf.mxu0
  %v3160 = vadd.f32 %v3071, %v3159
  %v3161 = vpop.f32.mrf.mxu0
  %v3162 = vadd.f32 %v3073, %v3161
  %3163 = vmatmul.bf16.gmra.mxu0 %v1785
  %v3164 = vpop.f32.mrf.mxu0
  %v3165 = vadd.f32 %v3076, %v3164
  %v3166 = vpop.f32.mrf.mxu0
  %v3167 = vadd.f32 %v3078, %v3166
  %3168 = vmatmul.bf16.gmra.mxu0 %v1801
  %v3169 = vpop.f32.mrf.mxu0
  %v3170 = vadd.f32 %v3081, %v3169
  %v3171 = vpop.f32.mrf.mxu0
  %v3172 = vadd.f32 %v3083, %v3171
  %3173 = vmatmul.bf16.gmra.mxu0 %v1817
  %v3174 = vpop.f32.mrf.mxu0
  %v3175 = vadd.f32 %v3086, %v3174
  %v3176 = vpop.f32.mrf.mxu0
  %v3177 = vadd.f32 %v3088, %v3176
  %3178 = vmatmul.bf16.gmra.mxu0 %v1833
  %v3179 = vpop.f32.mrf.mxu0
  %v3180 = vadd.f32 %v3091, %v3179
  %v3181 = vpop.f32.mrf.mxu0
  %v3182 = vadd.f32 %v3093, %v3181
  %3183 = vmatmul.bf16.gmra.mxu0 %v1849
  %v3184 = vpop.f32.mrf.mxu0
  %v3185 = vadd.f32 %v3096, %v3184
  %v3186 = vpop.f32.mrf.mxu0
  %v3187 = vadd.f32 %v3098, %v3186
  %3188 = vmatmul.bf16.gmra.mxu0 %v1865
  %v3189 = vpop.f32.mrf.mxu0
  %v3190 = vadd.f32 %v3101, %v3189
  %v3191 = vpop.f32.mrf.mxu0
  %v3192 = vadd.f32 %v3103, %v3191
  %3193 = vdwg.mxu0
  %3194 = vmatpush.bf16.msra.mxu0 %v373
  %3195 = vmatpush.bf16.msra.mxu0 %v372
  %3196 = vmatpush.bf16.msra.mxu0 %v371
  %3197 = vmatpush.bf16.msra.mxu0 %v370
  %3198 = vmatpush.bf16.msra.mxu0 %v369
  %3199 = vmatpush.bf16.msra.mxu0 %v368
  %3200 = vmatpush.bf16.msra.mxu0 %v367
  %3201 = vmatpush.bf16.msra.mxu0 %v366
  %3202 = vmatmul.bf16.gmra.mxu0 %v1626
  %v3203 = vpop.f32.mrf.mxu0
  %v3204 = vadd.f32 %v3115, %v3203
  %v3205 = vpop.f32.mrf.mxu0
  %v3206 = vadd.f32 %v3117, %v3205
  %3207 = vmatmul.bf16.gmra.mxu0 %v1642
  %v3208 = vpop.f32.mrf.mxu0
  %v3209 = vadd.f32 %v3120, %v3208
  %v3210 = vpop.f32.mrf.mxu0
  %v3211 = vadd.f32 %v3122, %v3210
  %3212 = vmatmul.bf16.gmra.mxu0 %v1658
  %v3213 = vpop.f32.mrf.mxu0
  %v3214 = vadd.f32 %v3125, %v3213
  %v3215 = vpop.f32.mrf.mxu0
  %v3216 = vadd.f32 %v3127, %v3215
  %3217 = vmatmul.bf16.gmra.mxu0 %v1674
  %v3218 = vpop.f32.mrf.mxu0
  %v3219 = vadd.f32 %v3130, %v3218
  %v3220 = vpop.f32.mrf.mxu0
  %v3221 = vadd.f32 %v3132, %v3220
  %3222 = vmatmul.bf16.gmra.mxu0 %v1690
  %v3223 = vpop.f32.mrf.mxu0
  %v3224 = vadd.f32 %v3135, %v3223
  %v3225 = vpop.f32.mrf.mxu0
  %v3226 = vadd.f32 %v3137, %v3225
  %3227 = vmatmul.bf16.gmra.mxu0 %v1706
  %v3228 = vpop.f32.mrf.mxu0
  %v3229 = vadd.f32 %v3140, %v3228
  %v3230 = vpop.f32.mrf.mxu0
  %v3231 = vadd.f32 %v3142, %v3230
  %3232 = vmatmul.bf16.gmra.mxu0 %v1722
  %v3233 = vpop.f32.mrf.mxu0
  %v3234 = vadd.f32 %v3145, %v3233
  %v3235 = vpop.f32.mrf.mxu0
  %v3236 = vadd.f32 %v3147, %v3235
  %3237 = vmatmul.bf16.gmra.mxu0 %v1738
  %v3238 = vpop.f32.mrf.mxu0
  %v3239 = vadd.f32 %v3150, %v3238
  %v3240 = vpop.f32.mrf.mxu0
  %v3241 = vadd.f32 %v3152, %v3240
  %3242 = vmatmul.bf16.gmra.mxu0 %v1754
  %v3243 = vpop.f32.mrf.mxu0
  %v3244 = vadd.f32 %v3155, %v3243
  %v3245 = vpop.f32.mrf.mxu0
  %v3246 = vadd.f32 %v3157, %v3245
  %3247 = vmatmul.bf16.gmra.mxu0 %v1770
  %v3248 = vpop.f32.mrf.mxu0
  %v3249 = vadd.f32 %v3160, %v3248
  %v3250 = vpop.f32.mrf.mxu0
  %v3251 = vadd.f32 %v3162, %v3250
  %3252 = vmatmul.bf16.gmra.mxu0 %v1786
  %v3253 = vpop.f32.mrf.mxu0
  %v3254 = vadd.f32 %v3165, %v3253
  %v3255 = vpop.f32.mrf.mxu0
  %v3256 = vadd.f32 %v3167, %v3255
  %3257 = vmatmul.bf16.gmra.mxu0 %v1802
  %v3258 = vpop.f32.mrf.mxu0
  %v3259 = vadd.f32 %v3170, %v3258
  %v3260 = vpop.f32.mrf.mxu0
  %v3261 = vadd.f32 %v3172, %v3260
  %3262 = vmatmul.bf16.gmra.mxu0 %v1818
  %v3263 = vpop.f32.mrf.mxu0
  %v3264 = vadd.f32 %v3175, %v3263
  %v3265 = vpop.f32.mrf.mxu0
  %v3266 = vadd.f32 %v3177, %v3265
  %3267 = vmatmul.bf16.gmra.mxu0 %v1834
  %v3268 = vpop.f32.mrf.mxu0
  %v3269 = vadd.f32 %v3180, %v3268
  %v3270 = vpop.f32.mrf.mxu0
  %v3271 = vadd.f32 %v3182, %v3270
  %3272 = vmatmul.bf16.gmra.mxu0 %v1850
  %v3273 = vpop.f32.mrf.mxu0
  %v3274 = vadd.f32 %v3185, %v3273
  %v3275 = vpop.f32.mrf.mxu0
  %v3276 = vadd.f32 %v3187, %v3275
  %3277 = vmatmul.bf16.gmra.mxu0 %v1866
  %v3278 = vpop.f32.mrf.mxu0
  %v3279 = vadd.f32 %v3190, %v3278
  %v3280 = vpop.f32.mrf.mxu0
  %v3281 = vadd.f32 %v3192, %v3280
  %3282 = vdwg.mxu0
  %3283 = vmatpush.bf16.msra.mxu0 %v381
  %3284 = vmatpush.bf16.msra.mxu0 %v380
  %3285 = vmatpush.bf16.msra.mxu0 %v379
  %3286 = vmatpush.bf16.msra.mxu0 %v378
  %3287 = vmatpush.bf16.msra.mxu0 %v377
  %3288 = vmatpush.bf16.msra.mxu0 %v376
  %3289 = vmatpush.bf16.msra.mxu0 %v375
  %3290 = vmatpush.bf16.msra.mxu0 %v374
  %3291 = vmatmul.bf16.gmra.mxu0 %v1627
  %v3292 = vpop.f32.mrf.mxu0
  %v3293 = vadd.f32 %v3204, %v3292
  %v3294 = vpop.f32.mrf.mxu0
  %v3295 = vadd.f32 %v3206, %v3294
  %3296 = vmatmul.bf16.gmra.mxu0 %v1643
  %v3297 = vpop.f32.mrf.mxu0
  %v3298 = vadd.f32 %v3209, %v3297
  %v3299 = vpop.f32.mrf.mxu0
  %v3300 = vadd.f32 %v3211, %v3299
  %3301 = vmatmul.bf16.gmra.mxu0 %v1659
  %v3302 = vpop.f32.mrf.mxu0
  %v3303 = vadd.f32 %v3214, %v3302
  %v3304 = vpop.f32.mrf.mxu0
  %v3305 = vadd.f32 %v3216, %v3304
  %3306 = vmatmul.bf16.gmra.mxu0 %v1675
  %v3307 = vpop.f32.mrf.mxu0
  %v3308 = vadd.f32 %v3219, %v3307
  %v3309 = vpop.f32.mrf.mxu0
  %v3310 = vadd.f32 %v3221, %v3309
  %3311 = vmatmul.bf16.gmra.mxu0 %v1691
  %v3312 = vpop.f32.mrf.mxu0
  %v3313 = vadd.f32 %v3224, %v3312
  %v3314 = vpop.f32.mrf.mxu0
  %v3315 = vadd.f32 %v3226, %v3314
  %3316 = vmatmul.bf16.gmra.mxu0 %v1707
  %v3317 = vpop.f32.mrf.mxu0
  %v3318 = vadd.f32 %v3229, %v3317
  %v3319 = vpop.f32.mrf.mxu0
  %v3320 = vadd.f32 %v3231, %v3319
  %3321 = vmatmul.bf16.gmra.mxu0 %v1723
  %v3322 = vpop.f32.mrf.mxu0
  %v3323 = vadd.f32 %v3234, %v3322
  %v3324 = vpop.f32.mrf.mxu0
  %v3325 = vadd.f32 %v3236, %v3324
  %3326 = vmatmul.bf16.gmra.mxu0 %v1739
  %v3327 = vpop.f32.mrf.mxu0
  %v3328 = vadd.f32 %v3239, %v3327
  %v3329 = vpop.f32.mrf.mxu0
  %v3330 = vadd.f32 %v3241, %v3329
  %3331 = vmatmul.bf16.gmra.mxu0 %v1755
  %v3332 = vpop.f32.mrf.mxu0
  %v3333 = vadd.f32 %v3244, %v3332
  %v3334 = vpop.f32.mrf.mxu0
  %v3335 = vadd.f32 %v3246, %v3334
  %3336 = vmatmul.bf16.gmra.mxu0 %v1771
  %v3337 = vpop.f32.mrf.mxu0
  %v3338 = vadd.f32 %v3249, %v3337
  %v3339 = vpop.f32.mrf.mxu0
  %v3340 = vadd.f32 %v3251, %v3339
  %3341 = vmatmul.bf16.gmra.mxu0 %v1787
  %v3342 = vpop.f32.mrf.mxu0
  %v3343 = vadd.f32 %v3254, %v3342
  %v3344 = vpop.f32.mrf.mxu0
  %v3345 = vadd.f32 %v3256, %v3344
  %3346 = vmatmul.bf16.gmra.mxu0 %v1803
  %v3347 = vpop.f32.mrf.mxu0
  %v3348 = vadd.f32 %v3259, %v3347
  %v3349 = vpop.f32.mrf.mxu0
  %v3350 = vadd.f32 %v3261, %v3349
  %3351 = vmatmul.bf16.gmra.mxu0 %v1819
  %v3352 = vpop.f32.mrf.mxu0
  %v3353 = vadd.f32 %v3264, %v3352
  %v3354 = vpop.f32.mrf.mxu0
  %v3355 = vadd.f32 %v3266, %v3354
  %3356 = vmatmul.bf16.gmra.mxu0 %v1835
  %v3357 = vpop.f32.mrf.mxu0
  %v3358 = vadd.f32 %v3269, %v3357
  %v3359 = vpop.f32.mrf.mxu0
  %v3360 = vadd.f32 %v3271, %v3359
  %3361 = vmatmul.bf16.gmra.mxu0 %v1851
  %v3362 = vpop.f32.mrf.mxu0
  %v3363 = vadd.f32 %v3274, %v3362
  %v3364 = vpop.f32.mrf.mxu0
  %v3365 = vadd.f32 %v3276, %v3364
  %3366 = vmatmul.bf16.gmra.mxu0 %v1867
  %v3367 = vpop.f32.mrf.mxu0
  %v3368 = vadd.f32 %v3279, %v3367
  %v3369 = vpop.f32.mrf.mxu0
  %v3370 = vadd.f32 %v3281, %v3369
  %3371 = vdwg.mxu0
  %3372 = vmatpush.bf16.msra.mxu0 %v389
  %3373 = vmatpush.bf16.msra.mxu0 %v388
  %3374 = vmatpush.bf16.msra.mxu0 %v387
  %3375 = vmatpush.bf16.msra.mxu0 %v386
  %3376 = vmatpush.bf16.msra.mxu0 %v385
  %3377 = vmatpush.bf16.msra.mxu0 %v384
  %3378 = vmatpush.bf16.msra.mxu0 %v383
  %3379 = vmatpush.bf16.msra.mxu0 %v382
  %3380 = vmatmul.bf16.gmra.mxu0 %v1628
  %v3381 = vpop.f32.mrf.mxu0
  %v3382 = vadd.f32 %v3293, %v3381
  %v3383 = vpop.f32.mrf.mxu0
  %v3384 = vadd.f32 %v3295, %v3383
  %3385 = vmatmul.bf16.gmra.mxu0 %v1644
  %v3386 = vpop.f32.mrf.mxu0
  %v3387 = vadd.f32 %v3298, %v3386
  %v3388 = vpop.f32.mrf.mxu0
  %v3389 = vadd.f32 %v3300, %v3388
  %3390 = vmatmul.bf16.gmra.mxu0 %v1660
  %v3391 = vpop.f32.mrf.mxu0
  %v3392 = vadd.f32 %v3303, %v3391
  %v3393 = vpop.f32.mrf.mxu0
  %v3394 = vadd.f32 %v3305, %v3393
  %3395 = vmatmul.bf16.gmra.mxu0 %v1676
  %v3396 = vpop.f32.mrf.mxu0
  %v3397 = vadd.f32 %v3308, %v3396
  %v3398 = vpop.f32.mrf.mxu0
  %v3399 = vadd.f32 %v3310, %v3398
  %3400 = vmatmul.bf16.gmra.mxu0 %v1692
  %v3401 = vpop.f32.mrf.mxu0
  %v3402 = vadd.f32 %v3313, %v3401
  %v3403 = vpop.f32.mrf.mxu0
  %v3404 = vadd.f32 %v3315, %v3403
  %3405 = vmatmul.bf16.gmra.mxu0 %v1708
  %v3406 = vpop.f32.mrf.mxu0
  %v3407 = vadd.f32 %v3318, %v3406
  %v3408 = vpop.f32.mrf.mxu0
  %v3409 = vadd.f32 %v3320, %v3408
  %3410 = vmatmul.bf16.gmra.mxu0 %v1724
  %v3411 = vpop.f32.mrf.mxu0
  %v3412 = vadd.f32 %v3323, %v3411
  %v3413 = vpop.f32.mrf.mxu0
  %v3414 = vadd.f32 %v3325, %v3413
  %3415 = vmatmul.bf16.gmra.mxu0 %v1740
  %v3416 = vpop.f32.mrf.mxu0
  %v3417 = vadd.f32 %v3328, %v3416
  %v3418 = vpop.f32.mrf.mxu0
  %v3419 = vadd.f32 %v3330, %v3418
  %3420 = vmatmul.bf16.gmra.mxu0 %v1756
  %v3421 = vpop.f32.mrf.mxu0
  %v3422 = vadd.f32 %v3333, %v3421
  %v3423 = vpop.f32.mrf.mxu0
  %v3424 = vadd.f32 %v3335, %v3423
  %3425 = vmatmul.bf16.gmra.mxu0 %v1772
  %v3426 = vpop.f32.mrf.mxu0
  %v3427 = vadd.f32 %v3338, %v3426
  %v3428 = vpop.f32.mrf.mxu0
  %v3429 = vadd.f32 %v3340, %v3428
  %3430 = vmatmul.bf16.gmra.mxu0 %v1788
  %v3431 = vpop.f32.mrf.mxu0
  %v3432 = vadd.f32 %v3343, %v3431
  %v3433 = vpop.f32.mrf.mxu0
  %v3434 = vadd.f32 %v3345, %v3433
  %3435 = vmatmul.bf16.gmra.mxu0 %v1804
  %v3436 = vpop.f32.mrf.mxu0
  %v3437 = vadd.f32 %v3348, %v3436
  %v3438 = vpop.f32.mrf.mxu0
  %v3439 = vadd.f32 %v3350, %v3438
  %3440 = vmatmul.bf16.gmra.mxu0 %v1820
  %v3441 = vpop.f32.mrf.mxu0
  %v3442 = vadd.f32 %v3353, %v3441
  %v3443 = vpop.f32.mrf.mxu0
  %v3444 = vadd.f32 %v3355, %v3443
  %3445 = vmatmul.bf16.gmra.mxu0 %v1836
  %v3446 = vpop.f32.mrf.mxu0
  %v3447 = vadd.f32 %v3358, %v3446
  %v3448 = vpop.f32.mrf.mxu0
  %v3449 = vadd.f32 %v3360, %v3448
  %3450 = vmatmul.bf16.gmra.mxu0 %v1852
  %v3451 = vpop.f32.mrf.mxu0
  %v3452 = vadd.f32 %v3363, %v3451
  %v3453 = vpop.f32.mrf.mxu0
  %v3454 = vadd.f32 %v3365, %v3453
  %3455 = vmatmul.bf16.gmra.mxu0 %v1868
  %v3456 = vpop.f32.mrf.mxu0
  %v3457 = vadd.f32 %v3368, %v3456
  %v3458 = vpop.f32.mrf.mxu0
  %v3459 = vadd.f32 %v3370, %v3458
  %3460 = vdwg.mxu0
  %3461 = vmatpush.bf16.msra.mxu0 %v397
  %3462 = vmatpush.bf16.msra.mxu0 %v396
  %3463 = vmatpush.bf16.msra.mxu0 %v395
  %3464 = vmatpush.bf16.msra.mxu0 %v394
  %3465 = vmatpush.bf16.msra.mxu0 %v393
  %3466 = vmatpush.bf16.msra.mxu0 %v392
  %3467 = vmatpush.bf16.msra.mxu0 %v391
  %3468 = vmatpush.bf16.msra.mxu0 %v390
  %3469 = vmatmul.bf16.gmra.mxu0 %v1629
  %v3470 = vpop.f32.mrf.mxu0
  %v3471 = vadd.f32 %v3382, %v3470
  %v3472 = vpop.f32.mrf.mxu0
  %v3473 = vadd.f32 %v3384, %v3472
  %3474 = vmatmul.bf16.gmra.mxu0 %v1645
  %v3475 = vpop.f32.mrf.mxu0
  %v3476 = vadd.f32 %v3387, %v3475
  %v3477 = vpop.f32.mrf.mxu0
  %v3478 = vadd.f32 %v3389, %v3477
  %3479 = vmatmul.bf16.gmra.mxu0 %v1661
  %v3480 = vpop.f32.mrf.mxu0
  %v3481 = vadd.f32 %v3392, %v3480
  %v3482 = vpop.f32.mrf.mxu0
  %v3483 = vadd.f32 %v3394, %v3482
  %3484 = vmatmul.bf16.gmra.mxu0 %v1677
  %v3485 = vpop.f32.mrf.mxu0
  %v3486 = vadd.f32 %v3397, %v3485
  %v3487 = vpop.f32.mrf.mxu0
  %v3488 = vadd.f32 %v3399, %v3487
  %3489 = vmatmul.bf16.gmra.mxu0 %v1693
  %v3490 = vpop.f32.mrf.mxu0
  %v3491 = vadd.f32 %v3402, %v3490
  %v3492 = vpop.f32.mrf.mxu0
  %v3493 = vadd.f32 %v3404, %v3492
  %3494 = vmatmul.bf16.gmra.mxu0 %v1709
  %v3495 = vpop.f32.mrf.mxu0
  %v3496 = vadd.f32 %v3407, %v3495
  %v3497 = vpop.f32.mrf.mxu0
  %v3498 = vadd.f32 %v3409, %v3497
  %3499 = vmatmul.bf16.gmra.mxu0 %v1725
  %v3500 = vpop.f32.mrf.mxu0
  %v3501 = vadd.f32 %v3412, %v3500
  %v3502 = vpop.f32.mrf.mxu0
  %v3503 = vadd.f32 %v3414, %v3502
  %3504 = vmatmul.bf16.gmra.mxu0 %v1741
  %v3505 = vpop.f32.mrf.mxu0
  %v3506 = vadd.f32 %v3417, %v3505
  %v3507 = vpop.f32.mrf.mxu0
  %v3508 = vadd.f32 %v3419, %v3507
  %3509 = vmatmul.bf16.gmra.mxu0 %v1757
  %v3510 = vpop.f32.mrf.mxu0
  %v3511 = vadd.f32 %v3422, %v3510
  %v3512 = vpop.f32.mrf.mxu0
  %v3513 = vadd.f32 %v3424, %v3512
  %3514 = vmatmul.bf16.gmra.mxu0 %v1773
  %v3515 = vpop.f32.mrf.mxu0
  %v3516 = vadd.f32 %v3427, %v3515
  %v3517 = vpop.f32.mrf.mxu0
  %v3518 = vadd.f32 %v3429, %v3517
  %3519 = vmatmul.bf16.gmra.mxu0 %v1789
  %v3520 = vpop.f32.mrf.mxu0
  %v3521 = vadd.f32 %v3432, %v3520
  %v3522 = vpop.f32.mrf.mxu0
  %v3523 = vadd.f32 %v3434, %v3522
  %3524 = vmatmul.bf16.gmra.mxu0 %v1805
  %v3525 = vpop.f32.mrf.mxu0
  %v3526 = vadd.f32 %v3437, %v3525
  %v3527 = vpop.f32.mrf.mxu0
  %v3528 = vadd.f32 %v3439, %v3527
  %3529 = vmatmul.bf16.gmra.mxu0 %v1821
  %v3530 = vpop.f32.mrf.mxu0
  %v3531 = vadd.f32 %v3442, %v3530
  %v3532 = vpop.f32.mrf.mxu0
  %v3533 = vadd.f32 %v3444, %v3532
  %3534 = vmatmul.bf16.gmra.mxu0 %v1837
  %v3535 = vpop.f32.mrf.mxu0
  %v3536 = vadd.f32 %v3447, %v3535
  %v3537 = vpop.f32.mrf.mxu0
  %v3538 = vadd.f32 %v3449, %v3537
  %3539 = vmatmul.bf16.gmra.mxu0 %v1853
  %v3540 = vpop.f32.mrf.mxu0
  %v3541 = vadd.f32 %v3452, %v3540
  %v3542 = vpop.f32.mrf.mxu0
  %v3543 = vadd.f32 %v3454, %v3542
  %3544 = vmatmul.bf16.gmra.mxu0 %v1869
  %v3545 = vpop.f32.mrf.mxu0
  %v3546 = vadd.f32 %v3457, %v3545
  %v3547 = vpop.f32.mrf.mxu0
  %v3548 = vadd.f32 %v3459, %v3547
  %3549 = vdwg.mxu0
  %v3550 = vmax.f32 %v3471, 0.0
  %v3551 = vmax.f32 %v3473, 0.0
  %v3552 = vmax.f32 %v3476, 0.0
  %v3553 = vmax.f32 %v3478, 0.0
  %v3554 = vmax.f32 %v3481, 0.0
  %v3555 = vmax.f32 %v3483, 0.0
  %v3556 = vmax.f32 %v3486, 0.0
  %v3557 = vmax.f32 %v3488, 0.0
  %v3558 = vmax.f32 %v3491, 0.0
  %v3559 = vmax.f32 %v3493, 0.0
  %v3560 = vmax.f32 %v3496, 0.0
  %v3561 = vmax.f32 %v3498, 0.0
  %v3562 = vmax.f32 %v3501, 0.0
  %v3563 = vmax.f32 %v3503, 0.0
  %v3564 = vmax.f32 %v3506, 0.0
  %v3565 = vmax.f32 %v3508, 0.0
  %v3566 = vmax.f32 %v3511, 0.0
  %v3567 = vmax.f32 %v3513, 0.0
  %v3568 = vmax.f32 %v3516, 0.0
  %v3569 = vmax.f32 %v3518, 0.0
  %v3570 = vmax.f32 %v3521, 0.0
  %v3571 = vmax.f32 %v3523, 0.0
  %v3572 = vmax.f32 %v3526, 0.0
  %v3573 = vmax.f32 %v3528, 0.0
  %v3574 = vmax.f32 %v3531, 0.0
  %v3575 = vmax.f32 %v3533, 0.0
  %v3576 = vmax.f32 %v3536, 0.0
  %v3577 = vmax.f32 %v3538, 0.0
  %v3578 = vmax.f32 %v3541, 0.0
  %v3579 = vmax.f32 %v3543, 0.0
  %v3580 = vmax.f32 %v3546, 0.0
  %v3581 = vmax.f32 %v3548, 0.0
  %v3582 = vpack.c.bf16 %v3550, %v3550
  %v3583 = vpack.c.bf16 %v3551, %v3551
  %v3584 = vpack.c.bf16 %v3552, %v3552
  %v3585 = vpack.c.bf16 %v3553, %v3553
  %v3586 = vpack.c.bf16 %v3554, %v3554
  %v3587 = vpack.c.bf16 %v3555, %v3555
  %v3588 = vpack.c.bf16 %v3556, %v3556
  %v3589 = vpack.c.bf16 %v3557, %v3557
  %v3590 = vpack.c.bf16 %v3558, %v3558
  %v3591 = vpack.c.bf16 %v3559, %v3559
  %v3592 = vpack.c.bf16 %v3560, %v3560
  %v3593 = vpack.c.bf16 %v3561, %v3561
  %v3594 = vpack.c.bf16 %v3562, %v3562
  %v3595 = vpack.c.bf16 %v3563, %v3563
  %v3596 = vpack.c.bf16 %v3564, %v3564
  %v3597 = vpack.c.bf16 %v3565, %v3565
  %v3598 = vpack.c.bf16 %v3566, %v3566
  %v3599 = vpack.c.bf16 %v3567, %v3567
  %v3600 = vpack.c.bf16 %v3568, %v3568
  %v3601 = vpack.c.bf16 %v3569, %v3569
  %v3602 = vpack.c.bf16 %v3570, %v3570
  %v3603 = vpack.c.bf16 %v3571, %v3571
  %v3604 = vpack.c.bf16 %v3572, %v3572
  %v3605 = vpack.c.bf16 %v3573, %v3573
  %v3606 = vpack.c.bf16 %v3574, %v3574
  %v3607 = vpack.c.bf16 %v3575, %v3575
  %v3608 = vpack.c.bf16 %v3576, %v3576
  %v3609 = vpack.c.bf16 %v3577, %v3577
  %v3610 = vpack.c.bf16 %v3578, %v3578
  %v3611 = vpack.c.bf16 %v3579, %v3579
  %v3612 = vpack.c.bf16 %v3580, %v3580
  %v3613 = vpack.c.bf16 %v3581, %v3581
  %3614 = vst [vmem:[%s3] sm:$0xf] %v3582
  %3615 = vst [vmem:[%s3 + $0x4] sm:$0xf] %v3583
  %3616 = vst [vmem:[%s3 + $0x8] sm:$0xf] %v3584
  %3617 = vst [vmem:[%s3 + $0xc] sm:$0xf] %v3585
  %3618 = vst [vmem:[%s3 + $0x10] sm:$0xf] %v3586
  %3619 = vst [vmem:[%s3 + $0x14] sm:$0xf] %v3587
  %3620 = vst [vmem:[%s3 + $0x18] sm:$0xf] %v3588
  %3621 = vst [vmem:[%s3 + $0x1c] sm:$0xf] %v3589
  %3622 = vst [vmem:[%s3 + $0x20] sm:$0xf] %v3590
  %3623 = vst [vmem:[%s3 + $0x24] sm:$0xf] %v3591
  %3624 = vst [vmem:[%s3 + $0x28] sm:$0xf] %v3592
  %3625 = vst [vmem:[%s3 + $0x2c] sm:$0xf] %v3593
  %3626 = vst [vmem:[%s3 + $0x30] sm:$0xf] %v3594
  %3627 = vst [vmem:[%s3 + $0x34] sm:$0xf] %v3595
  %3628 = vst [vmem:[%s3 + $0x38] sm:$0xf] %v3596
  %3629 = vst [vmem:[%s3 + $0x3c] sm:$0xf] %v3597
  %3630 = vst [vmem:[%s3 + $0x40] sm:$0xf] %v3598
  %3631 = vst [vmem:[%s3 + $0x44] sm:$0xf] %v3599
  %3632 = vst [vmem:[%s3 + $0x48] sm:$0xf] %v3600
  %3633 = vst [vmem:[%s3 + $0x4c] sm:$0xf] %v3601
  %3634 = vst [vmem:[%s3 + $0x50] sm:$0xf] %v3602
  %3635 = vst [vmem:[%s3 + $0x54] sm:$0xf] %v3603
  %3636 = vst [vmem:[%s3 + $0x58] sm:$0xf] %v3604
  %3637 = vst [vmem:[%s3 + $0x5c] sm:$0xf] %v3605
  %3638 = vst [vmem:[%s3 + $0x60] sm:$0xf] %v3606
  %3639 = vst [vmem:[%s3 + $0x64] sm:$0xf] %v3607
  %3640 = vst [vmem:[%s3 + $0x68] sm:$0xf] %v3608
  %3641 = vst [vmem:[%s3 + $0x6c] sm:$0xf] %v3609
  %3642 = vst [vmem:[%s3 + $0x70] sm:$0xf] %v3610
  %3643 = vst [vmem:[%s3 + $0x74] sm:$0xf] %v3611
  %3644 = vst [vmem:[%s3 + $0x78] sm:$0xf] %v3612
  %3645 = vst [vmem:[%s3 + $0x7c] sm:$0xf] %v3613
  // Predicated region
  $region14: #{tpu_custom_call.1} parent=0 // pred_check
    _
  $region15: #{tpu_custom_call.1} parent=0 // pred_check_branch
    %3647 = sbr.rel (0) target = $region17
  $region16: #{tpu_custom_call.1} parent=0 // pred_region
    _
  $region17: #{tpu_custom_call.1} parent=0 // pred_fallthru
    _
  // Predicated region
  $region18: #{tpu_custom_call.1} parent=0 // pred_check
    _
  $region19: #{tpu_custom_call.1} parent=0 // pred_check_branch
    %3649 = sbr.rel (0) target = $region21
  $region20: #{tpu_custom_call.1} parent=0 // pred_region
    _
  $region21: #{tpu_custom_call.1} parent=0 // pred_fallthru
    _

</llo_original>
